<compile_context>
chip_gen: v7x
topology: tpu7x:2x2x1
jax: 0.10.0
libtpu: 0.0.40
codegen_flags: <defaults>
</compile_context>

<pallas_src>
import functools

import jax
import jax.numpy as jnp
import numpy as np
from jax.experimental import pallas as pl
from jax.experimental.pallas import tpu as pltpu


# ------------------------------ fused kernel -------------------------------

def _block_kernel(x_ref, ctx_ref, ln_g_ref, ln_b_ref,
                  wqkv1_ref, wo1_ref, bo1_ref,
                  wq2_ref, wkv2_ref, wo2_ref, bo2_ref,
                  ffw1_ref, ffb1_ref, ffw2_ref, ffb2_ref,
                  o_ref, *, heads, dim_head, eps):
    H = heads
    ff_inner = ffw2_ref.shape[0]
    cdt = wqkv1_ref.dtype                    # MXU operand dtype (bf16)

    x = x_ref[0]                             # (Sq, D)  f32, resident for the whole block
    c = ctx_ref[0]                           # (Sk, Dc) f32

    def layernorm(h, idx):                   # f32 statistics (eps = 1e-12)
        g = ln_g_ref[pl.ds(idx, 1)]          # (1, D)
        b = ln_b_ref[pl.ds(idx, 1)]          # (1, D)
        mean = jnp.mean(h, axis=-1, keepdims=True)
        var = jnp.mean((h - mean) ** 2, axis=-1, keepdims=True)
        return (h - mean) * jax.lax.rsqrt(var + eps) * g + b

    def proj_heads(h2d, w3):
        # h2d: (S, Din) f32; w3: (nH, Din, dh) bf16 -> (nH, S, dh) f32 accumulation.
        # Head-major weights + leading-axis broadcast: no lane-axis head slicing.
        nh = w3.shape[0]
        hb = jnp.broadcast_to(h2d.astype(cdt), (nh,) + h2d.shape)
        return jnp.einsum("hsd,hde->hse", hb, w3,
                          preferred_element_type=jnp.float32)

    def mha(q3, k3, v3, wo3, bo):
        # q3: (H, Sq, dh) (scale already folded into Wq), k3/v3: (H, Sk, dh),
        # wo3: (H, dh, D) bf16, bo: (1, D) f32
        s = jnp.einsum("hqd,hkd->hqk", q3.astype(cdt), k3.astype(cdt),
                       preferred_element_type=jnp.float32)        # (H, Sq, Sk) f32
        s = s - jnp.max(s, axis=-1, keepdims=True)
        p = jnp.exp(s)                                            # f32 softmax
        denom = jnp.sum(p, axis=-1, keepdims=True)
        inv = pl.reciprocal(denom, approx=True)                   # EUP slot
        inv = inv * (2.0 - denom * inv)                           # one Newton step
        p = p * inv
        o = jnp.einsum("hqk,hkd->hqd", p.astype(cdt), v3.astype(cdt),
                       preferred_element_type=jnp.float32)        # (H, Sq, dh)
        proj = jnp.einsum("hqd,hde->hqe", o.astype(cdt), wo3,
                          preferred_element_type=jnp.float32)     # (H, Sq, D)
        return jnp.sum(proj, axis=0) + bo                         # == concat(heads) @ Wo + bo

    # --- attn1 (self-attention) + residual ---
    n1 = layernorm(x, 0)
    qkv = proj_heads(n1, wqkv1_ref[...])                          # (3H, Sq, dh)
    x = mha(qkv[:H], qkv[H:2 * H], qkv[2 * H:],
            wo1_ref[...], bo1_ref[...]) + x

    # --- attn2 (cross-attention with context) + residual ---
    n2 = layernorm(x, 1)
    q2 = proj_heads(n2, wq2_ref[...])                             # (H, Sq, dh)
    kv = proj_heads(c, wkv2_ref[...])                             # (2H, Sk, dh)
    x = mha(q2, kv[:H], kv[H:], wo2_ref[...], bo2_ref[...]) + x

    # --- GEGLU feed-forward + residual ---
    n3 = layernorm(x, 2)
    h = jnp.dot(n3.astype(cdt), ffw1_ref[...],
                preferred_element_type=jnp.float32) + ffb1_ref[...]   # (Sq, 2*ff_inner)
    hid = h[:, :ff_inner]                                             # 128-aligned lane split
    gate = h[:, ff_inner:]
    # exact (erf) GELU in f32 — matches F.gelu(gate.float())
    gelu_gate = 0.5 * gate * (1.0 + jax.lax.erf(gate * 0.7071067811865476))
    x = (jnp.dot((hid * gelu_gate).astype(cdt), ffw2_ref[...],
                 preferred_element_type=jnp.float32) + ffb2_ref[...]) + x

    # TODO(synk): D=32 (<128 lanes) -> masked partial stores; at real shapes make the
    # output tile lane-dense (multiple of 128) or fold more rows per grid step.
    o_ref[0] = x.astype(o_ref.dtype)


# ------------------------------- wrappers ----------------------------------

def pack_params(params, *, heads, dim_head, compute_dtype=jnp.bfloat16):
    """Host-side one-time packing: head-major Q/K/V weights (scale folded into Q),
    fused QKV / KV stacks, per-head W_o, bf16 matmul weights, f32 small params."""
    p = params
    D = p["a1_wq"].shape[0]
    scale = dim_head ** (-0.5)

    def head_major(w):                       # (Din, H*dh) -> (H, Din, dh)
        Din = w.shape[0]
        return jnp.transpose(w.reshape(Din, heads, dim_head), (1, 0, 2))

    wq1 = head_major(p["a1_wq"] * scale)     # softmax scale folded into Q weights
    wk1 = head_major(p["a1_wk"])
    wv1 = head_major(p["a1_wv"])
    wq2 = head_major(p["a2_wq"] * scale)
    wk2 = head_major(p["a2_wk"])
    wv2 = head_major(p["a2_wv"])

    f32 = jnp.float32
    return {
        "ln_g": jnp.stack([p["ln1_g"], p["ln2_g"], p["ln3_g"]], axis=0).astype(f32),  # (3, D)
        "ln_b": jnp.stack([p["ln1_b"], p["ln2_b"], p["ln3_b"]], axis=0).astype(f32),  # (3, D)
        "wqkv1": jnp.concatenate([wq1, wk1, wv1], axis=0).astype(compute_dtype),      # (3H, D, dh)
        "wo1": p["a1_wo"].reshape(heads, dim_head, D).astype(compute_dtype),          # (H, dh, D)
        "bo1": p["a1_bo"].reshape(1, D).astype(f32),
        "wq2": wq2.astype(compute_dtype),                                             # (H, D, dh)
        "wkv2": jnp.concatenate([wk2, wv2], axis=0).astype(compute_dtype),            # (2H, Dc, dh)
        "wo2": p["a2_wo"].reshape(heads, dim_head, D).astype(compute_dtype),          # (H, dh, D)
        "bo2": p["a2_bo"].reshape(1, D).astype(f32),
        "ffw1": p["ff_w1"].astype(compute_dtype),                                     # (D, 2*ff_inner)
        "ffb1": p["ff_b1"].reshape(1, -1).astype(f32),
        "ffw2": p["ff_w2"].astype(compute_dtype),                                     # (ff_inner, D)
        "ffb2": p["ff_b2"].reshape(1, -1).astype(f32),
    }


@functools.partial(jax.jit, static_argnames=("heads", "dim_head", "eps"))
def basic_transformer_block(hidden_states, context, packed, *, heads, dim_head, eps=1e-12):
    B, Sq, D = hidden_states.shape
    _, Sk, Dc = context.shape
    inner = heads * dim_head
    ff_inner = packed["ffw2"].shape[0]

    weights = [packed["ln_g"], packed["ln_b"],
               packed["wqkv1"], packed["wo1"], packed["bo1"],
               packed["wq2"], packed["wkv2"], packed["wo2"], packed["bo2"],
               packed["ffw1"], packed["ffb1"], packed["ffw2"], packed["ffb2"]]

    def rep(a):
        zeros = (0,) * a.ndim
        return pl.BlockSpec(a.shape, lambda b, z=zeros: z)

    flops = B * (
        2 * Sq * D * 3 * inner                        # attn1 fused QKV proj
        + 4 * heads * Sq * Sq * dim_head              # attn1 scores + p@v
        + 2 * Sq * inner * D                          # attn1 out proj
        + 2 * Sq * D * inner + 2 * Sk * Dc * 2 * inner    # attn2 q / fused kv proj
        + 4 * heads * Sq * Sk * dim_head              # attn2 scores + p@v
        + 2 * Sq * inner * D                          # attn2 out proj
        + 2 * Sq * D * 2 * ff_inner + 2 * Sq * ff_inner * D)   # GEGLU FF
    transcendentals = B * (heads * Sq * (Sq + Sk) + Sq * ff_inner)
    bytes_accessed = (2 * hidden_states.size * hidden_states.dtype.itemsize
                      + context.size * context.dtype.itemsize
                      + sum(int(w.size) * w.dtype.itemsize for w in weights))

    return pl.pallas_call(
        functools.partial(_block_kernel, heads=heads, dim_head=dim_head, eps=eps),
        out_shape=jax.ShapeDtypeStruct((B, Sq, D), hidden_states.dtype),
        grid=(B,),
        in_specs=[pl.BlockSpec((1, Sq, D), lambda b: (b, 0, 0)),
                  pl.BlockSpec((1, Sk, Dc), lambda b: (b, 0, 0))]
                 + [rep(w) for w in weights],
        out_specs=pl.BlockSpec((1, Sq, D), lambda b: (b, 0, 0)),
        compiler_params=pltpu.CompilerParams(
            dimension_semantics=("parallel",),
            vmem_limit_bytes=32 * 1024 * 1024),
        cost_estimate=pl.CostEstimate(flops=flops, transcendentals=transcendentals,
                                      bytes_accessed=bytes_accessed),
    )(hidden_states, context, *weights)


# -------------------------- pure-JAX f32 reference ---------------------------

def _ref_layernorm(x, g, b, eps=1e-12):
    m = x.mean(-1, keepdims=True)
    v = ((x - m) ** 2).mean(-1, keepdims=True)
    return (x - m) / jnp.sqrt(v + eps) * g + b


def _ref_attn(x, ctx, wq, wk, wv, wo, bo, H, dh):
    B, Sq, _ = x.shape
    Sk = ctx.shape[1]
    q = (x @ wq).reshape(B, Sq, H, dh).transpose(0, 2, 1, 3)
    k = (ctx @ wk).reshape(B, Sk, H, dh).transpose(0, 2, 1, 3)
    v = (ctx @ wv).reshape(B, Sk, H, dh).transpose(0, 2, 1, 3)
    s = jnp.einsum("bhqd,bhkd->bhqk", q, k) * dh ** (-0.5)
    p = jax.nn.softmax(s, axis=-1)
    o = jnp.einsum("bhqk,bhkd->bhqd", p, v).transpose(0, 2, 1, 3).reshape(B, Sq, H * dh)
    return o @ wo + bo


def _ref_ff(x, w1, b1, w2, b2):
    h = x @ w1 + b1
    f = w2.shape[0]
    hs, gate = h[..., :f], h[..., f:]
    g = 0.5 * gate * (1.0 + jax.lax.erf(gate / jnp.sqrt(2.0)))
    return (hs * g) @ w2 + b2


def _ref_block(x, ctx, p, H, dh):
    n = _ref_layernorm(x, p["ln1_g"], p["ln1_b"])
    x = _ref_attn(n, n, p["a1_wq"], p["a1_wk"], p["a1_wv"], p["a1_wo"], p["a1_bo"], H, dh) + x
    n = _ref_layernorm(x, p["ln2_g"], p["ln2_b"])
    x = _ref_attn(n, ctx, p["a2_wq"], p["a2_wk"], p["a2_wv"], p["a2_wo"], p["a2_bo"], H, dh) + x
    n = _ref_layernorm(x, p["ln3_g"], p["ln3_b"])
    x = _ref_ff(n, p["ff_w1"], p["ff_b1"], p["ff_w2"], p["ff_b2"]) + x
    return x


# ---------------------------------- main ------------------------------------

if __name__ == "__main__":
    B, Sq, Sk = 2, 8, 16
    dim = 32
    heads = 4
    dim_head = 8
    inner = heads * dim_head          # 32
    ff_inner = dim * 4                # 128

    key = jax.random.PRNGKey(0)
    ks = jax.random.split(key, 16)

    def w(k, shape, scale=0.05):
        return (scale * jax.random.normal(k, shape)).astype(jnp.float32)

    params = {
        # LayerNorms (PyTorch default init: ones / zeros); module uses eps=1e-12
        "ln1_g": jnp.ones((dim,), jnp.float32), "ln1_b": jnp.zeros((dim,), jnp.float32),
        "ln2_g": jnp.ones((dim,), jnp.float32), "ln2_b": jnp.zeros((dim,), jnp.float32),
        "ln3_g": jnp.ones((dim,), jnp.float32), "ln3_b": jnp.zeros((dim,), jnp.float32),
        # attn1 (self-attention): q/k/v no bias, output proj with bias
        "a1_wq": w(ks[0], (dim, inner)), "a1_wk": w(ks[1], (dim, inner)),
        "a1_wv": w(ks[2], (dim, inner)),
        "a1_wo": w(ks[3], (inner, dim)), "a1_bo": w(ks[4], (dim,)),
        # attn2 (cross attention, cross_attention_dim=None -> dim)
        "a2_wq": w(ks[5], (dim, inner)), "a2_wk": w(ks[6], (dim, inner)),
        "a2_wv": w(ks[7], (dim, inner)),
        "a2_wo": w(ks[8], (inner, dim)), "a2_bo": w(ks[9], (dim,)),
        # FeedForward: GEGLU proj (dim -> 2*ff_inner) + output linear (ff_inner -> dim)
        "ff_w1": w(ks[10], (dim, 2 * ff_inner)), "ff_b1": w(ks[11], (2 * ff_inner,)),
        "ff_w2": w(ks[12], (ff_inner, dim)), "ff_b2": w(ks[13], (dim,)),
    }

    hidden_states = jax.random.normal(ks[14], (B, Sq, dim), jnp.float32)
    context = jax.random.normal(ks[15], (B, Sk, dim), jnp.float32)

    packed = pack_params(params, heads=heads, dim_head=dim_head)
    out = basic_transformer_block(hidden_states, context, packed,
                                  heads=heads, dim_head=dim_head)
    out = jax.block_until_ready(out)

    # Reference is pure-f32; the kernel uses bf16 MXU operands with f32 accumulation
    # (softmax / LayerNorm / GELU / residuals all f32), so tolerance is set to the bf16
    # operand-rounding level (~1e-3 observed) with headroom — structural bugs would be
    # orders of magnitude larger.
    ref = _ref_block(hidden_states, context, params, heads, dim_head)
    np.testing.assert_allclose(np.asarray(out), np.asarray(ref), rtol=1e-2, atol=1e-2)

    print("KERNEL_OK")
</pallas_src>

<mosaic_0001>
module attributes {stable_mosaic.version = 11 : i64} {
  func.func @_block_kernel(%arg0: i32, %arg1: memref<1x8x32xf32, #tpu.memory_space<vmem>>, %arg2: memref<1x16x32xf32, #tpu.memory_space<vmem>>, %arg3: memref<3x32xf32, #tpu.memory_space<vmem>>, %arg4: memref<3x32xf32, #tpu.memory_space<vmem>>, %arg5: memref<12x32x8xbf16, #tpu.memory_space<vmem>>, %arg6: memref<4x8x32xbf16, #tpu.memory_space<vmem>>, %arg7: memref<1x32xf32, #tpu.memory_space<vmem>>, %arg8: memref<4x32x8xbf16, #tpu.memory_space<vmem>>, %arg9: memref<8x32x8xbf16, #tpu.memory_space<vmem>>, %arg10: memref<4x8x32xbf16, #tpu.memory_space<vmem>>, %arg11: memref<1x32xf32, #tpu.memory_space<vmem>>, %arg12: memref<32x256xbf16, #tpu.memory_space<vmem>>, %arg13: memref<1x256xf32, #tpu.memory_space<vmem>>, %arg14: memref<128x32xbf16, #tpu.memory_space<vmem>>, %arg15: memref<1x32xf32, #tpu.memory_space<vmem>>, %arg16: memref<1x8x32xf32, #tpu.memory_space<vmem>>) attributes {dimension_semantics = [#tpu.dimension_semantics<parallel>], iteration_bounds = array<i64: 2>, scalar_prefetch = 0 : i64, scratch_operands = 0 : i64, tpu.core_type = #tpu.core_type<tc>, window_params = [{transform_indices = @transform_0, window_bounds = array<i64: 1, 8, 32>}, {transform_indices = @transform_1, window_bounds = array<i64: 1, 16, 32>}, {pipeline_mode = #tpu.pipeline_mode<synchronous>, transform_indices = @transform_2, window_bounds = array<i64: 3, 32>}, {pipeline_mode = #tpu.pipeline_mode<synchronous>, transform_indices = @transform_3, window_bounds = array<i64: 3, 32>}, {pipeline_mode = #tpu.pipeline_mode<synchronous>, transform_indices = @transform_4, window_bounds = array<i64: 12, 32, 8>}, {pipeline_mode = #tpu.pipeline_mode<synchronous>, transform_indices = @transform_5, window_bounds = array<i64: 4, 8, 32>}, {pipeline_mode = #tpu.pipeline_mode<synchronous>, transform_indices = @transform_6, window_bounds = array<i64: 1, 32>}, {pipeline_mode = #tpu.pipeline_mode<synchronous>, transform_indices = @transform_7, window_bounds = array<i64: 4, 32, 8>}, {pipeline_mode = #tpu.pipeline_mode<synchronous>, transform_indices = @transform_8, window_bounds = array<i64: 8, 32, 8>}, {pipeline_mode = #tpu.pipeline_mode<synchronous>, transform_indices = @transform_9, window_bounds = array<i64: 4, 8, 32>}, {pipeline_mode = #tpu.pipeline_mode<synchronous>, transform_indices = @transform_10, window_bounds = array<i64: 1, 32>}, {pipeline_mode = #tpu.pipeline_mode<synchronous>, transform_indices = @transform_11, window_bounds = array<i64: 32, 256>}, {pipeline_mode = #tpu.pipeline_mode<synchronous>, transform_indices = @transform_12, window_bounds = array<i64: 1, 256>}, {pipeline_mode = #tpu.pipeline_mode<synchronous>, transform_indices = @transform_13, window_bounds = array<i64: 128, 32>}, {pipeline_mode = #tpu.pipeline_mode<synchronous>, transform_indices = @transform_14, window_bounds = array<i64: 1, 32>}, {transform_indices = @transform_15, window_bounds = array<i64: 1, 8, 32>}]} {
    %c0 = arith.constant 0 : index
    %c0_0 = arith.constant 0 : index
    %c0_1 = arith.constant 0 : index
    %0 = vector.load %arg1[%c0, %c0_0, %c0_1] : memref<1x8x32xf32, #tpu.memory_space<vmem>>, vector<1x8x32xf32>
    %1 = vector.shape_cast %0 : vector<1x8x32xf32> to vector<8x32xf32>
    %c0_2 = arith.constant 0 : index
    %c0_3 = arith.constant 0 : index
    %c0_4 = arith.constant 0 : index
    %2 = vector.load %arg2[%c0_2, %c0_3, %c0_4] : memref<1x16x32xf32, #tpu.memory_space<vmem>>, vector<1x16x32xf32>
    %3 = vector.shape_cast %2 : vector<1x16x32xf32> to vector<16x32xf32>
    %c0_5 = arith.constant 0 : index
    %c0_6 = arith.constant 0 : index
    %4 = vector.load %arg3[%c0_5, %c0_6] : memref<3x32xf32, #tpu.memory_space<vmem>>, vector<1x32xf32>
    %c0_7 = arith.constant 0 : index
    %c0_8 = arith.constant 0 : index
    %5 = vector.load %arg4[%c0_7, %c0_8] : memref<3x32xf32, #tpu.memory_space<vmem>>, vector<1x32xf32>
    %cst = arith.constant dense<0.000000e+00> : vector<8xf32>
    %6 = vector.multi_reduction <add>, %1, %cst [1] : vector<8x32xf32> to vector<8xf32>
    %7 = vector.shape_cast %6 : vector<8xf32> to vector<8x1xf32>
    %cst_9 = arith.constant 3.200000e+01 : f32
    %8 = vector.broadcast %cst_9 : f32 to vector<8x1xf32>
    %9 = arith.divf %7, %8 : vector<8x1xf32>
    %10 = vector.broadcast %9 : vector<8x1xf32> to vector<8x32xf32>
    %11 = arith.subf %1, %10 : vector<8x32xf32>
    %12 = arith.mulf %11, %11 : vector<8x32xf32>
    %cst_10 = arith.constant dense<0.000000e+00> : vector<8xf32>
    %13 = vector.multi_reduction <add>, %12, %cst_10 [1] : vector<8x32xf32> to vector<8xf32>
    %14 = vector.shape_cast %13 : vector<8xf32> to vector<8x1xf32>
    %cst_11 = arith.constant 3.200000e+01 : f32
    %15 = vector.broadcast %cst_11 : f32 to vector<8x1xf32>
    %16 = arith.divf %14, %15 : vector<8x1xf32>
    %17 = vector.broadcast %9 : vector<8x1xf32> to vector<8x32xf32>
    %18 = arith.subf %1, %17 : vector<8x32xf32>
    %cst_12 = arith.constant 9.99999996E-13 : f32
    %19 = vector.broadcast %cst_12 : f32 to vector<8x1xf32>
    %20 = arith.addf %16, %19 : vector<8x1xf32>
    %21 = math.rsqrt %20 : vector<8x1xf32>
    %22 = vector.broadcast %21 : vector<8x1xf32> to vector<8x32xf32>
    %23 = arith.mulf %18, %22 : vector<8x32xf32>
    %24 = vector.broadcast %4 : vector<1x32xf32> to vector<8x32xf32>
    %25 = arith.mulf %23, %24 : vector<8x32xf32>
    %26 = vector.broadcast %5 : vector<1x32xf32> to vector<8x32xf32>
    %27 = arith.addf %25, %26 : vector<8x32xf32>
    %c0_13 = arith.constant 0 : index
    %c0_14 = arith.constant 0 : index
    %c0_15 = arith.constant 0 : index
    %28 = vector.load %arg5[%c0_13, %c0_14, %c0_15] : memref<12x32x8xbf16, #tpu.memory_space<vmem>>, vector<12x32x8xbf16>
    %29 = arith.truncf %27 : vector<8x32xf32> to vector<8x32xbf16>
    %30 = vector.shape_cast %29 : vector<8x32xbf16> to vector<1x8x32xbf16>
    %31 = vector.broadcast %30 : vector<1x8x32xbf16> to vector<12x8x32xbf16>
    "tpu.trace_start"() <{level = 10 : i32, message = "hsd,hde->hse"}> : () -> ()
    %cst_16 = arith.constant dense<0.000000e+00> : vector<12x8x8xf32>
    %32 = tpu.matmul %31, %28, %cst_16 {dimension_numbers = #tpu.dot_dimension_numbers<[2], [1], [1], [2], [0, 0, 0, 1, 1, 2], [0], [0]>} : vector<12x8x32xbf16>, vector<12x32x8xbf16>, vector<12x8x8xf32> -> vector<12x8x8xf32>
    "tpu.trace_stop"() : () -> ()
    %33 = vector.extract_strided_slice %32 {offsets = [0, 0, 0], sizes = [4, 8, 8], strides = [1, 1, 1]} : vector<12x8x8xf32> to vector<4x8x8xf32>
    %34 = vector.extract_strided_slice %32 {offsets = [4, 0, 0], sizes = [4, 8, 8], strides = [1, 1, 1]} : vector<12x8x8xf32> to vector<4x8x8xf32>
    %35 = vector.extract_strided_slice %32 {offsets = [8, 0, 0], sizes = [4, 8, 8], strides = [1, 1, 1]} : vector<12x8x8xf32> to vector<4x8x8xf32>
    %c0_17 = arith.constant 0 : index
    %c0_18 = arith.constant 0 : index
    %c0_19 = arith.constant 0 : index
    %36 = vector.load %arg6[%c0_17, %c0_18, %c0_19] : memref<4x8x32xbf16, #tpu.memory_space<vmem>>, vector<4x8x32xbf16>
    %c0_20 = arith.constant 0 : index
    %c0_21 = arith.constant 0 : index
    %37 = vector.load %arg7[%c0_20, %c0_21] : memref<1x32xf32, #tpu.memory_space<vmem>>, vector<1x32xf32>
    %38 = arith.truncf %33 : vector<4x8x8xf32> to vector<4x8x8xbf16>
    %39 = arith.truncf %34 : vector<4x8x8xf32> to vector<4x8x8xbf16>
    "tpu.trace_start"() <{level = 10 : i32, message = "hqd,hkd->hqk"}> : () -> ()
    %cst_22 = arith.constant dense<0.000000e+00> : vector<4x8x8xf32>
    %40 = tpu.matmul %38, %39, %cst_22 {dimension_numbers = #tpu.dot_dimension_numbers<[2], [2], [1], [1], [0, 0, 0, 1, 1, 1], [0], [0]>} : vector<4x8x8xbf16>, vector<4x8x8xbf16>, vector<4x8x8xf32> -> vector<4x8x8xf32>
    "tpu.trace_stop"() : () -> ()
    %cst_23 = arith.constant dense<0xFF800000> : vector<4x8xf32>
    %41 = vector.multi_reduction <maximumf>, %40, %cst_23 [2] : vector<4x8x8xf32> to vector<4x8xf32>
    %42 = vector.shape_cast %41 : vector<4x8xf32> to vector<4x8x1xf32>
    %43 = vector.broadcast %42 : vector<4x8x1xf32> to vector<4x8x8xf32>
    %44 = arith.subf %40, %43 : vector<4x8x8xf32>
    %45 = math.exp %44 : vector<4x8x8xf32>
    %cst_24 = arith.constant dense<0.000000e+00> : vector<4x8xf32>
    %46 = vector.multi_reduction <add>, %45, %cst_24 [2] : vector<4x8x8xf32> to vector<4x8xf32>
    %47 = vector.shape_cast %46 : vector<4x8xf32> to vector<4x8x1xf32>
    %48 = tpu.reciprocal %47 {approx = true} : vector<4x8x1xf32> -> vector<4x8x1xf32>
    %49 = arith.mulf %47, %48 : vector<4x8x1xf32>
    %cst_25 = arith.constant 2.000000e+00 : f32
    %50 = vector.broadcast %cst_25 : f32 to vector<4x8x1xf32>
    %51 = arith.subf %50, %49 : vector<4x8x1xf32>
    %52 = arith.mulf %48, %51 : vector<4x8x1xf32>
    %53 = vector.broadcast %52 : vector<4x8x1xf32> to vector<4x8x8xf32>
    %54 = arith.mulf %45, %53 : vector<4x8x8xf32>
    %55 = arith.truncf %54 : vector<4x8x8xf32> to vector<4x8x8xbf16>
    %56 = arith.truncf %35 : vector<4x8x8xf32> to vector<4x8x8xbf16>
    "tpu.trace_start"() <{level = 10 : i32, message = "hqk,hkd->hqd"}> : () -> ()
    %cst_26 = arith.constant dense<0.000000e+00> : vector<4x8x8xf32>
    %57 = tpu.matmul %55, %56, %cst_26 {dimension_numbers = #tpu.dot_dimension_numbers<[2], [1], [1], [2], [0, 0, 0, 1, 1, 2], [0], [0]>} : vector<4x8x8xbf16>, vector<4x8x8xbf16>, vector<4x8x8xf32> -> vector<4x8x8xf32>
    "tpu.trace_stop"() : () -> ()
    %58 = arith.truncf %57 : vector<4x8x8xf32> to vector<4x8x8xbf16>
    "tpu.trace_start"() <{level = 10 : i32, message = "hqd,hde->hqe"}> : () -> ()
    %cst_27 = arith.constant dense<0.000000e+00> : vector<4x8x32xf32>
    %59 = tpu.matmul %58, %36, %cst_27 {dimension_numbers = #tpu.dot_dimension_numbers<[2], [1], [1], [2], [0, 0, 0, 1, 1, 2], [0], [0]>} : vector<4x8x8xbf16>, vector<4x8x32xbf16>, vector<4x8x32xf32> -> vector<4x8x32xf32>
    "tpu.trace_stop"() : () -> ()
    %cst_28 = arith.constant dense<0.000000e+00> : vector<8x32xf32>
    %60 = vector.multi_reduction <add>, %59, %cst_28 [0] : vector<4x8x32xf32> to vector<8x32xf32>
    %61 = vector.broadcast %37 : vector<1x32xf32> to vector<8x32xf32>
    %62 = arith.addf %60, %61 : vector<8x32xf32>
    %63 = arith.addf %62, %1 : vector<8x32xf32>
    %c1 = arith.constant 1 : index
    %c0_29 = arith.constant 0 : index
    %64 = vector.load %arg3[%c1, %c0_29] : memref<3x32xf32, #tpu.memory_space<vmem>>, vector<1x32xf32>
    %c1_30 = arith.constant 1 : index
    %c0_31 = arith.constant 0 : index
    %65 = vector.load %arg4[%c1_30, %c0_31] : memref<3x32xf32, #tpu.memory_space<vmem>>, vector<1x32xf32>
    %cst_32 = arith.constant dense<0.000000e+00> : vector<8xf32>
    %66 = vector.multi_reduction <add>, %63, %cst_32 [1] : vector<8x32xf32> to vector<8xf32>
    %67 = vector.shape_cast %66 : vector<8xf32> to vector<8x1xf32>
    %cst_33 = arith.constant 3.200000e+01 : f32
    %68 = vector.broadcast %cst_33 : f32 to vector<8x1xf32>
    %69 = arith.divf %67, %68 : vector<8x1xf32>
    %70 = vector.broadcast %69 : vector<8x1xf32> to vector<8x32xf32>
    %71 = arith.subf %63, %70 : vector<8x32xf32>
    %72 = arith.mulf %71, %71 : vector<8x32xf32>
    %cst_34 = arith.constant dense<0.000000e+00> : vector<8xf32>
    %73 = vector.multi_reduction <add>, %72, %cst_34 [1] : vector<8x32xf32> to vector<8xf32>
    %74 = vector.shape_cast %73 : vector<8xf32> to vector<8x1xf32>
    %cst_35 = arith.constant 3.200000e+01 : f32
    %75 = vector.broadcast %cst_35 : f32 to vector<8x1xf32>
    %76 = arith.divf %74, %75 : vector<8x1xf32>
    %77 = vector.broadcast %69 : vector<8x1xf32> to vector<8x32xf32>
    %78 = arith.subf %63, %77 : vector<8x32xf32>
    %cst_36 = arith.constant 9.99999996E-13 : f32
    %79 = vector.broadcast %cst_36 : f32 to vector<8x1xf32>
    %80 = arith.addf %76, %79 : vector<8x1xf32>
    %81 = math.rsqrt %80 : vector<8x1xf32>
    %82 = vector.broadcast %81 : vector<8x1xf32> to vector<8x32xf32>
    %83 = arith.mulf %78, %82 : vector<8x32xf32>
    %84 = vector.broadcast %64 : vector<1x32xf32> to vector<8x32xf32>
    %85 = arith.mulf %83, %84 : vector<8x32xf32>
    %86 = vector.broadcast %65 : vector<1x32xf32> to vector<8x32xf32>
    %87 = arith.addf %85, %86 : vector<8x32xf32>
    %c0_37 = arith.constant 0 : index
    %c0_38 = arith.constant 0 : index
    %c0_39 = arith.constant 0 : index
    %88 = vector.load %arg8[%c0_37, %c0_38, %c0_39] : memref<4x32x8xbf16, #tpu.memory_space<vmem>>, vector<4x32x8xbf16>
    %89 = arith.truncf %87 : vector<8x32xf32> to vector<8x32xbf16>
    %90 = vector.shape_cast %89 : vector<8x32xbf16> to vector<1x8x32xbf16>
    %91 = vector.broadcast %90 : vector<1x8x32xbf16> to vector<4x8x32xbf16>
    "tpu.trace_start"() <{level = 10 : i32, message = "hsd,hde->hse"}> : () -> ()
    %cst_40 = arith.constant dense<0.000000e+00> : vector<4x8x8xf32>
    %92 = tpu.matmul %91, %88, %cst_40 {dimension_numbers = #tpu.dot_dimension_numbers<[2], [1], [1], [2], [0, 0, 0, 1, 1, 2], [0], [0]>} : vector<4x8x32xbf16>, vector<4x32x8xbf16>, vector<4x8x8xf32> -> vector<4x8x8xf32>
    "tpu.trace_stop"() : () -> ()
    %c0_41 = arith.constant 0 : index
    %c0_42 = arith.constant 0 : index
    %c0_43 = arith.constant 0 : index
    %93 = vector.load %arg9[%c0_41, %c0_42, %c0_43] : memref<8x32x8xbf16, #tpu.memory_space<vmem>>, vector<8x32x8xbf16>
    %94 = arith.truncf %3 : vector<16x32xf32> to vector<16x32xbf16>
    %95 = vector.shape_cast %94 : vector<16x32xbf16> to vector<1x16x32xbf16>
    %96 = vector.broadcast %95 : vector<1x16x32xbf16> to vector<8x16x32xbf16>
    "tpu.trace_start"() <{level = 10 : i32, message = "hsd,hde->hse"}> : () -> ()
    %cst_44 = arith.constant dense<0.000000e+00> : vector<8x16x8xf32>
    %97 = tpu.matmul %96, %93, %cst_44 {dimension_numbers = #tpu.dot_dimension_numbers<[2], [1], [1], [2], [0, 0, 0, 1, 1, 2], [0], [0]>} : vector<8x16x32xbf16>, vector<8x32x8xbf16>, vector<8x16x8xf32> -> vector<8x16x8xf32>
    "tpu.trace_stop"() : () -> ()
    %98 = vector.extract_strided_slice %97 {offsets = [0, 0, 0], sizes = [4, 16, 8], strides = [1, 1, 1]} : vector<8x16x8xf32> to vector<4x16x8xf32>
    %99 = vector.extract_strided_slice %97 {offsets = [4, 0, 0], sizes = [4, 16, 8], strides = [1, 1, 1]} : vector<8x16x8xf32> to vector<4x16x8xf32>
    %c0_45 = arith.constant 0 : index
    %c0_46 = arith.constant 0 : index
    %c0_47 = arith.constant 0 : index
    %100 = vector.load %arg10[%c0_45, %c0_46, %c0_47] : memref<4x8x32xbf16, #tpu.memory_space<vmem>>, vector<4x8x32xbf16>
    %c0_48 = arith.constant 0 : index
    %c0_49 = arith.constant 0 : index
    %101 = vector.load %arg11[%c0_48, %c0_49] : memref<1x32xf32, #tpu.memory_space<vmem>>, vector<1x32xf32>
    %102 = arith.truncf %92 : vector<4x8x8xf32> to vector<4x8x8xbf16>
    %103 = arith.truncf %98 : vector<4x16x8xf32> to vector<4x16x8xbf16>
    "tpu.trace_start"() <{level = 10 : i32, message = "hqd,hkd->hqk"}> : () -> ()
    %cst_50 = arith.constant dense<0.000000e+00> : vector<4x8x16xf32>
    %104 = tpu.matmul %102, %103, %cst_50 {dimension_numbers = #tpu.dot_dimension_numbers<[2], [2], [1], [1], [0, 0, 0, 1, 1, 1], [0], [0]>} : vector<4x8x8xbf16>, vector<4x16x8xbf16>, vector<4x8x16xf32> -> vector<4x8x16xf32>
    "tpu.trace_stop"() : () -> ()
    %cst_51 = arith.constant dense<0xFF800000> : vector<4x8xf32>
    %105 = vector.multi_reduction <maximumf>, %104, %cst_51 [2] : vector<4x8x16xf32> to vector<4x8xf32>
    %106 = vector.shape_cast %105 : vector<4x8xf32> to vector<4x8x1xf32>
    %107 = vector.broadcast %106 : vector<4x8x1xf32> to vector<4x8x16xf32>
    %108 = arith.subf %104, %107 : vector<4x8x16xf32>
    %109 = math.exp %108 : vector<4x8x16xf32>
    %cst_52 = arith.constant dense<0.000000e+00> : vector<4x8xf32>
    %110 = vector.multi_reduction <add>, %109, %cst_52 [2] : vector<4x8x16xf32> to vector<4x8xf32>
    %111 = vector.shape_cast %110 : vector<4x8xf32> to vector<4x8x1xf32>
    %112 = tpu.reciprocal %111 {approx = true} : vector<4x8x1xf32> -> vector<4x8x1xf32>
    %113 = arith.mulf %111, %112 : vector<4x8x1xf32>
    %cst_53 = arith.constant 2.000000e+00 : f32
    %114 = vector.broadcast %cst_53 : f32 to vector<4x8x1xf32>
    %115 = arith.subf %114, %113 : vector<4x8x1xf32>
    %116 = arith.mulf %112, %115 : vector<4x8x1xf32>
    %117 = vector.broadcast %116 : vector<4x8x1xf32> to vector<4x8x16xf32>
    %118 = arith.mulf %109, %117 : vector<4x8x16xf32>
    %119 = arith.truncf %118 : vector<4x8x16xf32> to vector<4x8x16xbf16>
    %120 = arith.truncf %99 : vector<4x16x8xf32> to vector<4x16x8xbf16>
    "tpu.trace_start"() <{level = 10 : i32, message = "hqk,hkd->hqd"}> : () -> ()
    %cst_54 = arith.constant dense<0.000000e+00> : vector<4x8x8xf32>
    %121 = tpu.matmul %119, %120, %cst_54 {dimension_numbers = #tpu.dot_dimension_numbers<[2], [1], [1], [2], [0, 0, 0, 1, 1, 2], [0], [0]>} : vector<4x8x16xbf16>, vector<4x16x8xbf16>, vector<4x8x8xf32> -> vector<4x8x8xf32>
    "tpu.trace_stop"() : () -> ()
    %122 = arith.truncf %121 : vector<4x8x8xf32> to vector<4x8x8xbf16>
    "tpu.trace_start"() <{level = 10 : i32, message = "hqd,hde->hqe"}> : () -> ()
    %cst_55 = arith.constant dense<0.000000e+00> : vector<4x8x32xf32>
    %123 = tpu.matmul %122, %100, %cst_55 {dimension_numbers = #tpu.dot_dimension_numbers<[2], [1], [1], [2], [0, 0, 0, 1, 1, 2], [0], [0]>} : vector<4x8x8xbf16>, vector<4x8x32xbf16>, vector<4x8x32xf32> -> vector<4x8x32xf32>
    "tpu.trace_stop"() : () -> ()
    %cst_56 = arith.constant dense<0.000000e+00> : vector<8x32xf32>
    %124 = vector.multi_reduction <add>, %123, %cst_56 [0] : vector<4x8x32xf32> to vector<8x32xf32>
    %125 = vector.broadcast %101 : vector<1x32xf32> to vector<8x32xf32>
    %126 = arith.addf %124, %125 : vector<8x32xf32>
    %127 = arith.addf %126, %63 : vector<8x32xf32>
    %c2 = arith.constant 2 : index
    %c0_57 = arith.constant 0 : index
    %128 = vector.load %arg3[%c2, %c0_57] : memref<3x32xf32, #tpu.memory_space<vmem>>, vector<1x32xf32>
    %c2_58 = arith.constant 2 : index
    %c0_59 = arith.constant 0 : index
    %129 = vector.load %arg4[%c2_58, %c0_59] : memref<3x32xf32, #tpu.memory_space<vmem>>, vector<1x32xf32>
    %cst_60 = arith.constant dense<0.000000e+00> : vector<8xf32>
    %130 = vector.multi_reduction <add>, %127, %cst_60 [1] : vector<8x32xf32> to vector<8xf32>
    %131 = vector.shape_cast %130 : vector<8xf32> to vector<8x1xf32>
    %cst_61 = arith.constant 3.200000e+01 : f32
    %132 = vector.broadcast %cst_61 : f32 to vector<8x1xf32>
    %133 = arith.divf %131, %132 : vector<8x1xf32>
    %134 = vector.broadcast %133 : vector<8x1xf32> to vector<8x32xf32>
    %135 = arith.subf %127, %134 : vector<8x32xf32>
    %136 = arith.mulf %135, %135 : vector<8x32xf32>
    %cst_62 = arith.constant dense<0.000000e+00> : vector<8xf32>
    %137 = vector.multi_reduction <add>, %136, %cst_62 [1] : vector<8x32xf32> to vector<8xf32>
    %138 = vector.shape_cast %137 : vector<8xf32> to vector<8x1xf32>
    %cst_63 = arith.constant 3.200000e+01 : f32
    %139 = vector.broadcast %cst_63 : f32 to vector<8x1xf32>
    %140 = arith.divf %138, %139 : vector<8x1xf32>
    %141 = vector.broadcast %133 : vector<8x1xf32> to vector<8x32xf32>
    %142 = arith.subf %127, %141 : vector<8x32xf32>
    %cst_64 = arith.constant 9.99999996E-13 : f32
    %143 = vector.broadcast %cst_64 : f32 to vector<8x1xf32>
    %144 = arith.addf %140, %143 : vector<8x1xf32>
    %145 = math.rsqrt %144 : vector<8x1xf32>
    %146 = vector.broadcast %145 : vector<8x1xf32> to vector<8x32xf32>
    %147 = arith.mulf %142, %146 : vector<8x32xf32>
    %148 = vector.broadcast %128 : vector<1x32xf32> to vector<8x32xf32>
    %149 = arith.mulf %147, %148 : vector<8x32xf32>
    %150 = vector.broadcast %129 : vector<1x32xf32> to vector<8x32xf32>
    %151 = arith.addf %149, %150 : vector<8x32xf32>
    %152 = arith.truncf %151 : vector<8x32xf32> to vector<8x32xbf16>
    %c0_65 = arith.constant 0 : index
    %c0_66 = arith.constant 0 : index
    %153 = vector.load %arg12[%c0_65, %c0_66] : memref<32x256xbf16, #tpu.memory_space<vmem>>, vector<32x256xbf16>
    %cst_67 = arith.constant dense<0.000000e+00> : vector<8x256xf32>
    %154 = tpu.matmul %152, %153, %cst_67 {dimension_numbers = #tpu.dot_dimension_numbers<[1], [0], [0], [1], [0, 0, 1, 1], [], []>} : vector<8x32xbf16>, vector<32x256xbf16>, vector<8x256xf32> -> vector<8x256xf32>
    %c0_68 = arith.constant 0 : index
    %c0_69 = arith.constant 0 : index
    %155 = vector.load %arg13[%c0_68, %c0_69] : memref<1x256xf32, #tpu.memory_space<vmem>>, vector<1x256xf32>
    %156 = vector.broadcast %155 : vector<1x256xf32> to vector<8x256xf32>
    %157 = arith.addf %154, %156 : vector<8x256xf32>
    %158 = vector.extract_strided_slice %157 {offsets = [0, 0], sizes = [8, 128], strides = [1, 1]} : vector<8x256xf32> to vector<8x128xf32>
    %159 = vector.extract_strided_slice %157 {offsets = [0, 128], sizes = [8, 128], strides = [1, 1]} : vector<8x256xf32> to vector<8x128xf32>
    %cst_70 = arith.constant 5.000000e-01 : f32
    %160 = vector.broadcast %cst_70 : f32 to vector<8x128xf32>
    %161 = arith.mulf %160, %159 : vector<8x128xf32>
    %cst_71 = arith.constant 0.707106769 : f32
    %162 = vector.broadcast %cst_71 : f32 to vector<8x128xf32>
    %163 = arith.mulf %159, %162 : vector<8x128xf32>
    %164 = math.erf %163 : vector<8x128xf32>
    %cst_72 = arith.constant 1.000000e+00 : f32
    %165 = vector.broadcast %cst_72 : f32 to vector<8x128xf32>
    %166 = arith.addf %165, %164 : vector<8x128xf32>
    %167 = arith.mulf %161, %166 : vector<8x128xf32>
    %168 = arith.mulf %158, %167 : vector<8x128xf32>
    %169 = arith.truncf %168 : vector<8x128xf32> to vector<8x128xbf16>
    %c0_73 = arith.constant 0 : index
    %c0_74 = arith.constant 0 : index
    %170 = vector.load %arg14[%c0_73, %c0_74] : memref<128x32xbf16, #tpu.memory_space<vmem>>, vector<128x32xbf16>
    %cst_75 = arith.constant dense<0.000000e+00> : vector<8x32xf32>
    %171 = tpu.matmul %169, %170, %cst_75 {dimension_numbers = #tpu.dot_dimension_numbers<[1], [0], [0], [1], [0, 0, 1, 1], [], []>} : vector<8x128xbf16>, vector<128x32xbf16>, vector<8x32xf32> -> vector<8x32xf32>
    %c0_76 = arith.constant 0 : index
    %c0_77 = arith.constant 0 : index
    %172 = vector.load %arg15[%c0_76, %c0_77] : memref<1x32xf32, #tpu.memory_space<vmem>>, vector<1x32xf32>
    %173 = vector.broadcast %172 : vector<1x32xf32> to vector<8x32xf32>
    %174 = arith.addf %171, %173 : vector<8x32xf32>
    %175 = arith.addf %174, %127 : vector<8x32xf32>
    %c0_78 = arith.constant 0 : index
    %c0_79 = arith.constant 0 : index
    %c0_80 = arith.constant 0 : index
    %176 = vector.load %arg16[%c0_78, %c0_79, %c0_80] : memref<1x8x32xf32, #tpu.memory_space<vmem>>, vector<1x8x32xf32>
    %177 = vector.shape_cast %176 : vector<1x8x32xf32> to vector<8x32xf32>
    %178 = vector.shape_cast %175 : vector<8x32xf32> to vector<1x8x32xf32>
    tpu.vector_store %arg16[%c0_78, %c0_79, %c0_80], %178 {strides = array<i32>} : memref<1x8x32xf32, #tpu.memory_space<vmem>>, vector<1x8x32xf32>,
    return
  }
  func.func @transform_0(%arg0: i32) -> (i32, i32, i32) {
    %c0_i32 = arith.constant 0 : i32
    %c0_i32_0 = arith.constant 0 : i32
    %c0_i32_1 = arith.constant 0 : i32
    return %arg0, %c0_i32, %c0_i32_0 : i32, i32, i32
  }
  func.func @transform_1(%arg0: i32) -> (i32, i32, i32) {
    %c0_i32 = arith.constant 0 : i32
    %c0_i32_0 = arith.constant 0 : i32
    %c0_i32_1 = arith.constant 0 : i32
    return %arg0, %c0_i32, %c0_i32_0 : i32, i32, i32
  }
  func.func @transform_2(%arg0: i32) -> (i32, i32) {
    %c0_i32 = arith.constant 0 : i32
    %c0_i32_0 = arith.constant 0 : i32
    %c0_i32_1 = arith.constant 0 : i32
    return %c0_i32, %c0_i32_0 : i32, i32
  }
  func.func @transform_3(%arg0: i32) -> (i32, i32) {
    %c0_i32 = arith.constant 0 : i32
    %c0_i32_0 = arith.constant 0 : i32
    %c0_i32_1 = arith.constant 0 : i32
    return %c0_i32, %c0_i32_0 : i32, i32
  }
  func.func @transform_4(%arg0: i32) -> (i32, i32, i32) {
    %c0_i32 = arith.constant 0 : i32
    %c0_i32_0 = arith.constant 0 : i32
    %c0_i32_1 = arith.constant 0 : i32
    %c0_i32_2 = arith.constant 0 : i32
    return %c0_i32, %c0_i32_0, %c0_i32_1 : i32, i32, i32
  }
  func.func @transform_5(%arg0: i32) -> (i32, i32, i32) {
    %c0_i32 = arith.constant 0 : i32
    %c0_i32_0 = arith.constant 0 : i32
    %c0_i32_1 = arith.constant 0 : i32
    %c0_i32_2 = arith.constant 0 : i32
    return %c0_i32, %c0_i32_0, %c0_i32_1 : i32, i32, i32
  }
  func.func @transform_6(%arg0: i32) -> (i32, i32) {
    %c0_i32 = arith.constant 0 : i32
    %c0_i32_0 = arith.constant 0 : i32
    %c0_i32_1 = arith.constant 0 : i32
    return %c0_i32, %c0_i32_0 : i32, i32
  }
  func.func @transform_7(%arg0: i32) -> (i32, i32, i32) {
    %c0_i32 = arith.constant 0 : i32
    %c0_i32_0 = arith.constant 0 : i32
    %c0_i32_1 = arith.constant 0 : i32
    %c0_i32_2 = arith.constant 0 : i32
    return %c0_i32, %c0_i32_0, %c0_i32_1 : i32, i32, i32
  }
  func.func @transform_8(%arg0: i32) -> (i32, i32, i32) {
    %c0_i32 = arith.constant 0 : i32
    %c0_i32_0 = arith.constant 0 : i32
    %c0_i32_1 = arith.constant 0 : i32
    %c0_i32_2 = arith.constant 0 : i32
    return %c0_i32, %c0_i32_0, %c0_i32_1 : i32, i32, i32
  }
  func.func @transform_9(%arg0: i32) -> (i32, i32, i32) {
    %c0_i32 = arith.constant 0 : i32
    %c0_i32_0 = arith.constant 0 : i32
    %c0_i32_1 = arith.constant 0 : i32
    %c0_i32_2 = arith.constant 0 : i32
    return %c0_i32, %c0_i32_0, %c0_i32_1 : i32, i32, i32
  }
  func.func @transform_10(%arg0: i32) -> (i32, i32) {
    %c0_i32 = arith.constant 0 : i32
    %c0_i32_0 = arith.constant 0 : i32
    %c0_i32_1 = arith.constant 0 : i32
    return %c0_i32, %c0_i32_0 : i32, i32
  }
  func.func @transform_11(%arg0: i32) -> (i32, i32) {
    %c0_i32 = arith.constant 0 : i32
    %c0_i32_0 = arith.constant 0 : i32
    %c0_i32_1 = arith.constant 0 : i32
    return %c0_i32, %c0_i32_0 : i32, i32
  }
  func.func @transform_12(%arg0: i32) -> (i32, i32) {
    %c0_i32 = arith.constant 0 : i32
    %c0_i32_0 = arith.constant 0 : i32
    %c0_i32_1 = arith.constant 0 : i32
    return %c0_i32, %c0_i32_0 : i32, i32
  }
  func.func @transform_13(%arg0: i32) -> (i32, i32) {
    %c0_i32 = arith.constant 0 : i32
    %c0_i32_0 = arith.constant 0 : i32
    %c0_i32_1 = arith.constant 0 : i32
    return %c0_i32, %c0_i32_0 : i32, i32
  }
  func.func @transform_14(%arg0: i32) -> (i32, i32) {
    %c0_i32 = arith.constant 0 : i32
    %c0_i32_0 = arith.constant 0 : i32
    %c0_i32_1 = arith.constant 0 : i32
    return %c0_i32, %c0_i32_0 : i32, i32
  }
  func.func @transform_15(%arg0: i32) -> (i32, i32, i32) {
    %c0_i32 = arith.constant 0 : i32
    %c0_i32_0 = arith.constant 0 : i32
    %c0_i32_1 = arith.constant 0 : i32
    return %arg0, %c0_i32, %c0_i32_0 : i32, i32, i32
  }
}

</mosaic_0001>

<llo_original>
// kernel: basic_transformer_block.1
$region0: #{basic_transformer_block.1}
  #allocation0 [shape = 'u32[]', space=smem, size = 0x4, offset = 0x4, fixed_abs, tag = 'smem constant byte address 0x4 - core index']
  #allocation1 [shape = 'u32[144,128]{1,0:T(1,128)}', space=vmem, size = 0x12000, scoped, tag = 'internal scratch']
  %s0 = inlined_call_operand.vmem [shape: f32[2,8,32], index: 0, kind: input, shape index: {}]
  %s1 = inlined_call_operand.vmem [shape: f32[2,16,32], index: 1, kind: input, shape index: {}]
  %s2 = inlined_call_operand.vmem [shape: f32[3,32], index: 2, kind: input, shape index: {}]
  %s3 = inlined_call_operand.vmem [shape: f32[3,32], index: 3, kind: input, shape index: {}]
  %s4 = inlined_call_operand.vmem [shape: bf16[12,32,8], index: 4, kind: input, shape index: {}]
  %s5 = inlined_call_operand.vmem [shape: bf16[4,8,32], index: 5, kind: input, shape index: {}]
  %s6 = inlined_call_operand.vmem [shape: f32[1,32], index: 6, kind: input, shape index: {}]
  %s7 = inlined_call_operand.vmem [shape: bf16[4,32,8], index: 7, kind: input, shape index: {}]
  %s8 = inlined_call_operand.vmem [shape: bf16[8,32,8], index: 8, kind: input, shape index: {}]
  %s9 = inlined_call_operand.vmem [shape: bf16[4,8,32], index: 9, kind: input, shape index: {}]
  %s10 = inlined_call_operand.vmem [shape: f32[1,32], index: 10, kind: input, shape index: {}]
  %s11 = inlined_call_operand.vmem [shape: bf16[32,256], index: 11, kind: input, shape index: {}]
  %s12 = inlined_call_operand.vmem [shape: f32[1,256], index: 12, kind: input, shape index: {}]
  %s13 = inlined_call_operand.vmem [shape: bf16[128,32], index: 13, kind: input, shape index: {}]
  %s14 = inlined_call_operand.vmem [shape: f32[1,32], index: 14, kind: input, shape index: {}]
  %s15 = inlined_call_operand.hbm [shape: f32[2,8,32], index: 15, kind: output, shape index: {}]
  %s16 = sld [smem:[#allocation0]]
  $region93: #{basic_transformer_block.1} parent=0
    _
  %s18 = ssub.s32 1, %s16
  %s19 = scalar_select 0, %s18, %s16
  $region1: #{basic_transformer_block.1} parent=0
    #allocation2 [shape = 'u8[8192]{0}', space=vmem, size = 0x2000, scoped, tag = 'output window, operand 0']
    #allocation3 [shape = 's32[2]{0}', space=sflag, size = 0x8, scoped, tag = 'scoped memory for basic_transformer_block.1']
    %20 = vsyncpa [#allocation3], 0
    %s21 = scalar_lea.sflag [#allocation3], 1
    %22 = vsyncpa %s21, 0
    loop: start=0, step=1, limit=4
    $region2: #{basic_transformer_block.1} parent=1 // loop_pre_header
      _
    $region3: #{basic_transformer_block.1} parent=1 // loop_header
      %s24 = sphi 0, %s28
      %p25 = scmp.ge.s32.totalorder %s24, 4
      %s34 = sphi 0, %s36
      %s37 = sphi 0, %s34
      %s38 = sphi 0, %s37
      %s54 = sphi 0, %s38
      %s60 = sphi 0, %s62
      %s63 = sphi 0, %s60
      %s64 = sphi 0, %s63
      %s80 = sphi 0, %s64
      %s84 = sphi 0, %s84
      %s86 = sphi 0, %s84
      %s87 = sphi 0, %s86
      %s101 = sphi 0, %s87
      %s105 = sphi 0, %s105
      %s107 = sphi 0, %s105
      %s108 = sphi 0, %s107
      %s122 = sphi 0, %s108
      %s126 = sphi 0, %s126
      %s128 = sphi 0, %s126
      %s129 = sphi 0, %s128
      %s143 = sphi 0, %s129
      %s147 = sphi 0, %s147
      %s149 = sphi 0, %s147
      %s150 = sphi 0, %s149
      %s164 = sphi 0, %s150
      %s168 = sphi 0, %s168
      %s170 = sphi 0, %s168
      %s171 = sphi 0, %s170
      %s185 = sphi 0, %s171
      %s189 = sphi 0, %s189
      %s191 = sphi 0, %s189
      %s192 = sphi 0, %s191
      %s206 = sphi 0, %s192
      %s210 = sphi 0, %s210
      %s212 = sphi 0, %s210
      %s213 = sphi 0, %s212
      %s227 = sphi 0, %s213
      %s231 = sphi 0, %s231
      %s233 = sphi 0, %s231
      %s234 = sphi 0, %s233
      %s248 = sphi 0, %s234
      %s252 = sphi 0, %s252
      %s254 = sphi 0, %s252
      %s255 = sphi 0, %s254
      %s269 = sphi 0, %s255
      %s273 = sphi 0, %s273
      %s275 = sphi 0, %s273
      %s276 = sphi 0, %s275
      %s290 = sphi 0, %s276
      %s294 = sphi 0, %s294
      %s296 = sphi 0, %s294
      %s297 = sphi 0, %s296
      %s311 = sphi 0, %s297
      %s315 = sphi 0, %s315
      %s317 = sphi 0, %s315
      %s318 = sphi 0, %s317
      %s332 = sphi 0, %s318
      %s336 = sphi 0, %s336
      %s338 = sphi 0, %s336
      %s339 = sphi 0, %s338
      %s353 = sphi 0, %s339
      %s359 = sphi 0, %s361
      %s362 = sphi 0, %s359
      %s363 = sphi 0, %s362
      %s379 = sphi 0, %s363
    $region4: #{basic_transformer_block.1} parent=1 // loop_header_branch
      %27 = sbr.rel (%p25) target = $region8
    $region5: #{basic_transformer_block.1} parent=1 // loop_body
      %s29 = ssub.s32 %s24, 1
      %s30 = ssub.s32 %s24, 2
      %s31 = sadd.s32 %s24, 1
      %s32 = ssub.s32 %s24, %s31
      %p33 = scmp.eq.s32.totalorder %s32, 0
      %s35 = sadd.s32 %s34, 1
      %s36 = scalar_select %p33, %s34, %s35
      %p39 = pneg %p33
      %p40 = scmp.eq.s32.totalorder %s24, 1
      %p41 = por %p39, %p40
      %p42 = scmp.ne.s32.totalorder %s34, %s37
      %p43 = scmp.eq.s32.totalorder %s24, 0
      %p44 = por %p42, %p43
      %p45 = scmp.ne.s32.totalorder %s34, %s37
      %p46 = scmp.eq.s32.totalorder %s29, 1
      %p47 = por %p45, %p46
      %p48 = scmp.ne.s32.totalorder %s37, %s38
      %p49 = scmp.eq.s32.totalorder %s29, 0
      %p50 = por %p48, %p49
      %p51 = scmp.ne.s32.totalorder %s37, %s38
      %p52 = scmp.eq.s32.totalorder %s30, 1
      %p53 = por %p51, %p52
      %p55 = scmp.ne.s32.totalorder %s38, %s54
      %p56 = scmp.eq.s32.totalorder %s30, 0
      %p57 = por %p55, %p56
      %s58 = ssub.s32 %s24, %s31
      %p59 = scmp.eq.s32.totalorder %s58, 0
      %s61 = sadd.s32 %s60, 1
      %s62 = scalar_select %p59, %s60, %s61
      %p65 = pneg %p59
      %p66 = scmp.eq.s32.totalorder %s24, 1
      %p67 = por %p65, %p66
      %p68 = scmp.ne.s32.totalorder %s60, %s63
      %p69 = scmp.eq.s32.totalorder %s24, 0
      %p70 = por %p68, %p69
      %p71 = scmp.ne.s32.totalorder %s60, %s63
      %p72 = scmp.eq.s32.totalorder %s29, 1
      %p73 = por %p71, %p72
      %p74 = scmp.ne.s32.totalorder %s63, %s64
      %p75 = scmp.eq.s32.totalorder %s29, 0
      %p76 = por %p74, %p75
      %p77 = scmp.ne.s32.totalorder %s63, %s64
      %p78 = scmp.eq.s32.totalorder %s30, 1
      %p79 = por %p77, %p78
      %p81 = scmp.ne.s32.totalorder %s64, %s80
      %p82 = scmp.eq.s32.totalorder %s30, 0
      %p83 = por %p81, %p82
      %s85 = sadd.s32 %s84, 1
      %p88 = scmp.eq.s32.totalorder %s24, 1
      %p89 = scmp.ne.s32.totalorder %s84, %s86
      %p90 = scmp.eq.s32.totalorder %s24, 0
      %p91 = por %p89, %p90
      %p92 = scmp.ne.s32.totalorder %s84, %s86
      %p93 = scmp.eq.s32.totalorder %s29, 1
      %p94 = por %p92, %p93
      %p95 = scmp.ne.s32.totalorder %s86, %s87
      %p96 = scmp.eq.s32.totalorder %s29, 0
      %p97 = por %p95, %p96
      %p98 = scmp.ne.s32.totalorder %s86, %s87
      %p99 = scmp.eq.s32.totalorder %s30, 1
      %p100 = por %p98, %p99
      %p102 = scmp.ne.s32.totalorder %s87, %s101
      %p103 = scmp.eq.s32.totalorder %s30, 0
      %p104 = por %p102, %p103
      %s106 = sadd.s32 %s105, 1
      %p109 = scmp.eq.s32.totalorder %s24, 1
      %p110 = scmp.ne.s32.totalorder %s105, %s107
      %p111 = scmp.eq.s32.totalorder %s24, 0
      %p112 = por %p110, %p111
      %p113 = scmp.ne.s32.totalorder %s105, %s107
      %p114 = scmp.eq.s32.totalorder %s29, 1
      %p115 = por %p113, %p114
      %p116 = scmp.ne.s32.totalorder %s107, %s108
      %p117 = scmp.eq.s32.totalorder %s29, 0
      %p118 = por %p116, %p117
      %p119 = scmp.ne.s32.totalorder %s107, %s108
      %p120 = scmp.eq.s32.totalorder %s30, 1
      %p121 = por %p119, %p120
      %p123 = scmp.ne.s32.totalorder %s108, %s122
      %p124 = scmp.eq.s32.totalorder %s30, 0
      %p125 = por %p123, %p124
      %s127 = sadd.s32 %s126, 1
      %p130 = scmp.eq.s32.totalorder %s24, 1
      %p131 = scmp.ne.s32.totalorder %s126, %s128
      %p132 = scmp.eq.s32.totalorder %s24, 0
      %p133 = por %p131, %p132
      %p134 = scmp.ne.s32.totalorder %s126, %s128
      %p135 = scmp.eq.s32.totalorder %s29, 1
      %p136 = por %p134, %p135
      %p137 = scmp.ne.s32.totalorder %s128, %s129
      %p138 = scmp.eq.s32.totalorder %s29, 0
      %p139 = por %p137, %p138
      %p140 = scmp.ne.s32.totalorder %s128, %s129
      %p141 = scmp.eq.s32.totalorder %s30, 1
      %p142 = por %p140, %p141
      %p144 = scmp.ne.s32.totalorder %s129, %s143
      %p145 = scmp.eq.s32.totalorder %s30, 0
      %p146 = por %p144, %p145
      %s148 = sadd.s32 %s147, 1
      %p151 = scmp.eq.s32.totalorder %s24, 1
      %p152 = scmp.ne.s32.totalorder %s147, %s149
      %p153 = scmp.eq.s32.totalorder %s24, 0
      %p154 = por %p152, %p153
      %p155 = scmp.ne.s32.totalorder %s147, %s149
      %p156 = scmp.eq.s32.totalorder %s29, 1
      %p157 = por %p155, %p156
      %p158 = scmp.ne.s32.totalorder %s149, %s150
      %p159 = scmp.eq.s32.totalorder %s29, 0
      %p160 = por %p158, %p159
      %p161 = scmp.ne.s32.totalorder %s149, %s150
      %p162 = scmp.eq.s32.totalorder %s30, 1
      %p163 = por %p161, %p162
      %p165 = scmp.ne.s32.totalorder %s150, %s164
      %p166 = scmp.eq.s32.totalorder %s30, 0
      %p167 = por %p165, %p166
      %s169 = sadd.s32 %s168, 1
      %p172 = scmp.eq.s32.totalorder %s24, 1
      %p173 = scmp.ne.s32.totalorder %s168, %s170
      %p174 = scmp.eq.s32.totalorder %s24, 0
      %p175 = por %p173, %p174
      %p176 = scmp.ne.s32.totalorder %s168, %s170
      %p177 = scmp.eq.s32.totalorder %s29, 1
      %p178 = por %p176, %p177
      %p179 = scmp.ne.s32.totalorder %s170, %s171
      %p180 = scmp.eq.s32.totalorder %s29, 0
      %p181 = por %p179, %p180
      %p182 = scmp.ne.s32.totalorder %s170, %s171
      %p183 = scmp.eq.s32.totalorder %s30, 1
      %p184 = por %p182, %p183
      %p186 = scmp.ne.s32.totalorder %s171, %s185
      %p187 = scmp.eq.s32.totalorder %s30, 0
      %p188 = por %p186, %p187
      %s190 = sadd.s32 %s189, 1
      %p193 = scmp.eq.s32.totalorder %s24, 1
      %p194 = scmp.ne.s32.totalorder %s189, %s191
      %p195 = scmp.eq.s32.totalorder %s24, 0
      %p196 = por %p194, %p195
      %p197 = scmp.ne.s32.totalorder %s189, %s191
      %p198 = scmp.eq.s32.totalorder %s29, 1
      %p199 = por %p197, %p198
      %p200 = scmp.ne.s32.totalorder %s191, %s192
      %p201 = scmp.eq.s32.totalorder %s29, 0
      %p202 = por %p200, %p201
      %p203 = scmp.ne.s32.totalorder %s191, %s192
      %p204 = scmp.eq.s32.totalorder %s30, 1
      %p205 = por %p203, %p204
      %p207 = scmp.ne.s32.totalorder %s192, %s206
      %p208 = scmp.eq.s32.totalorder %s30, 0
      %p209 = por %p207, %p208
      %s211 = sadd.s32 %s210, 1
      %p214 = scmp.eq.s32.totalorder %s24, 1
      %p215 = scmp.ne.s32.totalorder %s210, %s212
      %p216 = scmp.eq.s32.totalorder %s24, 0
      %p217 = por %p215, %p216
      %p218 = scmp.ne.s32.totalorder %s210, %s212
      %p219 = scmp.eq.s32.totalorder %s29, 1
      %p220 = por %p218, %p219
      %p221 = scmp.ne.s32.totalorder %s212, %s213
      %p222 = scmp.eq.s32.totalorder %s29, 0
      %p223 = por %p221, %p222
      %p224 = scmp.ne.s32.totalorder %s212, %s213
      %p225 = scmp.eq.s32.totalorder %s30, 1
      %p226 = por %p224, %p225
      %p228 = scmp.ne.s32.totalorder %s213, %s227
      %p229 = scmp.eq.s32.totalorder %s30, 0
      %p230 = por %p228, %p229
      %s232 = sadd.s32 %s231, 1
      %p235 = scmp.eq.s32.totalorder %s24, 1
      %p236 = scmp.ne.s32.totalorder %s231, %s233
      %p237 = scmp.eq.s32.totalorder %s24, 0
      %p238 = por %p236, %p237
      %p239 = scmp.ne.s32.totalorder %s231, %s233
      %p240 = scmp.eq.s32.totalorder %s29, 1
      %p241 = por %p239, %p240
      %p242 = scmp.ne.s32.totalorder %s233, %s234
      %p243 = scmp.eq.s32.totalorder %s29, 0
      %p244 = por %p242, %p243
      %p245 = scmp.ne.s32.totalorder %s233, %s234
      %p246 = scmp.eq.s32.totalorder %s30, 1
      %p247 = por %p245, %p246
      %p249 = scmp.ne.s32.totalorder %s234, %s248
      %p250 = scmp.eq.s32.totalorder %s30, 0
      %p251 = por %p249, %p250
      %s253 = sadd.s32 %s252, 1
      %p256 = scmp.eq.s32.totalorder %s24, 1
      %p257 = scmp.ne.s32.totalorder %s252, %s254
      %p258 = scmp.eq.s32.totalorder %s24, 0
      %p259 = por %p257, %p258
      %p260 = scmp.ne.s32.totalorder %s252, %s254
      %p261 = scmp.eq.s32.totalorder %s29, 1
      %p262 = por %p260, %p261
      %p263 = scmp.ne.s32.totalorder %s254, %s255
      %p264 = scmp.eq.s32.totalorder %s29, 0
      %p265 = por %p263, %p264
      %p266 = scmp.ne.s32.totalorder %s254, %s255
      %p267 = scmp.eq.s32.totalorder %s30, 1
      %p268 = por %p266, %p267
      %p270 = scmp.ne.s32.totalorder %s255, %s269
      %p271 = scmp.eq.s32.totalorder %s30, 0
      %p272 = por %p270, %p271
      %s274 = sadd.s32 %s273, 1
      %p277 = scmp.eq.s32.totalorder %s24, 1
      %p278 = scmp.ne.s32.totalorder %s273, %s275
      %p279 = scmp.eq.s32.totalorder %s24, 0
      %p280 = por %p278, %p279
      %p281 = scmp.ne.s32.totalorder %s273, %s275
      %p282 = scmp.eq.s32.totalorder %s29, 1
      %p283 = por %p281, %p282
      %p284 = scmp.ne.s32.totalorder %s275, %s276
      %p285 = scmp.eq.s32.totalorder %s29, 0
      %p286 = por %p284, %p285
      %p287 = scmp.ne.s32.totalorder %s275, %s276
      %p288 = scmp.eq.s32.totalorder %s30, 1
      %p289 = por %p287, %p288
      %p291 = scmp.ne.s32.totalorder %s276, %s290
      %p292 = scmp.eq.s32.totalorder %s30, 0
      %p293 = por %p291, %p292
      %s295 = sadd.s32 %s294, 1
      %p298 = scmp.eq.s32.totalorder %s24, 1
      %p299 = scmp.ne.s32.totalorder %s294, %s296
      %p300 = scmp.eq.s32.totalorder %s24, 0
      %p301 = por %p299, %p300
      %p302 = scmp.ne.s32.totalorder %s294, %s296
      %p303 = scmp.eq.s32.totalorder %s29, 1
      %p304 = por %p302, %p303
      %p305 = scmp.ne.s32.totalorder %s296, %s297
      %p306 = scmp.eq.s32.totalorder %s29, 0
      %p307 = por %p305, %p306
      %p308 = scmp.ne.s32.totalorder %s296, %s297
      %p309 = scmp.eq.s32.totalorder %s30, 1
      %p310 = por %p308, %p309
      %p312 = scmp.ne.s32.totalorder %s297, %s311
      %p313 = scmp.eq.s32.totalorder %s30, 0
      %p314 = por %p312, %p313
      %s316 = sadd.s32 %s315, 1
      %p319 = scmp.eq.s32.totalorder %s24, 1
      %p320 = scmp.ne.s32.totalorder %s315, %s317
      %p321 = scmp.eq.s32.totalorder %s24, 0
      %p322 = por %p320, %p321
      %p323 = scmp.ne.s32.totalorder %s315, %s317
      %p324 = scmp.eq.s32.totalorder %s29, 1
      %p325 = por %p323, %p324
      %p326 = scmp.ne.s32.totalorder %s317, %s318
      %p327 = scmp.eq.s32.totalorder %s29, 0
      %p328 = por %p326, %p327
      %p329 = scmp.ne.s32.totalorder %s317, %s318
      %p330 = scmp.eq.s32.totalorder %s30, 1
      %p331 = por %p329, %p330
      %p333 = scmp.ne.s32.totalorder %s318, %s332
      %p334 = scmp.eq.s32.totalorder %s30, 0
      %p335 = por %p333, %p334
      %s337 = sadd.s32 %s336, 1
      %p340 = scmp.eq.s32.totalorder %s24, 1
      %p341 = scmp.ne.s32.totalorder %s336, %s338
      %p342 = scmp.eq.s32.totalorder %s24, 0
      %p343 = por %p341, %p342
      %p344 = scmp.ne.s32.totalorder %s336, %s338
      %p345 = scmp.eq.s32.totalorder %s29, 1
      %p346 = por %p344, %p345
      %p347 = scmp.ne.s32.totalorder %s338, %s339
      %p348 = scmp.eq.s32.totalorder %s29, 0
      %p349 = por %p347, %p348
      %p350 = scmp.ne.s32.totalorder %s338, %s339
      %p351 = scmp.eq.s32.totalorder %s30, 1
      %p352 = por %p350, %p351
      %p354 = scmp.ne.s32.totalorder %s339, %s353
      %p355 = scmp.eq.s32.totalorder %s30, 0
      %p356 = por %p354, %p355
      %s357 = ssub.s32 %s24, %s31
      %p358 = scmp.eq.s32.totalorder %s357, 0
      %s360 = sadd.s32 %s359, 1
      %s361 = scalar_select %p358, %s359, %s360
      %p364 = pneg %p358
      %p365 = scmp.eq.s32.totalorder %s24, 1
      %p366 = por %p364, %p365
      %p367 = scmp.ne.s32.totalorder %s359, %s362
      %p368 = scmp.eq.s32.totalorder %s24, 0
      %p369 = por %p367, %p368
      %p370 = scmp.ne.s32.totalorder %s359, %s362
      %p371 = scmp.eq.s32.totalorder %s29, 1
      %p372 = por %p370, %p371
      %p373 = scmp.ne.s32.totalorder %s362, %s363
      %p374 = scmp.eq.s32.totalorder %s29, 0
      %p375 = por %p373, %p374
      %p376 = scmp.ne.s32.totalorder %s362, %s363
      %p377 = scmp.eq.s32.totalorder %s30, 1
      %p378 = por %p376, %p377
      %p380 = scmp.ne.s32.totalorder %s363, %s379
      %p381 = scmp.eq.s32.totalorder %s30, 0
      %p382 = por %p380, %p381
      %p383 = scmp.le.s32.totalorder 1, %s24
      %p384 = scmp.lt.s32.totalorder %s24, 3
      %p385 = pnand %p383, %p384
      %p386 = pneg %p385
      // Predicated region
      $region9: #{basic_transformer_block.1} parent=5 // pred_check
        _
      $region10: #{basic_transformer_block.1} parent=5 // pred_check_branch
        %388 = sbr.rel (%p385) target = $region12
      $region11: #{basic_transformer_block.1} parent=5 // pred_region
        %s389 = ssub.s32 %s24, 1
        // Predicated region
        $region13: #{basic_transformer_block.1} parent=11 // pred_check
          %p390 = pneg %p97
        $region14: #{basic_transformer_block.1} parent=11 // pred_check_branch
          %392 = sbr.rel (%p390) target = $region16
        $region15: #{basic_transformer_block.1} parent=11 // pred_region
          _
        $region16: #{basic_transformer_block.1} parent=11 // pred_fallthru
          _
        // Predicated region
        $region17: #{basic_transformer_block.1} parent=11 // pred_check
          %p393 = pneg %p118
        $region18: #{basic_transformer_block.1} parent=11 // pred_check_branch
          %395 = sbr.rel (%p393) target = $region20
        $region19: #{basic_transformer_block.1} parent=11 // pred_region
          _
        $region20: #{basic_transformer_block.1} parent=11 // pred_fallthru
          _
        // Predicated region
        $region21: #{basic_transformer_block.1} parent=11 // pred_check
          %p396 = pneg %p139
        $region22: #{basic_transformer_block.1} parent=11 // pred_check_branch
          %398 = sbr.rel (%p396) target = $region24
        $region23: #{basic_transformer_block.1} parent=11 // pred_region
          _
        $region24: #{basic_transformer_block.1} parent=11 // pred_fallthru
          _
        // Predicated region
        $region25: #{basic_transformer_block.1} parent=11 // pred_check
          %p399 = pneg %p160
        $region26: #{basic_transformer_block.1} parent=11 // pred_check_branch
          %401 = sbr.rel (%p399) target = $region28
        $region27: #{basic_transformer_block.1} parent=11 // pred_region
          _
        $region28: #{basic_transformer_block.1} parent=11 // pred_fallthru
          _
        // Predicated region
        $region29: #{basic_transformer_block.1} parent=11 // pred_check
          %p402 = pneg %p181
        $region30: #{basic_transformer_block.1} parent=11 // pred_check_branch
          %404 = sbr.rel (%p402) target = $region32
        $region31: #{basic_transformer_block.1} parent=11 // pred_region
          _
        $region32: #{basic_transformer_block.1} parent=11 // pred_fallthru
          _
        // Predicated region
        $region33: #{basic_transformer_block.1} parent=11 // pred_check
          %p405 = pneg %p202
        $region34: #{basic_transformer_block.1} parent=11 // pred_check_branch
          %407 = sbr.rel (%p405) target = $region36
        $region35: #{basic_transformer_block.1} parent=11 // pred_region
          _
        $region36: #{basic_transformer_block.1} parent=11 // pred_fallthru
          _
        // Predicated region
        $region37: #{basic_transformer_block.1} parent=11 // pred_check
          %p408 = pneg %p223
        $region38: #{basic_transformer_block.1} parent=11 // pred_check_branch
          %410 = sbr.rel (%p408) target = $region40
        $region39: #{basic_transformer_block.1} parent=11 // pred_region
          _
        $region40: #{basic_transformer_block.1} parent=11 // pred_fallthru
          _
        // Predicated region
        $region41: #{basic_transformer_block.1} parent=11 // pred_check
          %p411 = pneg %p244
        $region42: #{basic_transformer_block.1} parent=11 // pred_check_branch
          %413 = sbr.rel (%p411) target = $region44
        $region43: #{basic_transformer_block.1} parent=11 // pred_region
          _
        $region44: #{basic_transformer_block.1} parent=11 // pred_fallthru
          _
        // Predicated region
        $region45: #{basic_transformer_block.1} parent=11 // pred_check
          %p414 = pneg %p265
        $region46: #{basic_transformer_block.1} parent=11 // pred_check_branch
          %416 = sbr.rel (%p414) target = $region48
        $region47: #{basic_transformer_block.1} parent=11 // pred_region
          _
        $region48: #{basic_transformer_block.1} parent=11 // pred_fallthru
          _
        // Predicated region
        $region49: #{basic_transformer_block.1} parent=11 // pred_check
          %p417 = pneg %p286
        $region50: #{basic_transformer_block.1} parent=11 // pred_check_branch
          %419 = sbr.rel (%p417) target = $region52
        $region51: #{basic_transformer_block.1} parent=11 // pred_region
          _
        $region52: #{basic_transformer_block.1} parent=11 // pred_fallthru
          _
        // Predicated region
        $region53: #{basic_transformer_block.1} parent=11 // pred_check
          %p420 = pneg %p307
        $region54: #{basic_transformer_block.1} parent=11 // pred_check_branch
          %422 = sbr.rel (%p420) target = $region56
        $region55: #{basic_transformer_block.1} parent=11 // pred_region
          _
        $region56: #{basic_transformer_block.1} parent=11 // pred_fallthru
          _
        // Predicated region
        $region57: #{basic_transformer_block.1} parent=11 // pred_check
          %p423 = pneg %p328
        $region58: #{basic_transformer_block.1} parent=11 // pred_check_branch
          %425 = sbr.rel (%p423) target = $region60
        $region59: #{basic_transformer_block.1} parent=11 // pred_region
          _
        $region60: #{basic_transformer_block.1} parent=11 // pred_fallthru
          _
        // Predicated region
        $region61: #{basic_transformer_block.1} parent=11 // pred_check
          %p426 = pneg %p349
        $region62: #{basic_transformer_block.1} parent=11 // pred_check_branch
          %428 = sbr.rel (%p426) target = $region64
        $region63: #{basic_transformer_block.1} parent=11 // pred_region
          _
        $region64: #{basic_transformer_block.1} parent=11 // pred_fallthru
          _
      $region12: #{basic_transformer_block.1} parent=5 // pred_fallthru
        _
      %p429 = scmp.lt.s32.totalorder %s24, 2
      // Predicated region
      $region65: #{basic_transformer_block.1} parent=5 // pred_check
        %p430 = pneg %p429
      $region66: #{basic_transformer_block.1} parent=5 // pred_check_branch
        %432 = sbr.rel (%p430) target = $region68
      $region67: #{basic_transformer_block.1} parent=5 // pred_region
        // Predicated region
        $region69: #{basic_transformer_block.1} parent=67 // pred_check
          %p433 = pneg %p44
        $region70: #{basic_transformer_block.1} parent=67 // pred_check_branch
          %435 = sbr.rel (%p433) target = $region72
        $region71: #{basic_transformer_block.1} parent=67 // pred_region
          %p436 = scmp.lt.s32.totalorder %s24, 1
          %s437 = scalar_select %p436, %s24, 1
          %s438 = smul.addr %s437, 8
          %s439 = scalar_lea.vmem %s0, %s438
        $region72: #{basic_transformer_block.1} parent=67 // pred_fallthru
          _
        // Predicated region
        $region73: #{basic_transformer_block.1} parent=67 // pred_check
          %p440 = pneg %p70
        $region74: #{basic_transformer_block.1} parent=67 // pred_check_branch
          %442 = sbr.rel (%p440) target = $region76
        $region75: #{basic_transformer_block.1} parent=67 // pred_region
          %p443 = scmp.lt.s32.totalorder %s24, 1
          %s444 = scalar_select %p443, %s24, 1
          %s445 = smul.addr %s444, 2
          %s446 = smul.addr %s445, 8
          %s447 = scalar_lea.vmem %s1, %s446
        $region76: #{basic_transformer_block.1} parent=67 // pred_fallthru
          _
      $region68: #{basic_transformer_block.1} parent=5 // pred_fallthru
        _
      %p448 = scmp.le.s32.totalorder 1, %s24
      %p449 = scmp.lt.s32.totalorder %s24, 3
      %p450 = pnand %p448, %p449
      %p451 = pneg %p450
      // Predicated region
      $region77: #{basic_transformer_block.1} parent=5 // pred_check
        _
      $region78: #{basic_transformer_block.1} parent=5 // pred_check_branch
        %453 = sbr.rel (%p450) target = $region80
      $region79: #{basic_transformer_block.1} parent=5 // pred_region
        %s454 = ssub.s32 %s24, 1
        %p455 = scmp.lt.s32.totalorder %s29, 1
        %s456 = scalar_select %p455, %s29, 1
        %s457 = smul.addr %s456, 8
        %s458 = scalar_lea.vmem %s0, %s457
        %p459 = pneg %p50
        %p460 = pneg %p47
        %p461 = scmp.lt.s32.totalorder %s29, 1
        %s462 = scalar_select %p461, %s29, 1
        %s463 = smul.addr %s462, 2
        %s464 = smul.addr %s463, 8
        %s465 = scalar_lea.vmem %s1, %s464
        %p466 = pneg %p76
        %p467 = pneg %p73
        %p468 = pneg %p97
        %p469 = pneg %p94
        %p470 = pneg %p118
        %p471 = pneg %p115
        %p472 = pneg %p139
        %p473 = pneg %p136
        %p474 = pneg %p160
        %p475 = pneg %p157
        %p476 = pneg %p181
        %p477 = pneg %p178
        %p478 = pneg %p202
        %p479 = pneg %p199
        %p480 = pneg %p223
        %p481 = pneg %p220
        %p482 = pneg %p244
        %p483 = pneg %p241
        %p484 = pneg %p265
        %p485 = pneg %p262
        %p486 = pneg %p286
        %p487 = pneg %p283
        %p488 = pneg %p307
        %p489 = pneg %p304
        %p490 = pneg %p328
        %p491 = pneg %p325
        %p492 = pneg %p349
        %p493 = pneg %p346
        %p494 = pneg %p375
        %p495 = pneg %p372
        %s496 = sand.u32 %s362, 1
        %s497 = scalar_lea.sflag [#allocation3], %s496
        %s498 = sand.u32 %s362, 1
        %s499 = smul.addr %s498, 8
        %s500 = scalar_lea.vmem [#allocation2], %s499
        %p501 = scmp.lt.s32.totalorder %s29, 1
        %s502 = scalar_select %p501, %s29, 1
        %s503 = smul.addr %s502, 8
        %s504 = scalar_lea.vmem %s0, %s503
        %p505 = scmp.lt.s32.totalorder %s29, 1
        %s506 = scalar_select %p505, %s29, 1
        %s507 = smul.addr %s506, 2
        %s508 = smul.addr %s507, 8
        %s509 = scalar_lea.vmem %s1, %s508
        %v511 = vld [vmem:[%s504] sm:$0xff]
        %v512 = vld [vmem:[%s509] sm:$0xff]
        %v513 = vld [vmem:[%s509 + $0x8] sm:$0xff]
        %v514 = vld [vmem:[%s2] sm:$0x1]
        %v515 = vld [vmem:[%s3] sm:$0x1]
        %vm516 = vcmask 261120
        %v517 = vsel %vm516, %v511, 0.0
        %518 = vadd.xlane.f32.xlu0 %v517
        %v519 = vpop.xlane.xlu0 %518
        %v520 = vrcp.pop 32.0
        %v521 = vmul.f32 %v519, %v520
        %v522 = vsub.f32 %v511, %v521
        %v523 = vmul.f32 %v522, %v522
        %v524 = vsel %vm516, %v523, 0.0
        %525 = vadd.xlane.f32.xlu0 %v524
        %v526 = vpop.xlane.xlu0 %525
        %v527 = vmul.f32 %v526, %v520
        %v528 = vadd.f32 %v527, 1e-12
        %v529 = vrsqrt.pop %v528
        %v530 = vmul.f32 %v522, %v529
        %v531 = vlaneseq
        %v532 = vshrl.u32 %v531, 7
        %v533 = vsub.s32 0, %v532
        %v534 = vrot.slane %v514, %v533
        %v535 = vmul.f32 %v530, %v534
        %v536 = vlaneseq
        %v537 = vshrl.u32 %v536, 7
        %v538 = vsub.s32 0, %v537
        %v539 = vrot.slane %v515, %v538
        %v540 = vadd.f32 %v535, %v539
        %v541 = vld [vmem:[%s4] sm:$0xf]
        %v542 = vld [vmem:[%s4 + $0x4] sm:$0xf]
        %v543 = vld [vmem:[%s4 + $0x8] sm:$0xf]
        %v544 = vld [vmem:[%s4 + $0xc] sm:$0xf]
        %v545 = vld [vmem:[%s4 + $0x10] sm:$0xf]
        %v546 = vld [vmem:[%s4 + $0x14] sm:$0xf]
        %v547 = vld [vmem:[%s4 + $0x18] sm:$0xf]
        %v548 = vld [vmem:[%s4 + $0x1c] sm:$0xf]
        %v549 = vld [vmem:[%s4 + $0x20] sm:$0xf]
        %v550 = vld [vmem:[%s4 + $0x24] sm:$0xf]
        %v551 = vld [vmem:[%s4 + $0x28] sm:$0xf]
        %v552 = vld [vmem:[%s4 + $0x2c] sm:$0xf]
        %v553 = vld [vmem:[%s4 + $0x30] sm:$0xf]
        %v554 = vld [vmem:[%s4 + $0x34] sm:$0xf]
        %v555 = vld [vmem:[%s4 + $0x38] sm:$0xf]
        %v556 = vld [vmem:[%s4 + $0x3c] sm:$0xf]
        %v557 = vld [vmem:[%s4 + $0x40] sm:$0xf]
        %v558 = vld [vmem:[%s4 + $0x44] sm:$0xf]
        %v559 = vld [vmem:[%s4 + $0x48] sm:$0xf]
        %v560 = vld [vmem:[%s4 + $0x4c] sm:$0xf]
        %v561 = vld [vmem:[%s4 + $0x50] sm:$0xf]
        %v562 = vld [vmem:[%s4 + $0x54] sm:$0xf]
        %v563 = vld [vmem:[%s4 + $0x58] sm:$0xf]
        %v564 = vld [vmem:[%s4 + $0x5c] sm:$0xf]
        %v565 = vld [vmem:[%s4 + $0x60] sm:$0xf]
        %v566 = vld [vmem:[%s4 + $0x64] sm:$0xf]
        %v567 = vld [vmem:[%s4 + $0x68] sm:$0xf]
        %v568 = vld [vmem:[%s4 + $0x6c] sm:$0xf]
        %v569 = vld [vmem:[%s4 + $0x70] sm:$0xf]
        %v570 = vld [vmem:[%s4 + $0x74] sm:$0xf]
        %v571 = vld [vmem:[%s4 + $0x78] sm:$0xf]
        %v572 = vld [vmem:[%s4 + $0x7c] sm:$0xf]
        %v573 = vld [vmem:[%s4 + $0x80] sm:$0xf]
        %v574 = vld [vmem:[%s4 + $0x84] sm:$0xf]
        %v575 = vld [vmem:[%s4 + $0x88] sm:$0xf]
        %v576 = vld [vmem:[%s4 + $0x8c] sm:$0xf]
        %v577 = vld [vmem:[%s4 + $0x90] sm:$0xf]
        %v578 = vld [vmem:[%s4 + $0x94] sm:$0xf]
        %v579 = vld [vmem:[%s4 + $0x98] sm:$0xf]
        %v580 = vld [vmem:[%s4 + $0x9c] sm:$0xf]
        %v581 = vld [vmem:[%s4 + $0xa0] sm:$0xf]
        %v582 = vld [vmem:[%s4 + $0xa4] sm:$0xf]
        %v583 = vld [vmem:[%s4 + $0xa8] sm:$0xf]
        %v584 = vld [vmem:[%s4 + $0xac] sm:$0xf]
        %v585 = vld [vmem:[%s4 + $0xb0] sm:$0xf]
        %v586 = vld [vmem:[%s4 + $0xb4] sm:$0xf]
        %v587 = vld [vmem:[%s4 + $0xb8] sm:$0xf]
        %v588 = vld [vmem:[%s4 + $0xbc] sm:$0xf]
        %v589 = vpack.c.bf16 %v540, %v540
        %v594 = vunpack.c.l.b16 %v541
        %v595 = vunpack.c.l.b16 %v542
        %v596 = vunpack.c.l.b16 %v543
        %v597 = vunpack.c.l.b16 %v544
        %v598 = vpack.c.b16 %v595, %v594
        %v599 = vpack.c.b16 %v597, %v596
        %v603 = vsel %vm516, %v589, 0
        %605 = vmatprep.subr.bf16.mxu0 0
        %606 = vmatpush1.bf16.msra.mxu0 %v598
        %607 = vmatprep.subr.bf16.mxu0 0
        %608 = vmatpush1.bf16.msra.mxu0 %v599
        %609 = vmatprep.subr.bf16.mxu0 0
        %610 = vmatpush1.bf16.msra.mxu0 0
        %611 = vmatprep.subr.bf16.mxu0 0
        %612 = vmatpush1.bf16.msra.mxu0 0
        %613 = vmatprep.subr.bf16.mxu0 0
        %614 = vmatpush1.bf16.msra.mxu0 0
        %615 = vmatprep.subr.bf16.mxu0 0
        %616 = vmatpush1.bf16.msra.mxu0 0
        %617 = vmatprep.subr.bf16.mxu0 0
        %618 = vmatpush1.bf16.msra.mxu0 0
        %619 = vmatprep.subr.bf16.mxu0 0
        %620 = vmatpush1.bf16.msra.mxu0 0
        %621 = vmatprep.subr.bf16.mxu0 0
        %622 = vmatpush1.bf16.msra.mxu0 0
        %623 = vmatprep.subr.bf16.mxu0 0
        %624 = vmatpush1.bf16.msra.mxu0 0
        %625 = vmatprep.subr.bf16.mxu0 0
        %626 = vmatpush1.bf16.msra.mxu0 0
        %627 = vmatprep.subr.bf16.mxu0 0
        %628 = vmatpush1.bf16.msra.mxu0 0
        %629 = vmatprep.subr.bf16.mxu0 0
        %630 = vmatpush1.bf16.msra.mxu0 0
        %631 = vmatprep.subr.bf16.mxu0 0
        %632 = vmatpush1.bf16.msra.mxu0 0
        %633 = vmatprep.subr.bf16.mxu0 0
        %634 = vmatpush1.bf16.msra.mxu0 0
        %635 = vmatprep.subr.bf16.mxu0 0
        %636 = vmatpush1.bf16.msra.mxu0 0
        %637 = vmatprep.mubr.bf16.mxu0 0
        %638 = vmatmul.mubr.bf16.gmra.mrb[0].mxu0 %v603
        %v639 = vpop.f32.mrb[0].mxu0
        %v640 = vadd.f32 0.0, %v639
        %v641 = vpop.f32.mrb[0].mxu0
        %v642 = vpop.f32.mrb[0].mxu0
        %v643 = vpop.f32.mrb[0].mxu0
        %644 = vdwg.mxu0
        %v649 = vunpack.c.l.b16 %v545
        %v650 = vunpack.c.l.b16 %v546
        %v651 = vunpack.c.l.b16 %v547
        %v652 = vunpack.c.l.b16 %v548
        %v653 = vpack.c.b16 %v650, %v649
        %v654 = vpack.c.b16 %v652, %v651
        %657 = vmatprep.subr.bf16.mxu0 0
        %658 = vmatpush1.bf16.msra.mxu0 %v653
        %659 = vmatprep.subr.bf16.mxu0 0
        %660 = vmatpush1.bf16.msra.mxu0 %v654
        %661 = vmatprep.subr.bf16.mxu0 0
        %662 = vmatpush1.bf16.msra.mxu0 0
        %663 = vmatprep.subr.bf16.mxu0 0
        %664 = vmatpush1.bf16.msra.mxu0 0
        %665 = vmatprep.subr.bf16.mxu0 0
        %666 = vmatpush1.bf16.msra.mxu0 0
        %667 = vmatprep.subr.bf16.mxu0 0
        %668 = vmatpush1.bf16.msra.mxu0 0
        %669 = vmatprep.subr.bf16.mxu0 0
        %670 = vmatpush1.bf16.msra.mxu0 0
        %671 = vmatprep.subr.bf16.mxu0 0
        %672 = vmatpush1.bf16.msra.mxu0 0
        %673 = vmatprep.subr.bf16.mxu0 0
        %674 = vmatpush1.bf16.msra.mxu0 0
        %675 = vmatprep.subr.bf16.mxu0 0
        %676 = vmatpush1.bf16.msra.mxu0 0
        %677 = vmatprep.subr.bf16.mxu0 0
        %678 = vmatpush1.bf16.msra.mxu0 0
        %679 = vmatprep.subr.bf16.mxu0 0
        %680 = vmatpush1.bf16.msra.mxu0 0
        %681 = vmatprep.subr.bf16.mxu0 0
        %682 = vmatpush1.bf16.msra.mxu0 0
        %683 = vmatprep.subr.bf16.mxu0 0
        %684 = vmatpush1.bf16.msra.mxu0 0
        %685 = vmatprep.subr.bf16.mxu0 0
        %686 = vmatpush1.bf16.msra.mxu0 0
        %687 = vmatprep.subr.bf16.mxu0 0
        %688 = vmatpush1.bf16.msra.mxu0 0
        %689 = vmatprep.mubr.bf16.mxu0 0
        %690 = vmatmul.mubr.bf16.gmra.mrb[0].mxu0 %v603
        %v691 = vpop.f32.mrb[0].mxu0
        %v692 = vadd.f32 0.0, %v691
        %v693 = vpop.f32.mrb[0].mxu0
        %v694 = vpop.f32.mrb[0].mxu0
        %v695 = vpop.f32.mrb[0].mxu0
        %696 = vdwg.mxu0
        %v701 = vunpack.c.l.b16 %v549
        %v702 = vunpack.c.l.b16 %v550
        %v703 = vunpack.c.l.b16 %v551
        %v704 = vunpack.c.l.b16 %v552
        %v705 = vpack.c.b16 %v702, %v701
        %v706 = vpack.c.b16 %v704, %v703
        %709 = vmatprep.subr.bf16.mxu0 0
        %710 = vmatpush1.bf16.msra.mxu0 %v705
        %711 = vmatprep.subr.bf16.mxu0 0
        %712 = vmatpush1.bf16.msra.mxu0 %v706
        %713 = vmatprep.subr.bf16.mxu0 0
        %714 = vmatpush1.bf16.msra.mxu0 0
        %715 = vmatprep.subr.bf16.mxu0 0
        %716 = vmatpush1.bf16.msra.mxu0 0
        %717 = vmatprep.subr.bf16.mxu0 0
        %718 = vmatpush1.bf16.msra.mxu0 0
        %719 = vmatprep.subr.bf16.mxu0 0
        %720 = vmatpush1.bf16.msra.mxu0 0
        %721 = vmatprep.subr.bf16.mxu0 0
        %722 = vmatpush1.bf16.msra.mxu0 0
        %723 = vmatprep.subr.bf16.mxu0 0
        %724 = vmatpush1.bf16.msra.mxu0 0
        %725 = vmatprep.subr.bf16.mxu0 0
        %726 = vmatpush1.bf16.msra.mxu0 0
        %727 = vmatprep.subr.bf16.mxu0 0
        %728 = vmatpush1.bf16.msra.mxu0 0
        %729 = vmatprep.subr.bf16.mxu0 0
        %730 = vmatpush1.bf16.msra.mxu0 0
        %731 = vmatprep.subr.bf16.mxu0 0
        %732 = vmatpush1.bf16.msra.mxu0 0
        %733 = vmatprep.subr.bf16.mxu0 0
        %734 = vmatpush1.bf16.msra.mxu0 0
        %735 = vmatprep.subr.bf16.mxu0 0
        %736 = vmatpush1.bf16.msra.mxu0 0
        %737 = vmatprep.subr.bf16.mxu0 0
        %738 = vmatpush1.bf16.msra.mxu0 0
        %739 = vmatprep.subr.bf16.mxu0 0
        %740 = vmatpush1.bf16.msra.mxu0 0
        %741 = vmatprep.mubr.bf16.mxu0 0
        %742 = vmatmul.mubr.bf16.gmra.mrb[0].mxu0 %v603
        %v743 = vpop.f32.mrb[0].mxu0
        %v744 = vadd.f32 0.0, %v743
        %v745 = vpop.f32.mrb[0].mxu0
        %v746 = vpop.f32.mrb[0].mxu0
        %v747 = vpop.f32.mrb[0].mxu0
        %748 = vdwg.mxu0
        %v753 = vunpack.c.l.b16 %v553
        %v754 = vunpack.c.l.b16 %v554
        %v755 = vunpack.c.l.b16 %v555
        %v756 = vunpack.c.l.b16 %v556
        %v757 = vpack.c.b16 %v754, %v753
        %v758 = vpack.c.b16 %v756, %v755
        %761 = vmatprep.subr.bf16.mxu0 0
        %762 = vmatpush1.bf16.msra.mxu0 %v757
        %763 = vmatprep.subr.bf16.mxu0 0
        %764 = vmatpush1.bf16.msra.mxu0 %v758
        %765 = vmatprep.subr.bf16.mxu0 0
        %766 = vmatpush1.bf16.msra.mxu0 0
        %767 = vmatprep.subr.bf16.mxu0 0
        %768 = vmatpush1.bf16.msra.mxu0 0
        %769 = vmatprep.subr.bf16.mxu0 0
        %770 = vmatpush1.bf16.msra.mxu0 0
        %771 = vmatprep.subr.bf16.mxu0 0
        %772 = vmatpush1.bf16.msra.mxu0 0
        %773 = vmatprep.subr.bf16.mxu0 0
        %774 = vmatpush1.bf16.msra.mxu0 0
        %775 = vmatprep.subr.bf16.mxu0 0
        %776 = vmatpush1.bf16.msra.mxu0 0
        %777 = vmatprep.subr.bf16.mxu0 0
        %778 = vmatpush1.bf16.msra.mxu0 0
        %779 = vmatprep.subr.bf16.mxu0 0
        %780 = vmatpush1.bf16.msra.mxu0 0
        %781 = vmatprep.subr.bf16.mxu0 0
        %782 = vmatpush1.bf16.msra.mxu0 0
        %783 = vmatprep.subr.bf16.mxu0 0
        %784 = vmatpush1.bf16.msra.mxu0 0
        %785 = vmatprep.subr.bf16.mxu0 0
        %786 = vmatpush1.bf16.msra.mxu0 0
        %787 = vmatprep.subr.bf16.mxu0 0
        %788 = vmatpush1.bf16.msra.mxu0 0
        %789 = vmatprep.subr.bf16.mxu0 0
        %790 = vmatpush1.bf16.msra.mxu0 0
        %791 = vmatprep.subr.bf16.mxu0 0
        %792 = vmatpush1.bf16.msra.mxu0 0
        %793 = vmatprep.mubr.bf16.mxu0 0
        %794 = vmatmul.mubr.bf16.gmra.mrb[0].mxu0 %v603
        %v795 = vpop.f32.mrb[0].mxu0
        %v796 = vadd.f32 0.0, %v795
        %v797 = vpop.f32.mrb[0].mxu0
        %v798 = vpop.f32.mrb[0].mxu0
        %v799 = vpop.f32.mrb[0].mxu0
        %800 = vdwg.mxu0
        %v805 = vunpack.c.l.b16 %v557
        %v806 = vunpack.c.l.b16 %v558
        %v807 = vunpack.c.l.b16 %v559
        %v808 = vunpack.c.l.b16 %v560
        %v809 = vpack.c.b16 %v806, %v805
        %v810 = vpack.c.b16 %v808, %v807
        %813 = vmatprep.subr.bf16.mxu0 0
        %814 = vmatpush1.bf16.msra.mxu0 %v809
        %815 = vmatprep.subr.bf16.mxu0 0
        %816 = vmatpush1.bf16.msra.mxu0 %v810
        %817 = vmatprep.subr.bf16.mxu0 0
        %818 = vmatpush1.bf16.msra.mxu0 0
        %819 = vmatprep.subr.bf16.mxu0 0
        %820 = vmatpush1.bf16.msra.mxu0 0
        %821 = vmatprep.subr.bf16.mxu0 0
        %822 = vmatpush1.bf16.msra.mxu0 0
        %823 = vmatprep.subr.bf16.mxu0 0
        %824 = vmatpush1.bf16.msra.mxu0 0
        %825 = vmatprep.subr.bf16.mxu0 0
        %826 = vmatpush1.bf16.msra.mxu0 0
        %827 = vmatprep.subr.bf16.mxu0 0
        %828 = vmatpush1.bf16.msra.mxu0 0
        %829 = vmatprep.subr.bf16.mxu0 0
        %830 = vmatpush1.bf16.msra.mxu0 0
        %831 = vmatprep.subr.bf16.mxu0 0
        %832 = vmatpush1.bf16.msra.mxu0 0
        %833 = vmatprep.subr.bf16.mxu0 0
        %834 = vmatpush1.bf16.msra.mxu0 0
        %835 = vmatprep.subr.bf16.mxu0 0
        %836 = vmatpush1.bf16.msra.mxu0 0
        %837 = vmatprep.subr.bf16.mxu0 0
        %838 = vmatpush1.bf16.msra.mxu0 0
        %839 = vmatprep.subr.bf16.mxu0 0
        %840 = vmatpush1.bf16.msra.mxu0 0
        %841 = vmatprep.subr.bf16.mxu0 0
        %842 = vmatpush1.bf16.msra.mxu0 0
        %843 = vmatprep.subr.bf16.mxu0 0
        %844 = vmatpush1.bf16.msra.mxu0 0
        %845 = vmatprep.mubr.bf16.mxu0 0
        %846 = vmatmul.mubr.bf16.gmra.mrb[0].mxu0 %v603
        %v847 = vpop.f32.mrb[0].mxu0
        %v848 = vadd.f32 0.0, %v847
        %v849 = vpop.f32.mrb[0].mxu0
        %v850 = vpop.f32.mrb[0].mxu0
        %v851 = vpop.f32.mrb[0].mxu0
        %852 = vdwg.mxu0
        %v857 = vunpack.c.l.b16 %v561
        %v858 = vunpack.c.l.b16 %v562
        %v859 = vunpack.c.l.b16 %v563
        %v860 = vunpack.c.l.b16 %v564
        %v861 = vpack.c.b16 %v858, %v857
        %v862 = vpack.c.b16 %v860, %v859
        %865 = vmatprep.subr.bf16.mxu0 0
        %866 = vmatpush1.bf16.msra.mxu0 %v861
        %867 = vmatprep.subr.bf16.mxu0 0
        %868 = vmatpush1.bf16.msra.mxu0 %v862
        %869 = vmatprep.subr.bf16.mxu0 0
        %870 = vmatpush1.bf16.msra.mxu0 0
        %871 = vmatprep.subr.bf16.mxu0 0
        %872 = vmatpush1.bf16.msra.mxu0 0
        %873 = vmatprep.subr.bf16.mxu0 0
        %874 = vmatpush1.bf16.msra.mxu0 0
        %875 = vmatprep.subr.bf16.mxu0 0
        %876 = vmatpush1.bf16.msra.mxu0 0
        %877 = vmatprep.subr.bf16.mxu0 0
        %878 = vmatpush1.bf16.msra.mxu0 0
        %879 = vmatprep.subr.bf16.mxu0 0
        %880 = vmatpush1.bf16.msra.mxu0 0
        %881 = vmatprep.subr.bf16.mxu0 0
        %882 = vmatpush1.bf16.msra.mxu0 0
        %883 = vmatprep.subr.bf16.mxu0 0
        %884 = vmatpush1.bf16.msra.mxu0 0
        %885 = vmatprep.subr.bf16.mxu0 0
        %886 = vmatpush1.bf16.msra.mxu0 0
        %887 = vmatprep.subr.bf16.mxu0 0
        %888 = vmatpush1.bf16.msra.mxu0 0
        %889 = vmatprep.subr.bf16.mxu0 0
        %890 = vmatpush1.bf16.msra.mxu0 0
        %891 = vmatprep.subr.bf16.mxu0 0
        %892 = vmatpush1.bf16.msra.mxu0 0
        %893 = vmatprep.subr.bf16.mxu0 0
        %894 = vmatpush1.bf16.msra.mxu0 0
        %895 = vmatprep.subr.bf16.mxu0 0
        %896 = vmatpush1.bf16.msra.mxu0 0
        %897 = vmatprep.mubr.bf16.mxu0 0
        %898 = vmatmul.mubr.bf16.gmra.mrb[0].mxu0 %v603
        %v899 = vpop.f32.mrb[0].mxu0
        %v900 = vadd.f32 0.0, %v899
        %v901 = vpop.f32.mrb[0].mxu0
        %v902 = vpop.f32.mrb[0].mxu0
        %v903 = vpop.f32.mrb[0].mxu0
        %904 = vdwg.mxu0
        %v909 = vunpack.c.l.b16 %v565
        %v910 = vunpack.c.l.b16 %v566
        %v911 = vunpack.c.l.b16 %v567
        %v912 = vunpack.c.l.b16 %v568
        %v913 = vpack.c.b16 %v910, %v909
        %v914 = vpack.c.b16 %v912, %v911
        %917 = vmatprep.subr.bf16.mxu0 0
        %918 = vmatpush1.bf16.msra.mxu0 %v913
        %919 = vmatprep.subr.bf16.mxu0 0
        %920 = vmatpush1.bf16.msra.mxu0 %v914
        %921 = vmatprep.subr.bf16.mxu0 0
        %922 = vmatpush1.bf16.msra.mxu0 0
        %923 = vmatprep.subr.bf16.mxu0 0
        %924 = vmatpush1.bf16.msra.mxu0 0
        %925 = vmatprep.subr.bf16.mxu0 0
        %926 = vmatpush1.bf16.msra.mxu0 0
        %927 = vmatprep.subr.bf16.mxu0 0
        %928 = vmatpush1.bf16.msra.mxu0 0
        %929 = vmatprep.subr.bf16.mxu0 0
        %930 = vmatpush1.bf16.msra.mxu0 0
        %931 = vmatprep.subr.bf16.mxu0 0
        %932 = vmatpush1.bf16.msra.mxu0 0
        %933 = vmatprep.subr.bf16.mxu0 0
        %934 = vmatpush1.bf16.msra.mxu0 0
        %935 = vmatprep.subr.bf16.mxu0 0
        %936 = vmatpush1.bf16.msra.mxu0 0
        %937 = vmatprep.subr.bf16.mxu0 0
        %938 = vmatpush1.bf16.msra.mxu0 0
        %939 = vmatprep.subr.bf16.mxu0 0
        %940 = vmatpush1.bf16.msra.mxu0 0
        %941 = vmatprep.subr.bf16.mxu0 0
        %942 = vmatpush1.bf16.msra.mxu0 0
        %943 = vmatprep.subr.bf16.mxu0 0
        %944 = vmatpush1.bf16.msra.mxu0 0
        %945 = vmatprep.subr.bf16.mxu0 0
        %946 = vmatpush1.bf16.msra.mxu0 0
        %947 = vmatprep.subr.bf16.mxu0 0
        %948 = vmatpush1.bf16.msra.mxu0 0
        %949 = vmatprep.mubr.bf16.mxu0 0
        %950 = vmatmul.mubr.bf16.gmra.mrb[0].mxu0 %v603
        %v951 = vpop.f32.mrb[0].mxu0
        %v952 = vadd.f32 0.0, %v951
        %v953 = vpop.f32.mrb[0].mxu0
        %v954 = vpop.f32.mrb[0].mxu0
        %v955 = vpop.f32.mrb[0].mxu0
        %956 = vdwg.mxu0
        %v961 = vunpack.c.l.b16 %v569
        %v962 = vunpack.c.l.b16 %v570
        %v963 = vunpack.c.l.b16 %v571
        %v964 = vunpack.c.l.b16 %v572
        %v965 = vpack.c.b16 %v962, %v961
        %v966 = vpack.c.b16 %v964, %v963
        %969 = vmatprep.subr.bf16.mxu0 0
        %970 = vmatpush1.bf16.msra.mxu0 %v965
        %971 = vmatprep.subr.bf16.mxu0 0
        %972 = vmatpush1.bf16.msra.mxu0 %v966
        %973 = vmatprep.subr.bf16.mxu0 0
        %974 = vmatpush1.bf16.msra.mxu0 0
        %975 = vmatprep.subr.bf16.mxu0 0
        %976 = vmatpush1.bf16.msra.mxu0 0
        %977 = vmatprep.subr.bf16.mxu0 0
        %978 = vmatpush1.bf16.msra.mxu0 0
        %979 = vmatprep.subr.bf16.mxu0 0
        %980 = vmatpush1.bf16.msra.mxu0 0
        %981 = vmatprep.subr.bf16.mxu0 0
        %982 = vmatpush1.bf16.msra.mxu0 0
        %983 = vmatprep.subr.bf16.mxu0 0
        %984 = vmatpush1.bf16.msra.mxu0 0
        %985 = vmatprep.subr.bf16.mxu0 0
        %986 = vmatpush1.bf16.msra.mxu0 0
        %987 = vmatprep.subr.bf16.mxu0 0
        %988 = vmatpush1.bf16.msra.mxu0 0
        %989 = vmatprep.subr.bf16.mxu0 0
        %990 = vmatpush1.bf16.msra.mxu0 0
        %991 = vmatprep.subr.bf16.mxu0 0
        %992 = vmatpush1.bf16.msra.mxu0 0
        %993 = vmatprep.subr.bf16.mxu0 0
        %994 = vmatpush1.bf16.msra.mxu0 0
        %995 = vmatprep.subr.bf16.mxu0 0
        %996 = vmatpush1.bf16.msra.mxu0 0
        %997 = vmatprep.subr.bf16.mxu0 0
        %998 = vmatpush1.bf16.msra.mxu0 0
        %999 = vmatprep.subr.bf16.mxu0 0
        %1000 = vmatpush1.bf16.msra.mxu0 0
        %1001 = vmatprep.mubr.bf16.mxu0 0
        %1002 = vmatmul.mubr.bf16.gmra.mrb[0].mxu0 %v603
        %v1003 = vpop.f32.mrb[0].mxu0
        %v1004 = vadd.f32 0.0, %v1003
        %v1005 = vpop.f32.mrb[0].mxu0
        %v1006 = vpop.f32.mrb[0].mxu0
        %v1007 = vpop.f32.mrb[0].mxu0
        %1008 = vdwg.mxu0
        %v1013 = vunpack.c.l.b16 %v573
        %v1014 = vunpack.c.l.b16 %v574
        %v1015 = vunpack.c.l.b16 %v575
        %v1016 = vunpack.c.l.b16 %v576
        %v1017 = vpack.c.b16 %v1014, %v1013
        %v1018 = vpack.c.b16 %v1016, %v1015
        %1021 = vmatprep.subr.bf16.mxu0 0
        %1022 = vmatpush1.bf16.msra.mxu0 %v1017
        %1023 = vmatprep.subr.bf16.mxu0 0
        %1024 = vmatpush1.bf16.msra.mxu0 %v1018
        %1025 = vmatprep.subr.bf16.mxu0 0
        %1026 = vmatpush1.bf16.msra.mxu0 0
        %1027 = vmatprep.subr.bf16.mxu0 0
        %1028 = vmatpush1.bf16.msra.mxu0 0
        %1029 = vmatprep.subr.bf16.mxu0 0
        %1030 = vmatpush1.bf16.msra.mxu0 0
        %1031 = vmatprep.subr.bf16.mxu0 0
        %1032 = vmatpush1.bf16.msra.mxu0 0
        %1033 = vmatprep.subr.bf16.mxu0 0
        %1034 = vmatpush1.bf16.msra.mxu0 0
        %1035 = vmatprep.subr.bf16.mxu0 0
        %1036 = vmatpush1.bf16.msra.mxu0 0
        %1037 = vmatprep.subr.bf16.mxu0 0
        %1038 = vmatpush1.bf16.msra.mxu0 0
        %1039 = vmatprep.subr.bf16.mxu0 0
        %1040 = vmatpush1.bf16.msra.mxu0 0
        %1041 = vmatprep.subr.bf16.mxu0 0
        %1042 = vmatpush1.bf16.msra.mxu0 0
        %1043 = vmatprep.subr.bf16.mxu0 0
        %1044 = vmatpush1.bf16.msra.mxu0 0
        %1045 = vmatprep.subr.bf16.mxu0 0
        %1046 = vmatpush1.bf16.msra.mxu0 0
        %1047 = vmatprep.subr.bf16.mxu0 0
        %1048 = vmatpush1.bf16.msra.mxu0 0
        %1049 = vmatprep.subr.bf16.mxu0 0
        %1050 = vmatpush1.bf16.msra.mxu0 0
        %1051 = vmatprep.subr.bf16.mxu0 0
        %1052 = vmatpush1.bf16.msra.mxu0 0
        %1053 = vmatprep.mubr.bf16.mxu0 0
        %1054 = vmatmul.mubr.bf16.gmra.mrb[0].mxu0 %v603
        %v1055 = vpop.f32.mrb[0].mxu0
        %v1056 = vadd.f32 0.0, %v1055
        %v1057 = vpop.f32.mrb[0].mxu0
        %v1058 = vpop.f32.mrb[0].mxu0
        %v1059 = vpop.f32.mrb[0].mxu0
        %1060 = vdwg.mxu0
        %v1065 = vunpack.c.l.b16 %v577
        %v1066 = vunpack.c.l.b16 %v578
        %v1067 = vunpack.c.l.b16 %v579
        %v1068 = vunpack.c.l.b16 %v580
        %v1069 = vpack.c.b16 %v1066, %v1065
        %v1070 = vpack.c.b16 %v1068, %v1067
        %1073 = vmatprep.subr.bf16.mxu0 0
        %1074 = vmatpush1.bf16.msra.mxu0 %v1069
        %1075 = vmatprep.subr.bf16.mxu0 0
        %1076 = vmatpush1.bf16.msra.mxu0 %v1070
        %1077 = vmatprep.subr.bf16.mxu0 0
        %1078 = vmatpush1.bf16.msra.mxu0 0
        %1079 = vmatprep.subr.bf16.mxu0 0
        %1080 = vmatpush1.bf16.msra.mxu0 0
        %1081 = vmatprep.subr.bf16.mxu0 0
        %1082 = vmatpush1.bf16.msra.mxu0 0
        %1083 = vmatprep.subr.bf16.mxu0 0
        %1084 = vmatpush1.bf16.msra.mxu0 0
        %1085 = vmatprep.subr.bf16.mxu0 0
        %1086 = vmatpush1.bf16.msra.mxu0 0
        %1087 = vmatprep.subr.bf16.mxu0 0
        %1088 = vmatpush1.bf16.msra.mxu0 0
        %1089 = vmatprep.subr.bf16.mxu0 0
        %1090 = vmatpush1.bf16.msra.mxu0 0
        %1091 = vmatprep.subr.bf16.mxu0 0
        %1092 = vmatpush1.bf16.msra.mxu0 0
        %1093 = vmatprep.subr.bf16.mxu0 0
        %1094 = vmatpush1.bf16.msra.mxu0 0
        %1095 = vmatprep.subr.bf16.mxu0 0
        %1096 = vmatpush1.bf16.msra.mxu0 0
        %1097 = vmatprep.subr.bf16.mxu0 0
        %1098 = vmatpush1.bf16.msra.mxu0 0
        %1099 = vmatprep.subr.bf16.mxu0 0
        %1100 = vmatpush1.bf16.msra.mxu0 0
        %1101 = vmatprep.subr.bf16.mxu0 0
        %1102 = vmatpush1.bf16.msra.mxu0 0
        %1103 = vmatprep.subr.bf16.mxu0 0
        %1104 = vmatpush1.bf16.msra.mxu0 0
        %1105 = vmatprep.mubr.bf16.mxu0 0
        %1106 = vmatmul.mubr.bf16.gmra.mrb[0].mxu0 %v603
        %v1107 = vpop.f32.mrb[0].mxu0
        %v1108 = vadd.f32 0.0, %v1107
        %v1109 = vpop.f32.mrb[0].mxu0
        %v1110 = vpop.f32.mrb[0].mxu0
        %v1111 = vpop.f32.mrb[0].mxu0
        %1112 = vdwg.mxu0
        %v1117 = vunpack.c.l.b16 %v581
        %v1118 = vunpack.c.l.b16 %v582
        %v1119 = vunpack.c.l.b16 %v583
        %v1120 = vunpack.c.l.b16 %v584
        %v1121 = vpack.c.b16 %v1118, %v1117
        %v1122 = vpack.c.b16 %v1120, %v1119
        %1125 = vmatprep.subr.bf16.mxu0 0
        %1126 = vmatpush1.bf16.msra.mxu0 %v1121
        %1127 = vmatprep.subr.bf16.mxu0 0
        %1128 = vmatpush1.bf16.msra.mxu0 %v1122
        %1129 = vmatprep.subr.bf16.mxu0 0
        %1130 = vmatpush1.bf16.msra.mxu0 0
        %1131 = vmatprep.subr.bf16.mxu0 0
        %1132 = vmatpush1.bf16.msra.mxu0 0
        %1133 = vmatprep.subr.bf16.mxu0 0
        %1134 = vmatpush1.bf16.msra.mxu0 0
        %1135 = vmatprep.subr.bf16.mxu0 0
        %1136 = vmatpush1.bf16.msra.mxu0 0
        %1137 = vmatprep.subr.bf16.mxu0 0
        %1138 = vmatpush1.bf16.msra.mxu0 0
        %1139 = vmatprep.subr.bf16.mxu0 0
        %1140 = vmatpush1.bf16.msra.mxu0 0
        %1141 = vmatprep.subr.bf16.mxu0 0
        %1142 = vmatpush1.bf16.msra.mxu0 0
        %1143 = vmatprep.subr.bf16.mxu0 0
        %1144 = vmatpush1.bf16.msra.mxu0 0
        %1145 = vmatprep.subr.bf16.mxu0 0
        %1146 = vmatpush1.bf16.msra.mxu0 0
        %1147 = vmatprep.subr.bf16.mxu0 0
        %1148 = vmatpush1.bf16.msra.mxu0 0
        %1149 = vmatprep.subr.bf16.mxu0 0
        %1150 = vmatpush1.bf16.msra.mxu0 0
        %1151 = vmatprep.subr.bf16.mxu0 0
        %1152 = vmatpush1.bf16.msra.mxu0 0
        %1153 = vmatprep.subr.bf16.mxu0 0
        %1154 = vmatpush1.bf16.msra.mxu0 0
        %1155 = vmatprep.subr.bf16.mxu0 0
        %1156 = vmatpush1.bf16.msra.mxu0 0
        %1157 = vmatprep.mubr.bf16.mxu0 0
        %1158 = vmatmul.mubr.bf16.gmra.mrb[0].mxu0 %v603
        %v1159 = vpop.f32.mrb[0].mxu0
        %v1160 = vadd.f32 0.0, %v1159
        %v1161 = vpop.f32.mrb[0].mxu0
        %v1162 = vpop.f32.mrb[0].mxu0
        %v1163 = vpop.f32.mrb[0].mxu0
        %1164 = vdwg.mxu0
        %v1169 = vunpack.c.l.b16 %v585
        %v1170 = vunpack.c.l.b16 %v586
        %v1171 = vunpack.c.l.b16 %v587
        %v1172 = vunpack.c.l.b16 %v588
        %v1173 = vpack.c.b16 %v1170, %v1169
        %v1174 = vpack.c.b16 %v1172, %v1171
        %1177 = vmatprep.subr.bf16.mxu0 0
        %1178 = vmatpush1.bf16.msra.mxu0 %v1173
        %1179 = vmatprep.subr.bf16.mxu0 0
        %1180 = vmatpush1.bf16.msra.mxu0 %v1174
        %1181 = vmatprep.subr.bf16.mxu0 0
        %1182 = vmatpush1.bf16.msra.mxu0 0
        %1183 = vmatprep.subr.bf16.mxu0 0
        %1184 = vmatpush1.bf16.msra.mxu0 0
        %1185 = vmatprep.subr.bf16.mxu0 0
        %1186 = vmatpush1.bf16.msra.mxu0 0
        %1187 = vmatprep.subr.bf16.mxu0 0
        %1188 = vmatpush1.bf16.msra.mxu0 0
        %1189 = vmatprep.subr.bf16.mxu0 0
        %1190 = vmatpush1.bf16.msra.mxu0 0
        %1191 = vmatprep.subr.bf16.mxu0 0
        %1192 = vmatpush1.bf16.msra.mxu0 0
        %1193 = vmatprep.subr.bf16.mxu0 0
        %1194 = vmatpush1.bf16.msra.mxu0 0
        %1195 = vmatprep.subr.bf16.mxu0 0
        %1196 = vmatpush1.bf16.msra.mxu0 0
        %1197 = vmatprep.subr.bf16.mxu0 0
        %1198 = vmatpush1.bf16.msra.mxu0 0
        %1199 = vmatprep.subr.bf16.mxu0 0
        %1200 = vmatpush1.bf16.msra.mxu0 0
        %1201 = vmatprep.subr.bf16.mxu0 0
        %1202 = vmatpush1.bf16.msra.mxu0 0
        %1203 = vmatprep.subr.bf16.mxu0 0
        %1204 = vmatpush1.bf16.msra.mxu0 0
        %1205 = vmatprep.subr.bf16.mxu0 0
        %1206 = vmatpush1.bf16.msra.mxu0 0
        %1207 = vmatprep.subr.bf16.mxu0 0
        %1208 = vmatpush1.bf16.msra.mxu0 0
        %1209 = vmatprep.mubr.bf16.mxu0 0
        %1210 = vmatmul.mubr.bf16.gmra.mrb[0].mxu0 %v603
        %v1211 = vpop.f32.mrb[0].mxu0
        %v1212 = vadd.f32 0.0, %v1211
        %v1213 = vpop.f32.mrb[0].mxu0
        %v1214 = vpop.f32.mrb[0].mxu0
        %v1215 = vpop.f32.mrb[0].mxu0
        %1216 = vdwg.mxu0
        %v1217 = vld [vmem:[%s5] sm:$0xf]
        %v1218 = vld [vmem:[%s5 + $0x4] sm:$0xf]
        %v1219 = vld [vmem:[%s5 + $0x8] sm:$0xf]
        %v1220 = vld [vmem:[%s5 + $0xc] sm:$0xf]
        %v1221 = vld [vmem:[%s6] sm:$0x1]
        %v1222 = vpack.c.bf16 %v640, %v640
        %v1223 = vpack.c.bf16 %v692, %v692
        %v1224 = vpack.c.bf16 %v744, %v744
        %v1225 = vpack.c.bf16 %v796, %v796
        %v1226 = vpack.c.bf16 %v848, %v848
        %v1227 = vpack.c.bf16 %v900, %v900
        %v1228 = vpack.c.bf16 %v952, %v952
        %v1229 = vpack.c.bf16 %v1004, %v1004
        %vm1230 = vcmask 64512
        %v1232 = vsel %vm1230, %v1222, 0
        %v1235 = vsel %vm1230, %v1226, 0
        %1237 = vmatprep.subr.bf16.mxu0 0
        %1238 = vmatpush1.bf16.xpose.msra.mxu0 %v1235
        %1239 = vmatprep.subr.bf16.mxu0 0
        %1240 = vmatpush1.bf16.xpose.msra.mxu0 0
        %1241 = vmatprep.subr.bf16.mxu0 0
        %1242 = vmatpush1.bf16.xpose.msra.mxu0 0
        %1243 = vmatprep.subr.bf16.mxu0 0
        %1244 = vmatpush1.bf16.xpose.msra.mxu0 0
        %1245 = vmatprep.subr.bf16.mxu0 0
        %1246 = vmatpush1.bf16.xpose.msra.mxu0 0
        %1247 = vmatprep.subr.bf16.mxu0 0
        %1248 = vmatpush1.bf16.xpose.msra.mxu0 0
        %1249 = vmatprep.subr.bf16.mxu0 0
        %1250 = vmatpush1.bf16.xpose.msra.mxu0 0
        %1251 = vmatprep.subr.bf16.mxu0 0
        %1252 = vmatpush1.bf16.xpose.msra.mxu0 0
        %1253 = vmatprep.subr.bf16.mxu0 0
        %1254 = vmatpush1.bf16.xpose.msra.mxu0 0
        %1255 = vmatprep.subr.bf16.mxu0 0
        %1256 = vmatpush1.bf16.xpose.msra.mxu0 0
        %1257 = vmatprep.subr.bf16.mxu0 0
        %1258 = vmatpush1.bf16.xpose.msra.mxu0 0
        %1259 = vmatprep.subr.bf16.mxu0 0
        %1260 = vmatpush1.bf16.xpose.msra.mxu0 0
        %1261 = vmatprep.subr.bf16.mxu0 0
        %1262 = vmatpush1.bf16.xpose.msra.mxu0 0
        %1263 = vmatprep.subr.bf16.mxu0 0
        %1264 = vmatpush1.bf16.xpose.msra.mxu0 0
        %1265 = vmatprep.subr.bf16.mxu0 0
        %1266 = vmatpush1.bf16.xpose.msra.mxu0 0
        %1267 = vmatprep.subr.bf16.mxu0 0
        %1268 = vmatpush1.bf16.xpose.msra.mxu0 0
        %1269 = vmatprep.mubr.bf16.mxu0 0
        %1270 = vmatmul.mubr.bf16.gmra.mrb[0].mxu0 %v1232
        %v1271 = vpop.f32.mrb[0].mxu0
        %v1272 = vadd.f32 0.0, %v1271
        %v1273 = vpop.f32.mrb[0].mxu0
        %v1274 = vpop.f32.mrb[0].mxu0
        %v1275 = vpop.f32.mrb[0].mxu0
        %1276 = vdwg.mxu0
        %v1278 = vsel %vm1230, %v1223, 0
        %v1281 = vsel %vm1230, %v1227, 0
        %1283 = vmatprep.subr.bf16.mxu0 0
        %1284 = vmatpush1.bf16.xpose.msra.mxu0 %v1281
        %1285 = vmatprep.subr.bf16.mxu0 0
        %1286 = vmatpush1.bf16.xpose.msra.mxu0 0
        %1287 = vmatprep.subr.bf16.mxu0 0
        %1288 = vmatpush1.bf16.xpose.msra.mxu0 0
        %1289 = vmatprep.subr.bf16.mxu0 0
        %1290 = vmatpush1.bf16.xpose.msra.mxu0 0
        %1291 = vmatprep.subr.bf16.mxu0 0
        %1292 = vmatpush1.bf16.xpose.msra.mxu0 0
        %1293 = vmatprep.subr.bf16.mxu0 0
        %1294 = vmatpush1.bf16.xpose.msra.mxu0 0
        %1295 = vmatprep.subr.bf16.mxu0 0
        %1296 = vmatpush1.bf16.xpose.msra.mxu0 0
        %1297 = vmatprep.subr.bf16.mxu0 0
        %1298 = vmatpush1.bf16.xpose.msra.mxu0 0
        %1299 = vmatprep.subr.bf16.mxu0 0
        %1300 = vmatpush1.bf16.xpose.msra.mxu0 0
        %1301 = vmatprep.subr.bf16.mxu0 0
        %1302 = vmatpush1.bf16.xpose.msra.mxu0 0
        %1303 = vmatprep.subr.bf16.mxu0 0
        %1304 = vmatpush1.bf16.xpose.msra.mxu0 0
        %1305 = vmatprep.subr.bf16.mxu0 0
        %1306 = vmatpush1.bf16.xpose.msra.mxu0 0
        %1307 = vmatprep.subr.bf16.mxu0 0
        %1308 = vmatpush1.bf16.xpose.msra.mxu0 0
        %1309 = vmatprep.subr.bf16.mxu0 0
        %1310 = vmatpush1.bf16.xpose.msra.mxu0 0
        %1311 = vmatprep.subr.bf16.mxu0 0
        %1312 = vmatpush1.bf16.xpose.msra.mxu0 0
        %1313 = vmatprep.subr.bf16.mxu0 0
        %1314 = vmatpush1.bf16.xpose.msra.mxu0 0
        %1315 = vmatprep.mubr.bf16.mxu0 0
        %1316 = vmatmul.mubr.bf16.gmra.mrb[0].mxu0 %v1278
        %v1317 = vpop.f32.mrb[0].mxu0
        %v1318 = vadd.f32 0.0, %v1317
        %v1319 = vpop.f32.mrb[0].mxu0
        %v1320 = vpop.f32.mrb[0].mxu0
        %v1321 = vpop.f32.mrb[0].mxu0
        %1322 = vdwg.mxu0
        %v1324 = vsel %vm1230, %v1224, 0
        %v1327 = vsel %vm1230, %v1228, 0
        %1329 = vmatprep.subr.bf16.mxu0 0
        %1330 = vmatpush1.bf16.xpose.msra.mxu0 %v1327
        %1331 = vmatprep.subr.bf16.mxu0 0
        %1332 = vmatpush1.bf16.xpose.msra.mxu0 0
        %1333 = vmatprep.subr.bf16.mxu0 0
        %1334 = vmatpush1.bf16.xpose.msra.mxu0 0
        %1335 = vmatprep.subr.bf16.mxu0 0
        %1336 = vmatpush1.bf16.xpose.msra.mxu0 0
        %1337 = vmatprep.subr.bf16.mxu0 0
        %1338 = vmatpush1.bf16.xpose.msra.mxu0 0
        %1339 = vmatprep.subr.bf16.mxu0 0
        %1340 = vmatpush1.bf16.xpose.msra.mxu0 0
        %1341 = vmatprep.subr.bf16.mxu0 0
        %1342 = vmatpush1.bf16.xpose.msra.mxu0 0
        %1343 = vmatprep.subr.bf16.mxu0 0
        %1344 = vmatpush1.bf16.xpose.msra.mxu0 0
        %1345 = vmatprep.subr.bf16.mxu0 0
        %1346 = vmatpush1.bf16.xpose.msra.mxu0 0
        %1347 = vmatprep.subr.bf16.mxu0 0
        %1348 = vmatpush1.bf16.xpose.msra.mxu0 0
        %1349 = vmatprep.subr.bf16.mxu0 0
        %1350 = vmatpush1.bf16.xpose.msra.mxu0 0
        %1351 = vmatprep.subr.bf16.mxu0 0
        %1352 = vmatpush1.bf16.xpose.msra.mxu0 0
        %1353 = vmatprep.subr.bf16.mxu0 0
        %1354 = vmatpush1.bf16.xpose.msra.mxu0 0
        %1355 = vmatprep.subr.bf16.mxu0 0
        %1356 = vmatpush1.bf16.xpose.msra.mxu0 0
        %1357 = vmatprep.subr.bf16.mxu0 0
        %1358 = vmatpush1.bf16.xpose.msra.mxu0 0
        %1359 = vmatprep.subr.bf16.mxu0 0
        %1360 = vmatpush1.bf16.xpose.msra.mxu0 0
        %1361 = vmatprep.mubr.bf16.mxu0 0
        %1362 = vmatmul.mubr.bf16.gmra.mrb[0].mxu0 %v1324
        %v1363 = vpop.f32.mrb[0].mxu0
        %v1364 = vadd.f32 0.0, %v1363
        %v1365 = vpop.f32.mrb[0].mxu0
        %v1366 = vpop.f32.mrb[0].mxu0
        %v1367 = vpop.f32.mrb[0].mxu0
        %1368 = vdwg.mxu0
        %v1370 = vsel %vm1230, %v1225, 0
        %v1373 = vsel %vm1230, %v1229, 0
        %1375 = vmatprep.subr.bf16.mxu0 0
        %1376 = vmatpush1.bf16.xpose.msra.mxu0 %v1373
        %1377 = vmatprep.subr.bf16.mxu0 0
        %1378 = vmatpush1.bf16.xpose.msra.mxu0 0
        %1379 = vmatprep.subr.bf16.mxu0 0
        %1380 = vmatpush1.bf16.xpose.msra.mxu0 0
        %1381 = vmatprep.subr.bf16.mxu0 0
        %1382 = vmatpush1.bf16.xpose.msra.mxu0 0
        %1383 = vmatprep.subr.bf16.mxu0 0
        %1384 = vmatpush1.bf16.xpose.msra.mxu0 0
        %1385 = vmatprep.subr.bf16.mxu0 0
        %1386 = vmatpush1.bf16.xpose.msra.mxu0 0
        %1387 = vmatprep.subr.bf16.mxu0 0
        %1388 = vmatpush1.bf16.xpose.msra.mxu0 0
        %1389 = vmatprep.subr.bf16.mxu0 0
        %1390 = vmatpush1.bf16.xpose.msra.mxu0 0
        %1391 = vmatprep.subr.bf16.mxu0 0
        %1392 = vmatpush1.bf16.xpose.msra.mxu0 0
        %1393 = vmatprep.subr.bf16.mxu0 0
        %1394 = vmatpush1.bf16.xpose.msra.mxu0 0
        %1395 = vmatprep.subr.bf16.mxu0 0
        %1396 = vmatpush1.bf16.xpose.msra.mxu0 0
        %1397 = vmatprep.subr.bf16.mxu0 0
        %1398 = vmatpush1.bf16.xpose.msra.mxu0 0
        %1399 = vmatprep.subr.bf16.mxu0 0
        %1400 = vmatpush1.bf16.xpose.msra.mxu0 0
        %1401 = vmatprep.subr.bf16.mxu0 0
        %1402 = vmatpush1.bf16.xpose.msra.mxu0 0
        %1403 = vmatprep.subr.bf16.mxu0 0
        %1404 = vmatpush1.bf16.xpose.msra.mxu0 0
        %1405 = vmatprep.subr.bf16.mxu0 0
        %1406 = vmatpush1.bf16.xpose.msra.mxu0 0
        %1407 = vmatprep.mubr.bf16.mxu0 0
        %1408 = vmatmul.mubr.bf16.gmra.mrb[0].mxu0 %v1370
        %v1409 = vpop.f32.mrb[0].mxu0
        %v1410 = vadd.f32 0.0, %v1409
        %v1411 = vpop.f32.mrb[0].mxu0
        %v1412 = vpop.f32.mrb[0].mxu0
        %v1413 = vpop.f32.mrb[0].mxu0
        %1414 = vdwg.mxu0
        %v1415 = vsel %vm1230, %v1272, -inf
        %1416 = vmax.xlane.f32.xlu0 %v1415
        %v1417 = vpop.xlane.xlu0 %1416
        %v1418 = vsel %vm1230, %v1318, -inf
        %1419 = vmax.xlane.f32.xlu0 %v1418
        %v1420 = vpop.xlane.xlu0 %1419
        %v1421 = vsel %vm1230, %v1364, -inf
        %1422 = vmax.xlane.f32.xlu0 %v1421
        %v1423 = vpop.xlane.xlu0 %1422
        %v1424 = vsel %vm1230, %v1410, -inf
        %1425 = vmax.xlane.f32.xlu0 %v1424
        %v1426 = vpop.xlane.xlu0 %1425
        %v1427 = vsub.f32 %v1272, %v1417
        %v1428 = vsub.f32 %v1318, %v1420
        %v1429 = vsub.f32 %v1364, %v1423
        %v1430 = vsub.f32 %v1410, %v1426
        %v1431 = vmul.f32 %v1427, 1.442695
        %v1432 = vpow.pop %v1431
        %v1433 = vmul.f32 %v1428, 1.442695
        %v1434 = vpow.pop %v1433
        %v1435 = vmul.f32 %v1429, 1.442695
        %v1436 = vpow.pop %v1435
        %v1437 = vmul.f32 %v1430, 1.442695
        %v1438 = vpow.pop %v1437
        %v1439 = vsel %vm1230, %v1432, 0.0
        %1440 = vadd.xlane.f32.xlu0 %v1439
        %v1441 = vpop.xlane.xlu0 %1440
        %v1442 = vsel %vm1230, %v1434, 0.0
        %1443 = vadd.xlane.f32.xlu0 %v1442
        %v1444 = vpop.xlane.xlu0 %1443
        %v1445 = vsel %vm1230, %v1436, 0.0
        %1446 = vadd.xlane.f32.xlu0 %v1445
        %v1447 = vpop.xlane.xlu0 %1446
        %v1448 = vsel %vm1230, %v1438, 0.0
        %1449 = vadd.xlane.f32.xlu0 %v1448
        %v1450 = vpop.xlane.xlu0 %1449
        %v1451 = vrcp.pop %v1441
        %v1452 = vrcp.pop %v1444
        %v1453 = vrcp.pop %v1447
        %v1454 = vrcp.pop %v1450
        %v1455 = vmul.f32 %v1441, %v1451
        %v1456 = vmul.f32 %v1444, %v1452
        %v1457 = vmul.f32 %v1447, %v1453
        %v1458 = vmul.f32 %v1450, %v1454
        %v1459 = vsub.f32 2.0, %v1455
        %v1460 = vsub.f32 2.0, %v1456
        %v1461 = vsub.f32 2.0, %v1457
        %v1462 = vsub.f32 2.0, %v1458
        %v1463 = vmul.f32 %v1451, %v1459
        %v1464 = vmul.f32 %v1452, %v1460
        %v1465 = vmul.f32 %v1453, %v1461
        %v1466 = vmul.f32 %v1454, %v1462
        %v1467 = vmul.f32 %v1432, %v1463
        %v1468 = vmul.f32 %v1434, %v1464
        %v1469 = vmul.f32 %v1436, %v1465
        %v1470 = vmul.f32 %v1438, %v1466
        %v1471 = vpack.c.bf16 %v1467, %v1467
        %v1472 = vpack.c.bf16 %v1468, %v1468
        %v1473 = vpack.c.bf16 %v1469, %v1469
        %v1474 = vpack.c.bf16 %v1470, %v1470
        %v1475 = vpack.c.bf16 %v1056, %v1056
        %v1476 = vpack.c.bf16 %v1108, %v1108
        %v1477 = vpack.c.bf16 %v1160, %v1160
        %v1478 = vpack.c.bf16 %v1212, %v1212
        %v1480 = vsel %vm1230, %v1471, 0
        %vm1482 = vcmask 1043456
        %v1484 = vsel %vm1482, %v1475, 0
        %1486 = vmatprep.subr.bf16.mxu0 0
        %1487 = vmatpush1.bf16.msra.mxu0 %v1484
        %1488 = vmatprep.subr.bf16.mxu0 0
        %1489 = vmatpush1.bf16.msra.mxu0 0
        %1490 = vmatprep.subr.bf16.mxu0 0
        %1491 = vmatpush1.bf16.msra.mxu0 0
        %1492 = vmatprep.subr.bf16.mxu0 0
        %1493 = vmatpush1.bf16.msra.mxu0 0
        %1494 = vmatprep.subr.bf16.mxu0 0
        %1495 = vmatpush1.bf16.msra.mxu0 0
        %1496 = vmatprep.subr.bf16.mxu0 0
        %1497 = vmatpush1.bf16.msra.mxu0 0
        %1498 = vmatprep.subr.bf16.mxu0 0
        %1499 = vmatpush1.bf16.msra.mxu0 0
        %1500 = vmatprep.subr.bf16.mxu0 0
        %1501 = vmatpush1.bf16.msra.mxu0 0
        %1502 = vmatprep.subr.bf16.mxu0 0
        %1503 = vmatpush1.bf16.msra.mxu0 0
        %1504 = vmatprep.subr.bf16.mxu0 0
        %1505 = vmatpush1.bf16.msra.mxu0 0
        %1506 = vmatprep.subr.bf16.mxu0 0
        %1507 = vmatpush1.bf16.msra.mxu0 0
        %1508 = vmatprep.subr.bf16.mxu0 0
        %1509 = vmatpush1.bf16.msra.mxu0 0
        %1510 = vmatprep.subr.bf16.mxu0 0
        %1511 = vmatpush1.bf16.msra.mxu0 0
        %1512 = vmatprep.subr.bf16.mxu0 0
        %1513 = vmatpush1.bf16.msra.mxu0 0
        %1514 = vmatprep.subr.bf16.mxu0 0
        %1515 = vmatpush1.bf16.msra.mxu0 0
        %1516 = vmatprep.subr.bf16.mxu0 0
        %1517 = vmatpush1.bf16.msra.mxu0 0
        %1518 = vmatprep.mubr.bf16.mxu0 0
        %1519 = vmatmul.mubr.bf16.gmra.mrb[0].mxu0 %v1480
        %v1520 = vpop.f32.mrb[0].mxu0
        %v1521 = vadd.f32 0.0, %v1520
        %v1522 = vpop.f32.mrb[0].mxu0
        %v1523 = vpop.f32.mrb[0].mxu0
        %v1524 = vpop.f32.mrb[0].mxu0
        %1525 = vdwg.mxu0
        %v1527 = vsel %vm1230, %v1472, 0
        %v1530 = vsel %vm1482, %v1476, 0
        %1532 = vmatprep.subr.bf16.mxu0 0
        %1533 = vmatpush1.bf16.msra.mxu0 %v1530
        %1534 = vmatprep.subr.bf16.mxu0 0
        %1535 = vmatpush1.bf16.msra.mxu0 0
        %1536 = vmatprep.subr.bf16.mxu0 0
        %1537 = vmatpush1.bf16.msra.mxu0 0
        %1538 = vmatprep.subr.bf16.mxu0 0
        %1539 = vmatpush1.bf16.msra.mxu0 0
        %1540 = vmatprep.subr.bf16.mxu0 0
        %1541 = vmatpush1.bf16.msra.mxu0 0
        %1542 = vmatprep.subr.bf16.mxu0 0
        %1543 = vmatpush1.bf16.msra.mxu0 0
        %1544 = vmatprep.subr.bf16.mxu0 0
        %1545 = vmatpush1.bf16.msra.mxu0 0
        %1546 = vmatprep.subr.bf16.mxu0 0
        %1547 = vmatpush1.bf16.msra.mxu0 0
        %1548 = vmatprep.subr.bf16.mxu0 0
        %1549 = vmatpush1.bf16.msra.mxu0 0
        %1550 = vmatprep.subr.bf16.mxu0 0
        %1551 = vmatpush1.bf16.msra.mxu0 0
        %1552 = vmatprep.subr.bf16.mxu0 0
        %1553 = vmatpush1.bf16.msra.mxu0 0
        %1554 = vmatprep.subr.bf16.mxu0 0
        %1555 = vmatpush1.bf16.msra.mxu0 0
        %1556 = vmatprep.subr.bf16.mxu0 0
        %1557 = vmatpush1.bf16.msra.mxu0 0
        %1558 = vmatprep.subr.bf16.mxu0 0
        %1559 = vmatpush1.bf16.msra.mxu0 0
        %1560 = vmatprep.subr.bf16.mxu0 0
        %1561 = vmatpush1.bf16.msra.mxu0 0
        %1562 = vmatprep.subr.bf16.mxu0 0
        %1563 = vmatpush1.bf16.msra.mxu0 0
        %1564 = vmatprep.mubr.bf16.mxu0 0
        %1565 = vmatmul.mubr.bf16.gmra.mrb[0].mxu0 %v1527
        %v1566 = vpop.f32.mrb[0].mxu0
        %v1567 = vadd.f32 0.0, %v1566
        %v1568 = vpop.f32.mrb[0].mxu0
        %v1569 = vpop.f32.mrb[0].mxu0
        %v1570 = vpop.f32.mrb[0].mxu0
        %1571 = vdwg.mxu0
        %v1573 = vsel %vm1230, %v1473, 0
        %v1576 = vsel %vm1482, %v1477, 0
        %1578 = vmatprep.subr.bf16.mxu0 0
        %1579 = vmatpush1.bf16.msra.mxu0 %v1576
        %1580 = vmatprep.subr.bf16.mxu0 0
        %1581 = vmatpush1.bf16.msra.mxu0 0
        %1582 = vmatprep.subr.bf16.mxu0 0
        %1583 = vmatpush1.bf16.msra.mxu0 0
        %1584 = vmatprep.subr.bf16.mxu0 0
        %1585 = vmatpush1.bf16.msra.mxu0 0
        %1586 = vmatprep.subr.bf16.mxu0 0
        %1587 = vmatpush1.bf16.msra.mxu0 0
        %1588 = vmatprep.subr.bf16.mxu0 0
        %1589 = vmatpush1.bf16.msra.mxu0 0
        %1590 = vmatprep.subr.bf16.mxu0 0
        %1591 = vmatpush1.bf16.msra.mxu0 0
        %1592 = vmatprep.subr.bf16.mxu0 0
        %1593 = vmatpush1.bf16.msra.mxu0 0
        %1594 = vmatprep.subr.bf16.mxu0 0
        %1595 = vmatpush1.bf16.msra.mxu0 0
        %1596 = vmatprep.subr.bf16.mxu0 0
        %1597 = vmatpush1.bf16.msra.mxu0 0
        %1598 = vmatprep.subr.bf16.mxu0 0
        %1599 = vmatpush1.bf16.msra.mxu0 0
        %1600 = vmatprep.subr.bf16.mxu0 0
        %1601 = vmatpush1.bf16.msra.mxu0 0
        %1602 = vmatprep.subr.bf16.mxu0 0
        %1603 = vmatpush1.bf16.msra.mxu0 0
        %1604 = vmatprep.subr.bf16.mxu0 0
        %1605 = vmatpush1.bf16.msra.mxu0 0
        %1606 = vmatprep.subr.bf16.mxu0 0
        %1607 = vmatpush1.bf16.msra.mxu0 0
        %1608 = vmatprep.subr.bf16.mxu0 0
        %1609 = vmatpush1.bf16.msra.mxu0 0
        %1610 = vmatprep.mubr.bf16.mxu0 0
        %1611 = vmatmul.mubr.bf16.gmra.mrb[0].mxu0 %v1573
        %v1612 = vpop.f32.mrb[0].mxu0
        %v1613 = vadd.f32 0.0, %v1612
        %v1614 = vpop.f32.mrb[0].mxu0
        %v1615 = vpop.f32.mrb[0].mxu0
        %v1616 = vpop.f32.mrb[0].mxu0
        %1617 = vdwg.mxu0
        %v1619 = vsel %vm1230, %v1474, 0
        %v1622 = vsel %vm1482, %v1478, 0
        %1624 = vmatprep.subr.bf16.mxu0 0
        %1625 = vmatpush1.bf16.msra.mxu0 %v1622
        %1626 = vmatprep.subr.bf16.mxu0 0
        %1627 = vmatpush1.bf16.msra.mxu0 0
        %1628 = vmatprep.subr.bf16.mxu0 0
        %1629 = vmatpush1.bf16.msra.mxu0 0
        %1630 = vmatprep.subr.bf16.mxu0 0
        %1631 = vmatpush1.bf16.msra.mxu0 0
        %1632 = vmatprep.subr.bf16.mxu0 0
        %1633 = vmatpush1.bf16.msra.mxu0 0
        %1634 = vmatprep.subr.bf16.mxu0 0
        %1635 = vmatpush1.bf16.msra.mxu0 0
        %1636 = vmatprep.subr.bf16.mxu0 0
        %1637 = vmatpush1.bf16.msra.mxu0 0
        %1638 = vmatprep.subr.bf16.mxu0 0
        %1639 = vmatpush1.bf16.msra.mxu0 0
        %1640 = vmatprep.subr.bf16.mxu0 0
        %1641 = vmatpush1.bf16.msra.mxu0 0
        %1642 = vmatprep.subr.bf16.mxu0 0
        %1643 = vmatpush1.bf16.msra.mxu0 0
        %1644 = vmatprep.subr.bf16.mxu0 0
        %1645 = vmatpush1.bf16.msra.mxu0 0
        %1646 = vmatprep.subr.bf16.mxu0 0
        %1647 = vmatpush1.bf16.msra.mxu0 0
        %1648 = vmatprep.subr.bf16.mxu0 0
        %1649 = vmatpush1.bf16.msra.mxu0 0
        %1650 = vmatprep.subr.bf16.mxu0 0
        %1651 = vmatpush1.bf16.msra.mxu0 0
        %1652 = vmatprep.subr.bf16.mxu0 0
        %1653 = vmatpush1.bf16.msra.mxu0 0
        %1654 = vmatprep.subr.bf16.mxu0 0
        %1655 = vmatpush1.bf16.msra.mxu0 0
        %1656 = vmatprep.mubr.bf16.mxu0 0
        %1657 = vmatmul.mubr.bf16.gmra.mrb[0].mxu0 %v1619
        %v1658 = vpop.f32.mrb[0].mxu0
        %v1659 = vadd.f32 0.0, %v1658
        %v1660 = vpop.f32.mrb[0].mxu0
        %v1661 = vpop.f32.mrb[0].mxu0
        %v1662 = vpop.f32.mrb[0].mxu0
        %1663 = vdwg.mxu0
        %v1664 = vpack.c.bf16 %v1521, %v1521
        %v1665 = vpack.c.bf16 %v1567, %v1567
        %v1666 = vpack.c.bf16 %v1613, %v1613
        %v1667 = vpack.c.bf16 %v1659, %v1659
        %v1669 = vsel %vm1230, %v1664, 0
        %v1672 = vsel %vm1482, %v1217, 0
        %1674 = vmatprep.subr.bf16.mxu0 0
        %1675 = vmatpush1.bf16.msra.mxu0 %v1672
        %1676 = vmatprep.subr.bf16.mxu0 0
        %1677 = vmatpush1.bf16.msra.mxu0 0
        %1678 = vmatprep.subr.bf16.mxu0 0
        %1679 = vmatpush1.bf16.msra.mxu0 0
        %1680 = vmatprep.subr.bf16.mxu0 0
        %1681 = vmatpush1.bf16.msra.mxu0 0
        %1682 = vmatprep.subr.bf16.mxu0 0
        %1683 = vmatpush1.bf16.msra.mxu0 0
        %1684 = vmatprep.subr.bf16.mxu0 0
        %1685 = vmatpush1.bf16.msra.mxu0 0
        %1686 = vmatprep.subr.bf16.mxu0 0
        %1687 = vmatpush1.bf16.msra.mxu0 0
        %1688 = vmatprep.subr.bf16.mxu0 0
        %1689 = vmatpush1.bf16.msra.mxu0 0
        %1690 = vmatprep.subr.bf16.mxu0 0
        %1691 = vmatpush1.bf16.msra.mxu0 0
        %1692 = vmatprep.subr.bf16.mxu0 0
        %1693 = vmatpush1.bf16.msra.mxu0 0
        %1694 = vmatprep.subr.bf16.mxu0 0
        %1695 = vmatpush1.bf16.msra.mxu0 0
        %1696 = vmatprep.subr.bf16.mxu0 0
        %1697 = vmatpush1.bf16.msra.mxu0 0
        %1698 = vmatprep.subr.bf16.mxu0 0
        %1699 = vmatpush1.bf16.msra.mxu0 0
        %1700 = vmatprep.subr.bf16.mxu0 0
        %1701 = vmatpush1.bf16.msra.mxu0 0
        %1702 = vmatprep.subr.bf16.mxu0 0
        %1703 = vmatpush1.bf16.msra.mxu0 0
        %1704 = vmatprep.subr.bf16.mxu0 0
        %1705 = vmatpush1.bf16.msra.mxu0 0
        %1706 = vmatprep.mubr.bf16.mxu0 0
        %1707 = vmatmul.mubr.bf16.gmra.mrb[0].mxu0 %v1669
        %v1708 = vpop.f32.mrb[0].mxu0
        %v1709 = vadd.f32 0.0, %v1708
        %v1710 = vpop.f32.mrb[0].mxu0
        %v1711 = vpop.f32.mrb[0].mxu0
        %v1712 = vpop.f32.mrb[0].mxu0
        %1713 = vdwg.mxu0
        %v1715 = vsel %vm1230, %v1665, 0
        %v1718 = vsel %vm1482, %v1218, 0
        %1720 = vmatprep.subr.bf16.mxu0 0
        %1721 = vmatpush1.bf16.msra.mxu0 %v1718
        %1722 = vmatprep.subr.bf16.mxu0 0
        %1723 = vmatpush1.bf16.msra.mxu0 0
        %1724 = vmatprep.subr.bf16.mxu0 0
        %1725 = vmatpush1.bf16.msra.mxu0 0
        %1726 = vmatprep.subr.bf16.mxu0 0
        %1727 = vmatpush1.bf16.msra.mxu0 0
        %1728 = vmatprep.subr.bf16.mxu0 0
        %1729 = vmatpush1.bf16.msra.mxu0 0
        %1730 = vmatprep.subr.bf16.mxu0 0
        %1731 = vmatpush1.bf16.msra.mxu0 0
        %1732 = vmatprep.subr.bf16.mxu0 0
        %1733 = vmatpush1.bf16.msra.mxu0 0
        %1734 = vmatprep.subr.bf16.mxu0 0
        %1735 = vmatpush1.bf16.msra.mxu0 0
        %1736 = vmatprep.subr.bf16.mxu0 0
        %1737 = vmatpush1.bf16.msra.mxu0 0
        %1738 = vmatprep.subr.bf16.mxu0 0
        %1739 = vmatpush1.bf16.msra.mxu0 0
        %1740 = vmatprep.subr.bf16.mxu0 0
        %1741 = vmatpush1.bf16.msra.mxu0 0
        %1742 = vmatprep.subr.bf16.mxu0 0
        %1743 = vmatpush1.bf16.msra.mxu0 0
        %1744 = vmatprep.subr.bf16.mxu0 0
        %1745 = vmatpush1.bf16.msra.mxu0 0
        %1746 = vmatprep.subr.bf16.mxu0 0
        %1747 = vmatpush1.bf16.msra.mxu0 0
        %1748 = vmatprep.subr.bf16.mxu0 0
        %1749 = vmatpush1.bf16.msra.mxu0 0
        %1750 = vmatprep.subr.bf16.mxu0 0
        %1751 = vmatpush1.bf16.msra.mxu0 0
        %1752 = vmatprep.mubr.bf16.mxu0 0
        %1753 = vmatmul.mubr.bf16.gmra.mrb[0].mxu0 %v1715
        %v1754 = vpop.f32.mrb[0].mxu0
        %v1755 = vadd.f32 0.0, %v1754
        %v1756 = vpop.f32.mrb[0].mxu0
        %v1757 = vpop.f32.mrb[0].mxu0
        %v1758 = vpop.f32.mrb[0].mxu0
        %1759 = vdwg.mxu0
        %v1761 = vsel %vm1230, %v1666, 0
        %v1764 = vsel %vm1482, %v1219, 0
        %1766 = vmatprep.subr.bf16.mxu0 0
        %1767 = vmatpush1.bf16.msra.mxu0 %v1764
        %1768 = vmatprep.subr.bf16.mxu0 0
        %1769 = vmatpush1.bf16.msra.mxu0 0
        %1770 = vmatprep.subr.bf16.mxu0 0
        %1771 = vmatpush1.bf16.msra.mxu0 0
        %1772 = vmatprep.subr.bf16.mxu0 0
        %1773 = vmatpush1.bf16.msra.mxu0 0
        %1774 = vmatprep.subr.bf16.mxu0 0
        %1775 = vmatpush1.bf16.msra.mxu0 0
        %1776 = vmatprep.subr.bf16.mxu0 0
        %1777 = vmatpush1.bf16.msra.mxu0 0
        %1778 = vmatprep.subr.bf16.mxu0 0
        %1779 = vmatpush1.bf16.msra.mxu0 0
        %1780 = vmatprep.subr.bf16.mxu0 0
        %1781 = vmatpush1.bf16.msra.mxu0 0
        %1782 = vmatprep.subr.bf16.mxu0 0
        %1783 = vmatpush1.bf16.msra.mxu0 0
        %1784 = vmatprep.subr.bf16.mxu0 0
        %1785 = vmatpush1.bf16.msra.mxu0 0
        %1786 = vmatprep.subr.bf16.mxu0 0
        %1787 = vmatpush1.bf16.msra.mxu0 0
        %1788 = vmatprep.subr.bf16.mxu0 0
        %1789 = vmatpush1.bf16.msra.mxu0 0
        %1790 = vmatprep.subr.bf16.mxu0 0
        %1791 = vmatpush1.bf16.msra.mxu0 0
        %1792 = vmatprep.subr.bf16.mxu0 0
        %1793 = vmatpush1.bf16.msra.mxu0 0
        %1794 = vmatprep.subr.bf16.mxu0 0
        %1795 = vmatpush1.bf16.msra.mxu0 0
        %1796 = vmatprep.subr.bf16.mxu0 0
        %1797 = vmatpush1.bf16.msra.mxu0 0
        %1798 = vmatprep.mubr.bf16.mxu0 0
        %1799 = vmatmul.mubr.bf16.gmra.mrb[0].mxu0 %v1761
        %v1800 = vpop.f32.mrb[0].mxu0
        %v1801 = vadd.f32 0.0, %v1800
        %v1802 = vpop.f32.mrb[0].mxu0
        %v1803 = vpop.f32.mrb[0].mxu0
        %v1804 = vpop.f32.mrb[0].mxu0
        %1805 = vdwg.mxu0
        %v1807 = vsel %vm1230, %v1667, 0
        %v1810 = vsel %vm1482, %v1220, 0
        %1812 = vmatprep.subr.bf16.mxu0 0
        %1813 = vmatpush1.bf16.msra.mxu0 %v1810
        %1814 = vmatprep.subr.bf16.mxu0 0
        %1815 = vmatpush1.bf16.msra.mxu0 0
        %1816 = vmatprep.subr.bf16.mxu0 0
        %1817 = vmatpush1.bf16.msra.mxu0 0
        %1818 = vmatprep.subr.bf16.mxu0 0
        %1819 = vmatpush1.bf16.msra.mxu0 0
        %1820 = vmatprep.subr.bf16.mxu0 0
        %1821 = vmatpush1.bf16.msra.mxu0 0
        %1822 = vmatprep.subr.bf16.mxu0 0
        %1823 = vmatpush1.bf16.msra.mxu0 0
        %1824 = vmatprep.subr.bf16.mxu0 0
        %1825 = vmatpush1.bf16.msra.mxu0 0
        %1826 = vmatprep.subr.bf16.mxu0 0
        %1827 = vmatpush1.bf16.msra.mxu0 0
        %1828 = vmatprep.subr.bf16.mxu0 0
        %1829 = vmatpush1.bf16.msra.mxu0 0
        %1830 = vmatprep.subr.bf16.mxu0 0
        %1831 = vmatpush1.bf16.msra.mxu0 0
        %1832 = vmatprep.subr.bf16.mxu0 0
        %1833 = vmatpush1.bf16.msra.mxu0 0
        %1834 = vmatprep.subr.bf16.mxu0 0
        %1835 = vmatpush1.bf16.msra.mxu0 0
        %1836 = vmatprep.subr.bf16.mxu0 0
        %1837 = vmatpush1.bf16.msra.mxu0 0
        %1838 = vmatprep.subr.bf16.mxu0 0
        %1839 = vmatpush1.bf16.msra.mxu0 0
        %1840 = vmatprep.subr.bf16.mxu0 0
        %1841 = vmatpush1.bf16.msra.mxu0 0
        %1842 = vmatprep.subr.bf16.mxu0 0
        %1843 = vmatpush1.bf16.msra.mxu0 0
        %1844 = vmatprep.mubr.bf16.mxu0 0
        %1845 = vmatmul.mubr.bf16.gmra.mrb[0].mxu0 %v1807
        %v1846 = vpop.f32.mrb[0].mxu0
        %v1847 = vadd.f32 0.0, %v1846
        %v1848 = vpop.f32.mrb[0].mxu0
        %v1849 = vpop.f32.mrb[0].mxu0
        %v1850 = vpop.f32.mrb[0].mxu0
        %1851 = vdwg.mxu0
        %v1852 = vsel %vm516, %v1709, 0.0
        %v1853 = vsel %vm516, %v1755, 0.0
        %v1854 = vadd.f32 %v1852, %v1853
        %v1855 = vsel %vm516, %v1801, 0.0
        %v1856 = vadd.f32 %v1854, %v1855
        %v1857 = vsel %vm516, %v1847, 0.0
        %v1858 = vadd.f32 %v1856, %v1857
        %v1860 = vlaneseq
        %v1861 = vshrl.u32 %v1860, 7
        %v1862 = vsub.s32 0, %v1861
        %v1863 = vrot.slane %v1221, %v1862
        %v1865 = vadd.f32 %v1858, %v1863
        %v1866 = vadd.f32 %v1865, %v511
        %v1867 = vld [vmem:[%s2 + $0x1] sm:$0x1]
        %v1868 = vld [vmem:[%s3 + $0x1] sm:$0x1]
        %v1869 = vsel %vm516, %v1866, 0.0
        %1870 = vadd.xlane.f32.xlu0 %v1869
        %v1871 = vpop.xlane.xlu0 %1870
        %v1872 = vmul.f32 %v1871, %v520
        %v1873 = vsub.f32 %v1866, %v1872
        %v1874 = vmul.f32 %v1873, %v1873
        %v1875 = vsel %vm516, %v1874, 0.0
        %1876 = vadd.xlane.f32.xlu0 %v1875
        %v1877 = vpop.xlane.xlu0 %1876
        %v1878 = vmul.f32 %v1877, %v520
        %v1879 = vadd.f32 %v1878, 1e-12
        %v1880 = vrsqrt.pop %v1879
        %v1881 = vmul.f32 %v1873, %v1880
        %v1882 = vlaneseq
        %v1883 = vshrl.u32 %v1882, 7
        %v1884 = vsub.s32 0, %v1883
        %v1885 = vrot.slane %v1867, %v1884
        %v1886 = vmul.f32 %v1881, %v1885
        %v1887 = vlaneseq
        %v1888 = vshrl.u32 %v1887, 7
        %v1889 = vsub.s32 0, %v1888
        %v1890 = vrot.slane %v1868, %v1889
        %v1891 = vadd.f32 %v1886, %v1890
        %v1892 = vld [vmem:[%s7] sm:$0xf]
        %v1893 = vld [vmem:[%s7 + $0x4] sm:$0xf]
        %v1894 = vld [vmem:[%s7 + $0x8] sm:$0xf]
        %v1895 = vld [vmem:[%s7 + $0xc] sm:$0xf]
        %v1896 = vld [vmem:[%s7 + $0x10] sm:$0xf]
        %v1897 = vld [vmem:[%s7 + $0x14] sm:$0xf]
        %v1898 = vld [vmem:[%s7 + $0x18] sm:$0xf]
        %v1899 = vld [vmem:[%s7 + $0x1c] sm:$0xf]
        %v1900 = vld [vmem:[%s7 + $0x20] sm:$0xf]
        %v1901 = vld [vmem:[%s7 + $0x24] sm:$0xf]
        %v1902 = vld [vmem:[%s7 + $0x28] sm:$0xf]
        %v1903 = vld [vmem:[%s7 + $0x2c] sm:$0xf]
        %v1904 = vld [vmem:[%s7 + $0x30] sm:$0xf]
        %v1905 = vld [vmem:[%s7 + $0x34] sm:$0xf]
        %v1906 = vld [vmem:[%s7 + $0x38] sm:$0xf]
        %v1907 = vld [vmem:[%s7 + $0x3c] sm:$0xf]
        %v1908 = vpack.c.bf16 %v1891, %v1891
        %v1913 = vunpack.c.l.b16 %v1892
        %v1914 = vunpack.c.l.b16 %v1893
        %v1915 = vunpack.c.l.b16 %v1894
        %v1916 = vunpack.c.l.b16 %v1895
        %v1917 = vpack.c.b16 %v1914, %v1913
        %v1918 = vpack.c.b16 %v1916, %v1915
        %v1922 = vsel %vm516, %v1908, 0
        %1924 = vmatprep.subr.bf16.mxu0 0
        %1925 = vmatpush1.bf16.msra.mxu0 %v1917
        %1926 = vmatprep.subr.bf16.mxu0 0
        %1927 = vmatpush1.bf16.msra.mxu0 %v1918
        %1928 = vmatprep.subr.bf16.mxu0 0
        %1929 = vmatpush1.bf16.msra.mxu0 0
        %1930 = vmatprep.subr.bf16.mxu0 0
        %1931 = vmatpush1.bf16.msra.mxu0 0
        %1932 = vmatprep.subr.bf16.mxu0 0
        %1933 = vmatpush1.bf16.msra.mxu0 0
        %1934 = vmatprep.subr.bf16.mxu0 0
        %1935 = vmatpush1.bf16.msra.mxu0 0
        %1936 = vmatprep.subr.bf16.mxu0 0
        %1937 = vmatpush1.bf16.msra.mxu0 0
        %1938 = vmatprep.subr.bf16.mxu0 0
        %1939 = vmatpush1.bf16.msra.mxu0 0
        %1940 = vmatprep.subr.bf16.mxu0 0
        %1941 = vmatpush1.bf16.msra.mxu0 0
        %1942 = vmatprep.subr.bf16.mxu0 0
        %1943 = vmatpush1.bf16.msra.mxu0 0
        %1944 = vmatprep.subr.bf16.mxu0 0
        %1945 = vmatpush1.bf16.msra.mxu0 0
        %1946 = vmatprep.subr.bf16.mxu0 0
        %1947 = vmatpush1.bf16.msra.mxu0 0
        %1948 = vmatprep.subr.bf16.mxu0 0
        %1949 = vmatpush1.bf16.msra.mxu0 0
        %1950 = vmatprep.subr.bf16.mxu0 0
        %1951 = vmatpush1.bf16.msra.mxu0 0
        %1952 = vmatprep.subr.bf16.mxu0 0
        %1953 = vmatpush1.bf16.msra.mxu0 0
        %1954 = vmatprep.subr.bf16.mxu0 0
        %1955 = vmatpush1.bf16.msra.mxu0 0
        %1956 = vmatprep.mubr.bf16.mxu0 0
        %1957 = vmatmul.mubr.bf16.gmra.mrb[0].mxu0 %v1922
        %v1958 = vpop.f32.mrb[0].mxu0
        %v1959 = vadd.f32 0.0, %v1958
        %v1960 = vpop.f32.mrb[0].mxu0
        %v1961 = vpop.f32.mrb[0].mxu0
        %v1962 = vpop.f32.mrb[0].mxu0
        %1963 = vdwg.mxu0
        %v1968 = vunpack.c.l.b16 %v1896
        %v1969 = vunpack.c.l.b16 %v1897
        %v1970 = vunpack.c.l.b16 %v1898
        %v1971 = vunpack.c.l.b16 %v1899
        %v1972 = vpack.c.b16 %v1969, %v1968
        %v1973 = vpack.c.b16 %v1971, %v1970
        %1976 = vmatprep.subr.bf16.mxu0 0
        %1977 = vmatpush1.bf16.msra.mxu0 %v1972
        %1978 = vmatprep.subr.bf16.mxu0 0
        %1979 = vmatpush1.bf16.msra.mxu0 %v1973
        %1980 = vmatprep.subr.bf16.mxu0 0
        %1981 = vmatpush1.bf16.msra.mxu0 0
        %1982 = vmatprep.subr.bf16.mxu0 0
        %1983 = vmatpush1.bf16.msra.mxu0 0
        %1984 = vmatprep.subr.bf16.mxu0 0
        %1985 = vmatpush1.bf16.msra.mxu0 0
        %1986 = vmatprep.subr.bf16.mxu0 0
        %1987 = vmatpush1.bf16.msra.mxu0 0
        %1988 = vmatprep.subr.bf16.mxu0 0
        %1989 = vmatpush1.bf16.msra.mxu0 0
        %1990 = vmatprep.subr.bf16.mxu0 0
        %1991 = vmatpush1.bf16.msra.mxu0 0
        %1992 = vmatprep.subr.bf16.mxu0 0
        %1993 = vmatpush1.bf16.msra.mxu0 0
        %1994 = vmatprep.subr.bf16.mxu0 0
        %1995 = vmatpush1.bf16.msra.mxu0 0
        %1996 = vmatprep.subr.bf16.mxu0 0
        %1997 = vmatpush1.bf16.msra.mxu0 0
        %1998 = vmatprep.subr.bf16.mxu0 0
        %1999 = vmatpush1.bf16.msra.mxu0 0
        %2000 = vmatprep.subr.bf16.mxu0 0
        %2001 = vmatpush1.bf16.msra.mxu0 0
        %2002 = vmatprep.subr.bf16.mxu0 0
        %2003 = vmatpush1.bf16.msra.mxu0 0
        %2004 = vmatprep.subr.bf16.mxu0 0
        %2005 = vmatpush1.bf16.msra.mxu0 0
        %2006 = vmatprep.subr.bf16.mxu0 0
        %2007 = vmatpush1.bf16.msra.mxu0 0
        %2008 = vmatprep.mubr.bf16.mxu0 0
        %2009 = vmatmul.mubr.bf16.gmra.mrb[0].mxu0 %v1922
        %v2010 = vpop.f32.mrb[0].mxu0
        %v2011 = vadd.f32 0.0, %v2010
        %v2012 = vpop.f32.mrb[0].mxu0
        %v2013 = vpop.f32.mrb[0].mxu0
        %v2014 = vpop.f32.mrb[0].mxu0
        %2015 = vdwg.mxu0
        %v2020 = vunpack.c.l.b16 %v1900
        %v2021 = vunpack.c.l.b16 %v1901
        %v2022 = vunpack.c.l.b16 %v1902
        %v2023 = vunpack.c.l.b16 %v1903
        %v2024 = vpack.c.b16 %v2021, %v2020
        %v2025 = vpack.c.b16 %v2023, %v2022
        %2028 = vmatprep.subr.bf16.mxu0 0
        %2029 = vmatpush1.bf16.msra.mxu0 %v2024
        %2030 = vmatprep.subr.bf16.mxu0 0
        %2031 = vmatpush1.bf16.msra.mxu0 %v2025
        %2032 = vmatprep.subr.bf16.mxu0 0
        %2033 = vmatpush1.bf16.msra.mxu0 0
        %2034 = vmatprep.subr.bf16.mxu0 0
        %2035 = vmatpush1.bf16.msra.mxu0 0
        %2036 = vmatprep.subr.bf16.mxu0 0
        %2037 = vmatpush1.bf16.msra.mxu0 0
        %2038 = vmatprep.subr.bf16.mxu0 0
        %2039 = vmatpush1.bf16.msra.mxu0 0
        %2040 = vmatprep.subr.bf16.mxu0 0
        %2041 = vmatpush1.bf16.msra.mxu0 0
        %2042 = vmatprep.subr.bf16.mxu0 0
        %2043 = vmatpush1.bf16.msra.mxu0 0
        %2044 = vmatprep.subr.bf16.mxu0 0
        %2045 = vmatpush1.bf16.msra.mxu0 0
        %2046 = vmatprep.subr.bf16.mxu0 0
        %2047 = vmatpush1.bf16.msra.mxu0 0
        %2048 = vmatprep.subr.bf16.mxu0 0
        %2049 = vmatpush1.bf16.msra.mxu0 0
        %2050 = vmatprep.subr.bf16.mxu0 0
        %2051 = vmatpush1.bf16.msra.mxu0 0
        %2052 = vmatprep.subr.bf16.mxu0 0
        %2053 = vmatpush1.bf16.msra.mxu0 0
        %2054 = vmatprep.subr.bf16.mxu0 0
        %2055 = vmatpush1.bf16.msra.mxu0 0
        %2056 = vmatprep.subr.bf16.mxu0 0
        %2057 = vmatpush1.bf16.msra.mxu0 0
        %2058 = vmatprep.subr.bf16.mxu0 0
        %2059 = vmatpush1.bf16.msra.mxu0 0
        %2060 = vmatprep.mubr.bf16.mxu0 0
        %2061 = vmatmul.mubr.bf16.gmra.mrb[0].mxu0 %v1922
        %v2062 = vpop.f32.mrb[0].mxu0
        %v2063 = vadd.f32 0.0, %v2062
        %v2064 = vpop.f32.mrb[0].mxu0
        %v2065 = vpop.f32.mrb[0].mxu0
        %v2066 = vpop.f32.mrb[0].mxu0
        %2067 = vdwg.mxu0
        %v2072 = vunpack.c.l.b16 %v1904
        %v2073 = vunpack.c.l.b16 %v1905
        %v2074 = vunpack.c.l.b16 %v1906
        %v2075 = vunpack.c.l.b16 %v1907
        %v2076 = vpack.c.b16 %v2073, %v2072
        %v2077 = vpack.c.b16 %v2075, %v2074
        %2080 = vmatprep.subr.bf16.mxu0 0
        %2081 = vmatpush1.bf16.msra.mxu0 %v2076
        %2082 = vmatprep.subr.bf16.mxu0 0
        %2083 = vmatpush1.bf16.msra.mxu0 %v2077
        %2084 = vmatprep.subr.bf16.mxu0 0
        %2085 = vmatpush1.bf16.msra.mxu0 0
        %2086 = vmatprep.subr.bf16.mxu0 0
        %2087 = vmatpush1.bf16.msra.mxu0 0
        %2088 = vmatprep.subr.bf16.mxu0 0
        %2089 = vmatpush1.bf16.msra.mxu0 0
        %2090 = vmatprep.subr.bf16.mxu0 0
        %2091 = vmatpush1.bf16.msra.mxu0 0
        %2092 = vmatprep.subr.bf16.mxu0 0
        %2093 = vmatpush1.bf16.msra.mxu0 0
        %2094 = vmatprep.subr.bf16.mxu0 0
        %2095 = vmatpush1.bf16.msra.mxu0 0
        %2096 = vmatprep.subr.bf16.mxu0 0
        %2097 = vmatpush1.bf16.msra.mxu0 0
        %2098 = vmatprep.subr.bf16.mxu0 0
        %2099 = vmatpush1.bf16.msra.mxu0 0
        %2100 = vmatprep.subr.bf16.mxu0 0
        %2101 = vmatpush1.bf16.msra.mxu0 0
        %2102 = vmatprep.subr.bf16.mxu0 0
        %2103 = vmatpush1.bf16.msra.mxu0 0
        %2104 = vmatprep.subr.bf16.mxu0 0
        %2105 = vmatpush1.bf16.msra.mxu0 0
        %2106 = vmatprep.subr.bf16.mxu0 0
        %2107 = vmatpush1.bf16.msra.mxu0 0
        %2108 = vmatprep.subr.bf16.mxu0 0
        %2109 = vmatpush1.bf16.msra.mxu0 0
        %2110 = vmatprep.subr.bf16.mxu0 0
        %2111 = vmatpush1.bf16.msra.mxu0 0
        %2112 = vmatprep.mubr.bf16.mxu0 0
        %2113 = vmatmul.mubr.bf16.gmra.mrb[0].mxu0 %v1922
        %v2114 = vpop.f32.mrb[0].mxu0
        %v2115 = vadd.f32 0.0, %v2114
        %v2116 = vpop.f32.mrb[0].mxu0
        %v2117 = vpop.f32.mrb[0].mxu0
        %v2118 = vpop.f32.mrb[0].mxu0
        %2119 = vdwg.mxu0
        %v2120 = vld [vmem:[%s8] sm:$0xf]
        %v2121 = vld [vmem:[%s8 + $0x4] sm:$0xf]
        %v2122 = vld [vmem:[%s8 + $0x8] sm:$0xf]
        %v2123 = vld [vmem:[%s8 + $0xc] sm:$0xf]
        %v2124 = vld [vmem:[%s8 + $0x10] sm:$0xf]
        %v2125 = vld [vmem:[%s8 + $0x14] sm:$0xf]
        %v2126 = vld [vmem:[%s8 + $0x18] sm:$0xf]
        %v2127 = vld [vmem:[%s8 + $0x1c] sm:$0xf]
        %v2128 = vld [vmem:[%s8 + $0x20] sm:$0xf]
        %v2129 = vld [vmem:[%s8 + $0x24] sm:$0xf]
        %v2130 = vld [vmem:[%s8 + $0x28] sm:$0xf]
        %v2131 = vld [vmem:[%s8 + $0x2c] sm:$0xf]
        %v2132 = vld [vmem:[%s8 + $0x30] sm:$0xf]
        %v2133 = vld [vmem:[%s8 + $0x34] sm:$0xf]
        %v2134 = vld [vmem:[%s8 + $0x38] sm:$0xf]
        %v2135 = vld [vmem:[%s8 + $0x3c] sm:$0xf]
        %v2136 = vld [vmem:[%s8 + $0x40] sm:$0xf]
        %v2137 = vld [vmem:[%s8 + $0x44] sm:$0xf]
        %v2138 = vld [vmem:[%s8 + $0x48] sm:$0xf]
        %v2139 = vld [vmem:[%s8 + $0x4c] sm:$0xf]
        %v2140 = vld [vmem:[%s8 + $0x50] sm:$0xf]
        %v2141 = vld [vmem:[%s8 + $0x54] sm:$0xf]
        %v2142 = vld [vmem:[%s8 + $0x58] sm:$0xf]
        %v2143 = vld [vmem:[%s8 + $0x5c] sm:$0xf]
        %v2144 = vld [vmem:[%s8 + $0x60] sm:$0xf]
        %v2145 = vld [vmem:[%s8 + $0x64] sm:$0xf]
        %v2146 = vld [vmem:[%s8 + $0x68] sm:$0xf]
        %v2147 = vld [vmem:[%s8 + $0x6c] sm:$0xf]
        %v2148 = vld [vmem:[%s8 + $0x70] sm:$0xf]
        %v2149 = vld [vmem:[%s8 + $0x74] sm:$0xf]
        %v2150 = vld [vmem:[%s8 + $0x78] sm:$0xf]
        %v2151 = vld [vmem:[%s8 + $0x7c] sm:$0xf]
        %v2152 = vpack.c.bf16 %v513, %v512
        %v2157 = vunpack.c.l.b16 %v2120
        %v2158 = vunpack.c.l.b16 %v2121
        %v2159 = vunpack.c.l.b16 %v2122
        %v2160 = vunpack.c.l.b16 %v2123
        %v2161 = vpack.c.b16 %v2158, %v2157
        %v2162 = vpack.c.b16 %v2160, %v2159
        %v2166 = vsel %vm516, %v2152, 0
        %2168 = vmatprep.subr.bf16.mxu0 0
        %2169 = vmatpush1.bf16.msra.mxu0 %v2161
        %2170 = vmatprep.subr.bf16.mxu0 0
        %2171 = vmatpush1.bf16.msra.mxu0 %v2162
        %2172 = vmatprep.subr.bf16.mxu0 0
        %2173 = vmatpush1.bf16.msra.mxu0 0
        %2174 = vmatprep.subr.bf16.mxu0 0
        %2175 = vmatpush1.bf16.msra.mxu0 0
        %2176 = vmatprep.subr.bf16.mxu0 0
        %2177 = vmatpush1.bf16.msra.mxu0 0
        %2178 = vmatprep.subr.bf16.mxu0 0
        %2179 = vmatpush1.bf16.msra.mxu0 0
        %2180 = vmatprep.subr.bf16.mxu0 0
        %2181 = vmatpush1.bf16.msra.mxu0 0
        %2182 = vmatprep.subr.bf16.mxu0 0
        %2183 = vmatpush1.bf16.msra.mxu0 0
        %2184 = vmatprep.subr.bf16.mxu0 0
        %2185 = vmatpush1.bf16.msra.mxu0 0
        %2186 = vmatprep.subr.bf16.mxu0 0
        %2187 = vmatpush1.bf16.msra.mxu0 0
        %2188 = vmatprep.subr.bf16.mxu0 0
        %2189 = vmatpush1.bf16.msra.mxu0 0
        %2190 = vmatprep.subr.bf16.mxu0 0
        %2191 = vmatpush1.bf16.msra.mxu0 0
        %2192 = vmatprep.subr.bf16.mxu0 0
        %2193 = vmatpush1.bf16.msra.mxu0 0
        %2194 = vmatprep.subr.bf16.mxu0 0
        %2195 = vmatpush1.bf16.msra.mxu0 0
        %2196 = vmatprep.subr.bf16.mxu0 0
        %2197 = vmatpush1.bf16.msra.mxu0 0
        %2198 = vmatprep.subr.bf16.mxu0 0
        %2199 = vmatpush1.bf16.msra.mxu0 0
        %2200 = vmatprep.mubr.bf16.mxu0 0
        %2201 = vmatmul.mubr.bf16.gmra.mrb[0].mxu0 %v2166
        %v2202 = vpop.f32.mrb[0].mxu0
        %v2203 = vadd.f32 0.0, %v2202
        %v2204 = vpop.f32.mrb[0].mxu0
        %v2205 = vpop.f32.mrb[0].mxu0
        %v2206 = vadd.f32 0.0, %v2205
        %v2207 = vpop.f32.mrb[0].mxu0
        %2208 = vdwg.mxu0
        %v2213 = vunpack.c.l.b16 %v2124
        %v2214 = vunpack.c.l.b16 %v2125
        %v2215 = vunpack.c.l.b16 %v2126
        %v2216 = vunpack.c.l.b16 %v2127
        %v2217 = vpack.c.b16 %v2214, %v2213
        %v2218 = vpack.c.b16 %v2216, %v2215
        %2221 = vmatprep.subr.bf16.mxu0 0
        %2222 = vmatpush1.bf16.msra.mxu0 %v2217
        %2223 = vmatprep.subr.bf16.mxu0 0
        %2224 = vmatpush1.bf16.msra.mxu0 %v2218
        %2225 = vmatprep.subr.bf16.mxu0 0
        %2226 = vmatpush1.bf16.msra.mxu0 0
        %2227 = vmatprep.subr.bf16.mxu0 0
        %2228 = vmatpush1.bf16.msra.mxu0 0
        %2229 = vmatprep.subr.bf16.mxu0 0
        %2230 = vmatpush1.bf16.msra.mxu0 0
        %2231 = vmatprep.subr.bf16.mxu0 0
        %2232 = vmatpush1.bf16.msra.mxu0 0
        %2233 = vmatprep.subr.bf16.mxu0 0
        %2234 = vmatpush1.bf16.msra.mxu0 0
        %2235 = vmatprep.subr.bf16.mxu0 0
        %2236 = vmatpush1.bf16.msra.mxu0 0
        %2237 = vmatprep.subr.bf16.mxu0 0
        %2238 = vmatpush1.bf16.msra.mxu0 0
        %2239 = vmatprep.subr.bf16.mxu0 0
        %2240 = vmatpush1.bf16.msra.mxu0 0
        %2241 = vmatprep.subr.bf16.mxu0 0
        %2242 = vmatpush1.bf16.msra.mxu0 0
        %2243 = vmatprep.subr.bf16.mxu0 0
        %2244 = vmatpush1.bf16.msra.mxu0 0
        %2245 = vmatprep.subr.bf16.mxu0 0
        %2246 = vmatpush1.bf16.msra.mxu0 0
        %2247 = vmatprep.subr.bf16.mxu0 0
        %2248 = vmatpush1.bf16.msra.mxu0 0
        %2249 = vmatprep.subr.bf16.mxu0 0
        %2250 = vmatpush1.bf16.msra.mxu0 0
        %2251 = vmatprep.subr.bf16.mxu0 0
        %2252 = vmatpush1.bf16.msra.mxu0 0
        %2253 = vmatprep.mubr.bf16.mxu0 0
        %2254 = vmatmul.mubr.bf16.gmra.mrb[0].mxu0 %v2166
        %v2255 = vpop.f32.mrb[0].mxu0
        %v2256 = vadd.f32 0.0, %v2255
        %v2257 = vpop.f32.mrb[0].mxu0
        %v2258 = vpop.f32.mrb[0].mxu0
        %v2259 = vadd.f32 0.0, %v2258
        %v2260 = vpop.f32.mrb[0].mxu0
        %2261 = vdwg.mxu0
        %v2266 = vunpack.c.l.b16 %v2128
        %v2267 = vunpack.c.l.b16 %v2129
        %v2268 = vunpack.c.l.b16 %v2130
        %v2269 = vunpack.c.l.b16 %v2131
        %v2270 = vpack.c.b16 %v2267, %v2266
        %v2271 = vpack.c.b16 %v2269, %v2268
        %2274 = vmatprep.subr.bf16.mxu0 0
        %2275 = vmatpush1.bf16.msra.mxu0 %v2270
        %2276 = vmatprep.subr.bf16.mxu0 0
        %2277 = vmatpush1.bf16.msra.mxu0 %v2271
        %2278 = vmatprep.subr.bf16.mxu0 0
        %2279 = vmatpush1.bf16.msra.mxu0 0
        %2280 = vmatprep.subr.bf16.mxu0 0
        %2281 = vmatpush1.bf16.msra.mxu0 0
        %2282 = vmatprep.subr.bf16.mxu0 0
        %2283 = vmatpush1.bf16.msra.mxu0 0
        %2284 = vmatprep.subr.bf16.mxu0 0
        %2285 = vmatpush1.bf16.msra.mxu0 0
        %2286 = vmatprep.subr.bf16.mxu0 0
        %2287 = vmatpush1.bf16.msra.mxu0 0
        %2288 = vmatprep.subr.bf16.mxu0 0
        %2289 = vmatpush1.bf16.msra.mxu0 0
        %2290 = vmatprep.subr.bf16.mxu0 0
        %2291 = vmatpush1.bf16.msra.mxu0 0
        %2292 = vmatprep.subr.bf16.mxu0 0
        %2293 = vmatpush1.bf16.msra.mxu0 0
        %2294 = vmatprep.subr.bf16.mxu0 0
        %2295 = vmatpush1.bf16.msra.mxu0 0
        %2296 = vmatprep.subr.bf16.mxu0 0
        %2297 = vmatpush1.bf16.msra.mxu0 0
        %2298 = vmatprep.subr.bf16.mxu0 0
        %2299 = vmatpush1.bf16.msra.mxu0 0
        %2300 = vmatprep.subr.bf16.mxu0 0
        %2301 = vmatpush1.bf16.msra.mxu0 0
        %2302 = vmatprep.subr.bf16.mxu0 0
        %2303 = vmatpush1.bf16.msra.mxu0 0
        %2304 = vmatprep.subr.bf16.mxu0 0
        %2305 = vmatpush1.bf16.msra.mxu0 0
        %2306 = vmatprep.mubr.bf16.mxu0 0
        %2307 = vmatmul.mubr.bf16.gmra.mrb[0].mxu0 %v2166
        %v2308 = vpop.f32.mrb[0].mxu0
        %v2309 = vadd.f32 0.0, %v2308
        %v2310 = vpop.f32.mrb[0].mxu0
        %v2311 = vpop.f32.mrb[0].mxu0
        %v2312 = vadd.f32 0.0, %v2311
        %v2313 = vpop.f32.mrb[0].mxu0
        %2314 = vdwg.mxu0
        %v2319 = vunpack.c.l.b16 %v2132
        %v2320 = vunpack.c.l.b16 %v2133
        %v2321 = vunpack.c.l.b16 %v2134
        %v2322 = vunpack.c.l.b16 %v2135
        %v2323 = vpack.c.b16 %v2320, %v2319
        %v2324 = vpack.c.b16 %v2322, %v2321
        %2327 = vmatprep.subr.bf16.mxu0 0
        %2328 = vmatpush1.bf16.msra.mxu0 %v2323
        %2329 = vmatprep.subr.bf16.mxu0 0
        %2330 = vmatpush1.bf16.msra.mxu0 %v2324
        %2331 = vmatprep.subr.bf16.mxu0 0
        %2332 = vmatpush1.bf16.msra.mxu0 0
        %2333 = vmatprep.subr.bf16.mxu0 0
        %2334 = vmatpush1.bf16.msra.mxu0 0
        %2335 = vmatprep.subr.bf16.mxu0 0
        %2336 = vmatpush1.bf16.msra.mxu0 0
        %2337 = vmatprep.subr.bf16.mxu0 0
        %2338 = vmatpush1.bf16.msra.mxu0 0
        %2339 = vmatprep.subr.bf16.mxu0 0
        %2340 = vmatpush1.bf16.msra.mxu0 0
        %2341 = vmatprep.subr.bf16.mxu0 0
        %2342 = vmatpush1.bf16.msra.mxu0 0
        %2343 = vmatprep.subr.bf16.mxu0 0
        %2344 = vmatpush1.bf16.msra.mxu0 0
        %2345 = vmatprep.subr.bf16.mxu0 0
        %2346 = vmatpush1.bf16.msra.mxu0 0
        %2347 = vmatprep.subr.bf16.mxu0 0
        %2348 = vmatpush1.bf16.msra.mxu0 0
        %2349 = vmatprep.subr.bf16.mxu0 0
        %2350 = vmatpush1.bf16.msra.mxu0 0
        %2351 = vmatprep.subr.bf16.mxu0 0
        %2352 = vmatpush1.bf16.msra.mxu0 0
        %2353 = vmatprep.subr.bf16.mxu0 0
        %2354 = vmatpush1.bf16.msra.mxu0 0
        %2355 = vmatprep.subr.bf16.mxu0 0
        %2356 = vmatpush1.bf16.msra.mxu0 0
        %2357 = vmatprep.subr.bf16.mxu0 0
        %2358 = vmatpush1.bf16.msra.mxu0 0
        %2359 = vmatprep.mubr.bf16.mxu0 0
        %2360 = vmatmul.mubr.bf16.gmra.mrb[0].mxu0 %v2166
        %v2361 = vpop.f32.mrb[0].mxu0
        %v2362 = vadd.f32 0.0, %v2361
        %v2363 = vpop.f32.mrb[0].mxu0
        %v2364 = vpop.f32.mrb[0].mxu0
        %v2365 = vadd.f32 0.0, %v2364
        %v2366 = vpop.f32.mrb[0].mxu0
        %2367 = vdwg.mxu0
        %v2372 = vunpack.c.l.b16 %v2136
        %v2373 = vunpack.c.l.b16 %v2137
        %v2374 = vunpack.c.l.b16 %v2138
        %v2375 = vunpack.c.l.b16 %v2139
        %v2376 = vpack.c.b16 %v2373, %v2372
        %v2377 = vpack.c.b16 %v2375, %v2374
        %2380 = vmatprep.subr.bf16.mxu0 0
        %2381 = vmatpush1.bf16.msra.mxu0 %v2376
        %2382 = vmatprep.subr.bf16.mxu0 0
        %2383 = vmatpush1.bf16.msra.mxu0 %v2377
        %2384 = vmatprep.subr.bf16.mxu0 0
        %2385 = vmatpush1.bf16.msra.mxu0 0
        %2386 = vmatprep.subr.bf16.mxu0 0
        %2387 = vmatpush1.bf16.msra.mxu0 0
        %2388 = vmatprep.subr.bf16.mxu0 0
        %2389 = vmatpush1.bf16.msra.mxu0 0
        %2390 = vmatprep.subr.bf16.mxu0 0
        %2391 = vmatpush1.bf16.msra.mxu0 0
        %2392 = vmatprep.subr.bf16.mxu0 0
        %2393 = vmatpush1.bf16.msra.mxu0 0
        %2394 = vmatprep.subr.bf16.mxu0 0
        %2395 = vmatpush1.bf16.msra.mxu0 0
        %2396 = vmatprep.subr.bf16.mxu0 0
        %2397 = vmatpush1.bf16.msra.mxu0 0
        %2398 = vmatprep.subr.bf16.mxu0 0
        %2399 = vmatpush1.bf16.msra.mxu0 0
        %2400 = vmatprep.subr.bf16.mxu0 0
        %2401 = vmatpush1.bf16.msra.mxu0 0
        %2402 = vmatprep.subr.bf16.mxu0 0
        %2403 = vmatpush1.bf16.msra.mxu0 0
        %2404 = vmatprep.subr.bf16.mxu0 0
        %2405 = vmatpush1.bf16.msra.mxu0 0
        %2406 = vmatprep.subr.bf16.mxu0 0
        %2407 = vmatpush1.bf16.msra.mxu0 0
        %2408 = vmatprep.subr.bf16.mxu0 0
        %2409 = vmatpush1.bf16.msra.mxu0 0
        %2410 = vmatprep.subr.bf16.mxu0 0
        %2411 = vmatpush1.bf16.msra.mxu0 0
        %2412 = vmatprep.mubr.bf16.mxu0 0
        %2413 = vmatmul.mubr.bf16.gmra.mrb[0].mxu0 %v2166
        %v2414 = vpop.f32.mrb[0].mxu0
        %v2415 = vadd.f32 0.0, %v2414
        %v2416 = vpop.f32.mrb[0].mxu0
        %v2417 = vpop.f32.mrb[0].mxu0
        %v2418 = vadd.f32 0.0, %v2417
        %v2419 = vpop.f32.mrb[0].mxu0
        %2420 = vdwg.mxu0
        %v2425 = vunpack.c.l.b16 %v2140
        %v2426 = vunpack.c.l.b16 %v2141
        %v2427 = vunpack.c.l.b16 %v2142
        %v2428 = vunpack.c.l.b16 %v2143
        %v2429 = vpack.c.b16 %v2426, %v2425
        %v2430 = vpack.c.b16 %v2428, %v2427
        %2433 = vmatprep.subr.bf16.mxu0 0
        %2434 = vmatpush1.bf16.msra.mxu0 %v2429
        %2435 = vmatprep.subr.bf16.mxu0 0
        %2436 = vmatpush1.bf16.msra.mxu0 %v2430
        %2437 = vmatprep.subr.bf16.mxu0 0
        %2438 = vmatpush1.bf16.msra.mxu0 0
        %2439 = vmatprep.subr.bf16.mxu0 0
        %2440 = vmatpush1.bf16.msra.mxu0 0
        %2441 = vmatprep.subr.bf16.mxu0 0
        %2442 = vmatpush1.bf16.msra.mxu0 0
        %2443 = vmatprep.subr.bf16.mxu0 0
        %2444 = vmatpush1.bf16.msra.mxu0 0
        %2445 = vmatprep.subr.bf16.mxu0 0
        %2446 = vmatpush1.bf16.msra.mxu0 0
        %2447 = vmatprep.subr.bf16.mxu0 0
        %2448 = vmatpush1.bf16.msra.mxu0 0
        %2449 = vmatprep.subr.bf16.mxu0 0
        %2450 = vmatpush1.bf16.msra.mxu0 0
        %2451 = vmatprep.subr.bf16.mxu0 0
        %2452 = vmatpush1.bf16.msra.mxu0 0
        %2453 = vmatprep.subr.bf16.mxu0 0
        %2454 = vmatpush1.bf16.msra.mxu0 0
        %2455 = vmatprep.subr.bf16.mxu0 0
        %2456 = vmatpush1.bf16.msra.mxu0 0
        %2457 = vmatprep.subr.bf16.mxu0 0
        %2458 = vmatpush1.bf16.msra.mxu0 0
        %2459 = vmatprep.subr.bf16.mxu0 0
        %2460 = vmatpush1.bf16.msra.mxu0 0
        %2461 = vmatprep.subr.bf16.mxu0 0
        %2462 = vmatpush1.bf16.msra.mxu0 0
        %2463 = vmatprep.subr.bf16.mxu0 0
        %2464 = vmatpush1.bf16.msra.mxu0 0
        %2465 = vmatprep.mubr.bf16.mxu0 0
        %2466 = vmatmul.mubr.bf16.gmra.mrb[0].mxu0 %v2166
        %v2467 = vpop.f32.mrb[0].mxu0
        %v2468 = vadd.f32 0.0, %v2467
        %v2469 = vpop.f32.mrb[0].mxu0
        %v2470 = vpop.f32.mrb[0].mxu0
        %v2471 = vadd.f32 0.0, %v2470
        %v2472 = vpop.f32.mrb[0].mxu0
        %2473 = vdwg.mxu0
        %v2478 = vunpack.c.l.b16 %v2144
        %v2479 = vunpack.c.l.b16 %v2145
        %v2480 = vunpack.c.l.b16 %v2146
        %v2481 = vunpack.c.l.b16 %v2147
        %v2482 = vpack.c.b16 %v2479, %v2478
        %v2483 = vpack.c.b16 %v2481, %v2480
        %2486 = vmatprep.subr.bf16.mxu0 0
        %2487 = vmatpush1.bf16.msra.mxu0 %v2482
        %2488 = vmatprep.subr.bf16.mxu0 0
        %2489 = vmatpush1.bf16.msra.mxu0 %v2483
        %2490 = vmatprep.subr.bf16.mxu0 0
        %2491 = vmatpush1.bf16.msra.mxu0 0
        %2492 = vmatprep.subr.bf16.mxu0 0
        %2493 = vmatpush1.bf16.msra.mxu0 0
        %2494 = vmatprep.subr.bf16.mxu0 0
        %2495 = vmatpush1.bf16.msra.mxu0 0
        %2496 = vmatprep.subr.bf16.mxu0 0
        %2497 = vmatpush1.bf16.msra.mxu0 0
        %2498 = vmatprep.subr.bf16.mxu0 0
        %2499 = vmatpush1.bf16.msra.mxu0 0
        %2500 = vmatprep.subr.bf16.mxu0 0
        %2501 = vmatpush1.bf16.msra.mxu0 0
        %2502 = vmatprep.subr.bf16.mxu0 0
        %2503 = vmatpush1.bf16.msra.mxu0 0
        %2504 = vmatprep.subr.bf16.mxu0 0
        %2505 = vmatpush1.bf16.msra.mxu0 0
        %2506 = vmatprep.subr.bf16.mxu0 0
        %2507 = vmatpush1.bf16.msra.mxu0 0
        %2508 = vmatprep.subr.bf16.mxu0 0
        %2509 = vmatpush1.bf16.msra.mxu0 0
        %2510 = vmatprep.subr.bf16.mxu0 0
        %2511 = vmatpush1.bf16.msra.mxu0 0
        %2512 = vmatprep.subr.bf16.mxu0 0
        %2513 = vmatpush1.bf16.msra.mxu0 0
        %2514 = vmatprep.subr.bf16.mxu0 0
        %2515 = vmatpush1.bf16.msra.mxu0 0
        %2516 = vmatprep.subr.bf16.mxu0 0
        %2517 = vmatpush1.bf16.msra.mxu0 0
        %2518 = vmatprep.mubr.bf16.mxu0 0
        %2519 = vmatmul.mubr.bf16.gmra.mrb[0].mxu0 %v2166
        %v2520 = vpop.f32.mrb[0].mxu0
        %v2521 = vadd.f32 0.0, %v2520
        %v2522 = vpop.f32.mrb[0].mxu0
        %v2523 = vpop.f32.mrb[0].mxu0
        %v2524 = vadd.f32 0.0, %v2523
        %v2525 = vpop.f32.mrb[0].mxu0
        %2526 = vdwg.mxu0
        %v2531 = vunpack.c.l.b16 %v2148
        %v2532 = vunpack.c.l.b16 %v2149
        %v2533 = vunpack.c.l.b16 %v2150
        %v2534 = vunpack.c.l.b16 %v2151
        %v2535 = vpack.c.b16 %v2532, %v2531
        %v2536 = vpack.c.b16 %v2534, %v2533
        %2539 = vmatprep.subr.bf16.mxu0 0
        %2540 = vmatpush1.bf16.msra.mxu0 %v2535
        %2541 = vmatprep.subr.bf16.mxu0 0
        %2542 = vmatpush1.bf16.msra.mxu0 %v2536
        %2543 = vmatprep.subr.bf16.mxu0 0
        %2544 = vmatpush1.bf16.msra.mxu0 0
        %2545 = vmatprep.subr.bf16.mxu0 0
        %2546 = vmatpush1.bf16.msra.mxu0 0
        %2547 = vmatprep.subr.bf16.mxu0 0
        %2548 = vmatpush1.bf16.msra.mxu0 0
        %2549 = vmatprep.subr.bf16.mxu0 0
        %2550 = vmatpush1.bf16.msra.mxu0 0
        %2551 = vmatprep.subr.bf16.mxu0 0
        %2552 = vmatpush1.bf16.msra.mxu0 0
        %2553 = vmatprep.subr.bf16.mxu0 0
        %2554 = vmatpush1.bf16.msra.mxu0 0
        %2555 = vmatprep.subr.bf16.mxu0 0
        %2556 = vmatpush1.bf16.msra.mxu0 0
        %2557 = vmatprep.subr.bf16.mxu0 0
        %2558 = vmatpush1.bf16.msra.mxu0 0
        %2559 = vmatprep.subr.bf16.mxu0 0
        %2560 = vmatpush1.bf16.msra.mxu0 0
        %2561 = vmatprep.subr.bf16.mxu0 0
        %2562 = vmatpush1.bf16.msra.mxu0 0
        %2563 = vmatprep.subr.bf16.mxu0 0
        %2564 = vmatpush1.bf16.msra.mxu0 0
        %2565 = vmatprep.subr.bf16.mxu0 0
        %2566 = vmatpush1.bf16.msra.mxu0 0
        %2567 = vmatprep.subr.bf16.mxu0 0
        %2568 = vmatpush1.bf16.msra.mxu0 0
        %2569 = vmatprep.subr.bf16.mxu0 0
        %2570 = vmatpush1.bf16.msra.mxu0 0
        %2571 = vmatprep.mubr.bf16.mxu0 0
        %2572 = vmatmul.mubr.bf16.gmra.mrb[0].mxu0 %v2166
        %v2573 = vpop.f32.mrb[0].mxu0
        %v2574 = vadd.f32 0.0, %v2573
        %v2575 = vpop.f32.mrb[0].mxu0
        %v2576 = vpop.f32.mrb[0].mxu0
        %v2577 = vadd.f32 0.0, %v2576
        %v2578 = vpop.f32.mrb[0].mxu0
        %2579 = vdwg.mxu0
        %v2580 = vld [vmem:[%s9] sm:$0xf]
        %v2581 = vld [vmem:[%s9 + $0x4] sm:$0xf]
        %v2582 = vld [vmem:[%s9 + $0x8] sm:$0xf]
        %v2583 = vld [vmem:[%s9 + $0xc] sm:$0xf]
        %v2584 = vld [vmem:[%s10] sm:$0x1]
        %v2585 = vpack.c.bf16 %v1959, %v1959
        %v2586 = vpack.c.bf16 %v2011, %v2011
        %v2587 = vpack.c.bf16 %v2063, %v2063
        %v2588 = vpack.c.bf16 %v2115, %v2115
        %v2589 = vpack.c.bf16 %v2206, %v2203
        %v2590 = vpack.c.bf16 %v2259, %v2256
        %v2591 = vpack.c.bf16 %v2312, %v2309
        %v2592 = vpack.c.bf16 %v2365, %v2362
        %v2594 = vsel %vm1230, %v2585, 0
        %v2597 = vsel %vm1230, %v2589, 0
        %2599 = vmatprep.subr.bf16.mxu0 0
        %2600 = vmatpush1.bf16.xpose.msra.mxu0 %v2597
        %2601 = vmatprep.subr.bf16.mxu0 0
        %2602 = vmatpush1.bf16.xpose.msra.mxu0 0
        %2603 = vmatprep.subr.bf16.mxu0 0
        %2604 = vmatpush1.bf16.xpose.msra.mxu0 0
        %2605 = vmatprep.subr.bf16.mxu0 0
        %2606 = vmatpush1.bf16.xpose.msra.mxu0 0
        %2607 = vmatprep.subr.bf16.mxu0 0
        %2608 = vmatpush1.bf16.xpose.msra.mxu0 0
        %2609 = vmatprep.subr.bf16.mxu0 0
        %2610 = vmatpush1.bf16.xpose.msra.mxu0 0
        %2611 = vmatprep.subr.bf16.mxu0 0
        %2612 = vmatpush1.bf16.xpose.msra.mxu0 0
        %2613 = vmatprep.subr.bf16.mxu0 0
        %2614 = vmatpush1.bf16.xpose.msra.mxu0 0
        %2615 = vmatprep.subr.bf16.mxu0 0
        %2616 = vmatpush1.bf16.xpose.msra.mxu0 0
        %2617 = vmatprep.subr.bf16.mxu0 0
        %2618 = vmatpush1.bf16.xpose.msra.mxu0 0
        %2619 = vmatprep.subr.bf16.mxu0 0
        %2620 = vmatpush1.bf16.xpose.msra.mxu0 0
        %2621 = vmatprep.subr.bf16.mxu0 0
        %2622 = vmatpush1.bf16.xpose.msra.mxu0 0
        %2623 = vmatprep.subr.bf16.mxu0 0
        %2624 = vmatpush1.bf16.xpose.msra.mxu0 0
        %2625 = vmatprep.subr.bf16.mxu0 0
        %2626 = vmatpush1.bf16.xpose.msra.mxu0 0
        %2627 = vmatprep.subr.bf16.mxu0 0
        %2628 = vmatpush1.bf16.xpose.msra.mxu0 0
        %2629 = vmatprep.subr.bf16.mxu0 0
        %2630 = vmatpush1.bf16.xpose.msra.mxu0 0
        %2631 = vmatprep.mubr.bf16.mxu0 0
        %2632 = vmatmul.mubr.bf16.gmra.mrb[0].mxu0 %v2594
        %v2633 = vpop.f32.mrb[0].mxu0
        %v2634 = vadd.f32 0.0, %v2633
        %v2635 = vpop.f32.mrb[0].mxu0
        %v2636 = vpop.f32.mrb[0].mxu0
        %v2637 = vpop.f32.mrb[0].mxu0
        %2638 = vdwg.mxu0
        %v2640 = vsel %vm1230, %v2586, 0
        %v2643 = vsel %vm1230, %v2590, 0
        %2645 = vmatprep.subr.bf16.mxu0 0
        %2646 = vmatpush1.bf16.xpose.msra.mxu0 %v2643
        %2647 = vmatprep.subr.bf16.mxu0 0
        %2648 = vmatpush1.bf16.xpose.msra.mxu0 0
        %2649 = vmatprep.subr.bf16.mxu0 0
        %2650 = vmatpush1.bf16.xpose.msra.mxu0 0
        %2651 = vmatprep.subr.bf16.mxu0 0
        %2652 = vmatpush1.bf16.xpose.msra.mxu0 0
        %2653 = vmatprep.subr.bf16.mxu0 0
        %2654 = vmatpush1.bf16.xpose.msra.mxu0 0
        %2655 = vmatprep.subr.bf16.mxu0 0
        %2656 = vmatpush1.bf16.xpose.msra.mxu0 0
        %2657 = vmatprep.subr.bf16.mxu0 0
        %2658 = vmatpush1.bf16.xpose.msra.mxu0 0
        %2659 = vmatprep.subr.bf16.mxu0 0
        %2660 = vmatpush1.bf16.xpose.msra.mxu0 0
        %2661 = vmatprep.subr.bf16.mxu0 0
        %2662 = vmatpush1.bf16.xpose.msra.mxu0 0
        %2663 = vmatprep.subr.bf16.mxu0 0
        %2664 = vmatpush1.bf16.xpose.msra.mxu0 0
        %2665 = vmatprep.subr.bf16.mxu0 0
        %2666 = vmatpush1.bf16.xpose.msra.mxu0 0
        %2667 = vmatprep.subr.bf16.mxu0 0
        %2668 = vmatpush1.bf16.xpose.msra.mxu0 0
        %2669 = vmatprep.subr.bf16.mxu0 0
        %2670 = vmatpush1.bf16.xpose.msra.mxu0 0
        %2671 = vmatprep.subr.bf16.mxu0 0
        %2672 = vmatpush1.bf16.xpose.msra.mxu0 0
        %2673 = vmatprep.subr.bf16.mxu0 0
        %2674 = vmatpush1.bf16.xpose.msra.mxu0 0
        %2675 = vmatprep.subr.bf16.mxu0 0
        %2676 = vmatpush1.bf16.xpose.msra.mxu0 0
        %2677 = vmatprep.mubr.bf16.mxu0 0
        %2678 = vmatmul.mubr.bf16.gmra.mrb[0].mxu0 %v2640
        %v2679 = vpop.f32.mrb[0].mxu0
        %v2680 = vadd.f32 0.0, %v2679
        %v2681 = vpop.f32.mrb[0].mxu0
        %v2682 = vpop.f32.mrb[0].mxu0
        %v2683 = vpop.f32.mrb[0].mxu0
        %2684 = vdwg.mxu0
        %v2686 = vsel %vm1230, %v2587, 0
        %v2689 = vsel %vm1230, %v2591, 0
        %2691 = vmatprep.subr.bf16.mxu0 0
        %2692 = vmatpush1.bf16.xpose.msra.mxu0 %v2689
        %2693 = vmatprep.subr.bf16.mxu0 0
        %2694 = vmatpush1.bf16.xpose.msra.mxu0 0
        %2695 = vmatprep.subr.bf16.mxu0 0
        %2696 = vmatpush1.bf16.xpose.msra.mxu0 0
        %2697 = vmatprep.subr.bf16.mxu0 0
        %2698 = vmatpush1.bf16.xpose.msra.mxu0 0
        %2699 = vmatprep.subr.bf16.mxu0 0
        %2700 = vmatpush1.bf16.xpose.msra.mxu0 0
        %2701 = vmatprep.subr.bf16.mxu0 0
        %2702 = vmatpush1.bf16.xpose.msra.mxu0 0
        %2703 = vmatprep.subr.bf16.mxu0 0
        %2704 = vmatpush1.bf16.xpose.msra.mxu0 0
        %2705 = vmatprep.subr.bf16.mxu0 0
        %2706 = vmatpush1.bf16.xpose.msra.mxu0 0
        %2707 = vmatprep.subr.bf16.mxu0 0
        %2708 = vmatpush1.bf16.xpose.msra.mxu0 0
        %2709 = vmatprep.subr.bf16.mxu0 0
        %2710 = vmatpush1.bf16.xpose.msra.mxu0 0
        %2711 = vmatprep.subr.bf16.mxu0 0
        %2712 = vmatpush1.bf16.xpose.msra.mxu0 0
        %2713 = vmatprep.subr.bf16.mxu0 0
        %2714 = vmatpush1.bf16.xpose.msra.mxu0 0
        %2715 = vmatprep.subr.bf16.mxu0 0
        %2716 = vmatpush1.bf16.xpose.msra.mxu0 0
        %2717 = vmatprep.subr.bf16.mxu0 0
        %2718 = vmatpush1.bf16.xpose.msra.mxu0 0
        %2719 = vmatprep.subr.bf16.mxu0 0
        %2720 = vmatpush1.bf16.xpose.msra.mxu0 0
        %2721 = vmatprep.subr.bf16.mxu0 0
        %2722 = vmatpush1.bf16.xpose.msra.mxu0 0
        %2723 = vmatprep.mubr.bf16.mxu0 0
        %2724 = vmatmul.mubr.bf16.gmra.mrb[0].mxu0 %v2686
        %v2725 = vpop.f32.mrb[0].mxu0
        %v2726 = vadd.f32 0.0, %v2725
        %v2727 = vpop.f32.mrb[0].mxu0
        %v2728 = vpop.f32.mrb[0].mxu0
        %v2729 = vpop.f32.mrb[0].mxu0
        %2730 = vdwg.mxu0
        %v2732 = vsel %vm1230, %v2588, 0
        %v2735 = vsel %vm1230, %v2592, 0
        %2737 = vmatprep.subr.bf16.mxu0 0
        %2738 = vmatpush1.bf16.xpose.msra.mxu0 %v2735
        %2739 = vmatprep.subr.bf16.mxu0 0
        %2740 = vmatpush1.bf16.xpose.msra.mxu0 0
        %2741 = vmatprep.subr.bf16.mxu0 0
        %2742 = vmatpush1.bf16.xpose.msra.mxu0 0
        %2743 = vmatprep.subr.bf16.mxu0 0
        %2744 = vmatpush1.bf16.xpose.msra.mxu0 0
        %2745 = vmatprep.subr.bf16.mxu0 0
        %2746 = vmatpush1.bf16.xpose.msra.mxu0 0
        %2747 = vmatprep.subr.bf16.mxu0 0
        %2748 = vmatpush1.bf16.xpose.msra.mxu0 0
        %2749 = vmatprep.subr.bf16.mxu0 0
        %2750 = vmatpush1.bf16.xpose.msra.mxu0 0
        %2751 = vmatprep.subr.bf16.mxu0 0
        %2752 = vmatpush1.bf16.xpose.msra.mxu0 0
        %2753 = vmatprep.subr.bf16.mxu0 0
        %2754 = vmatpush1.bf16.xpose.msra.mxu0 0
        %2755 = vmatprep.subr.bf16.mxu0 0
        %2756 = vmatpush1.bf16.xpose.msra.mxu0 0
        %2757 = vmatprep.subr.bf16.mxu0 0
        %2758 = vmatpush1.bf16.xpose.msra.mxu0 0
        %2759 = vmatprep.subr.bf16.mxu0 0
        %2760 = vmatpush1.bf16.xpose.msra.mxu0 0
        %2761 = vmatprep.subr.bf16.mxu0 0
        %2762 = vmatpush1.bf16.xpose.msra.mxu0 0
        %2763 = vmatprep.subr.bf16.mxu0 0
        %2764 = vmatpush1.bf16.xpose.msra.mxu0 0
        %2765 = vmatprep.subr.bf16.mxu0 0
        %2766 = vmatpush1.bf16.xpose.msra.mxu0 0
        %2767 = vmatprep.subr.bf16.mxu0 0
        %2768 = vmatpush1.bf16.xpose.msra.mxu0 0
        %2769 = vmatprep.mubr.bf16.mxu0 0
        %2770 = vmatmul.mubr.bf16.gmra.mrb[0].mxu0 %v2732
        %v2771 = vpop.f32.mrb[0].mxu0
        %v2772 = vadd.f32 0.0, %v2771
        %v2773 = vpop.f32.mrb[0].mxu0
        %v2774 = vpop.f32.mrb[0].mxu0
        %v2775 = vpop.f32.mrb[0].mxu0
        %2776 = vdwg.mxu0
        %vm2777 = vcmask 130048
        %v2778 = vsel %vm2777, %v2634, -inf
        %2779 = vmax.xlane.f32.xlu0 %v2778
        %v2780 = vpop.xlane.xlu0 %2779
        %v2781 = vsel %vm2777, %v2680, -inf
        %2782 = vmax.xlane.f32.xlu0 %v2781
        %v2783 = vpop.xlane.xlu0 %2782
        %v2784 = vsel %vm2777, %v2726, -inf
        %2785 = vmax.xlane.f32.xlu0 %v2784
        %v2786 = vpop.xlane.xlu0 %2785
        %v2787 = vsel %vm2777, %v2772, -inf
        %2788 = vmax.xlane.f32.xlu0 %v2787
        %v2789 = vpop.xlane.xlu0 %2788
        %v2790 = vsub.f32 %v2634, %v2780
        %v2791 = vsub.f32 %v2680, %v2783
        %v2792 = vsub.f32 %v2726, %v2786
        %v2793 = vsub.f32 %v2772, %v2789
        %v2794 = vmul.f32 %v2790, 1.442695
        %v2795 = vpow.pop %v2794
        %v2796 = vmul.f32 %v2791, 1.442695
        %v2797 = vpow.pop %v2796
        %v2798 = vmul.f32 %v2792, 1.442695
        %v2799 = vpow.pop %v2798
        %v2800 = vmul.f32 %v2793, 1.442695
        %v2801 = vpow.pop %v2800
        %v2802 = vsel %vm2777, %v2795, 0.0
        %2803 = vadd.xlane.f32.xlu0 %v2802
        %v2804 = vpop.xlane.xlu0 %2803
        %v2805 = vsel %vm2777, %v2797, 0.0
        %2806 = vadd.xlane.f32.xlu0 %v2805
        %v2807 = vpop.xlane.xlu0 %2806
        %v2808 = vsel %vm2777, %v2799, 0.0
        %2809 = vadd.xlane.f32.xlu0 %v2808
        %v2810 = vpop.xlane.xlu0 %2809
        %v2811 = vsel %vm2777, %v2801, 0.0
        %2812 = vadd.xlane.f32.xlu0 %v2811
        %v2813 = vpop.xlane.xlu0 %2812
        %v2814 = vrcp.pop %v2804
        %v2815 = vrcp.pop %v2807
        %v2816 = vrcp.pop %v2810
        %v2817 = vrcp.pop %v2813
        %v2818 = vmul.f32 %v2804, %v2814
        %v2819 = vmul.f32 %v2807, %v2815
        %v2820 = vmul.f32 %v2810, %v2816
        %v2821 = vmul.f32 %v2813, %v2817
        %v2822 = vsub.f32 2.0, %v2818
        %v2823 = vsub.f32 2.0, %v2819
        %v2824 = vsub.f32 2.0, %v2820
        %v2825 = vsub.f32 2.0, %v2821
        %v2826 = vmul.f32 %v2814, %v2822
        %v2827 = vmul.f32 %v2815, %v2823
        %v2828 = vmul.f32 %v2816, %v2824
        %v2829 = vmul.f32 %v2817, %v2825
        %v2830 = vmul.f32 %v2795, %v2826
        %v2831 = vmul.f32 %v2797, %v2827
        %v2832 = vmul.f32 %v2799, %v2828
        %v2833 = vmul.f32 %v2801, %v2829
        %v2834 = vpack.c.bf16 %v2830, %v2830
        %v2835 = vpack.c.bf16 %v2831, %v2831
        %v2836 = vpack.c.bf16 %v2832, %v2832
        %v2837 = vpack.c.bf16 %v2833, %v2833
        %v2838 = vpack.c.bf16 %v2418, %v2415
        %v2839 = vpack.c.bf16 %v2471, %v2468
        %v2840 = vpack.c.bf16 %v2524, %v2521
        %v2841 = vpack.c.bf16 %v2577, %v2574
        %v2843 = vsel %vm2777, %v2834, 0
        %2845 = vmatprep.subr.bf16.mxu0 0
        %2846 = vmatpush1.bf16.msra.mxu0 %v2838
        %2847 = vmatprep.subr.bf16.mxu0 0
        %2848 = vmatpush1.bf16.msra.mxu0 0
        %2849 = vmatprep.subr.bf16.mxu0 0
        %2850 = vmatpush1.bf16.msra.mxu0 0
        %2851 = vmatprep.subr.bf16.mxu0 0
        %2852 = vmatpush1.bf16.msra.mxu0 0
        %2853 = vmatprep.subr.bf16.mxu0 0
        %2854 = vmatpush1.bf16.msra.mxu0 0
        %2855 = vmatprep.subr.bf16.mxu0 0
        %2856 = vmatpush1.bf16.msra.mxu0 0
        %2857 = vmatprep.subr.bf16.mxu0 0
        %2858 = vmatpush1.bf16.msra.mxu0 0
        %2859 = vmatprep.subr.bf16.mxu0 0
        %2860 = vmatpush1.bf16.msra.mxu0 0
        %2861 = vmatprep.subr.bf16.mxu0 0
        %2862 = vmatpush1.bf16.msra.mxu0 0
        %2863 = vmatprep.subr.bf16.mxu0 0
        %2864 = vmatpush1.bf16.msra.mxu0 0
        %2865 = vmatprep.subr.bf16.mxu0 0
        %2866 = vmatpush1.bf16.msra.mxu0 0
        %2867 = vmatprep.subr.bf16.mxu0 0
        %2868 = vmatpush1.bf16.msra.mxu0 0
        %2869 = vmatprep.subr.bf16.mxu0 0
        %2870 = vmatpush1.bf16.msra.mxu0 0
        %2871 = vmatprep.subr.bf16.mxu0 0
        %2872 = vmatpush1.bf16.msra.mxu0 0
        %2873 = vmatprep.subr.bf16.mxu0 0
        %2874 = vmatpush1.bf16.msra.mxu0 0
        %2875 = vmatprep.subr.bf16.mxu0 0
        %2876 = vmatpush1.bf16.msra.mxu0 0
        %2877 = vmatprep.mubr.bf16.mxu0 0
        %2878 = vmatmul.mubr.bf16.gmra.mrb[0].mxu0 %v2843
        %v2879 = vpop.f32.mrb[0].mxu0
        %v2880 = vadd.f32 0.0, %v2879
        %v2881 = vpop.f32.mrb[0].mxu0
        %v2882 = vpop.f32.mrb[0].mxu0
        %v2883 = vpop.f32.mrb[0].mxu0
        %2884 = vdwg.mxu0
        %v2886 = vsel %vm2777, %v2835, 0
        %2888 = vmatprep.subr.bf16.mxu0 0
        %2889 = vmatpush1.bf16.msra.mxu0 %v2839
        %2890 = vmatprep.subr.bf16.mxu0 0
        %2891 = vmatpush1.bf16.msra.mxu0 0
        %2892 = vmatprep.subr.bf16.mxu0 0
        %2893 = vmatpush1.bf16.msra.mxu0 0
        %2894 = vmatprep.subr.bf16.mxu0 0
        %2895 = vmatpush1.bf16.msra.mxu0 0
        %2896 = vmatprep.subr.bf16.mxu0 0
        %2897 = vmatpush1.bf16.msra.mxu0 0
        %2898 = vmatprep.subr.bf16.mxu0 0
        %2899 = vmatpush1.bf16.msra.mxu0 0
        %2900 = vmatprep.subr.bf16.mxu0 0
        %2901 = vmatpush1.bf16.msra.mxu0 0
        %2902 = vmatprep.subr.bf16.mxu0 0
        %2903 = vmatpush1.bf16.msra.mxu0 0
        %2904 = vmatprep.subr.bf16.mxu0 0
        %2905 = vmatpush1.bf16.msra.mxu0 0
        %2906 = vmatprep.subr.bf16.mxu0 0
        %2907 = vmatpush1.bf16.msra.mxu0 0
        %2908 = vmatprep.subr.bf16.mxu0 0
        %2909 = vmatpush1.bf16.msra.mxu0 0
        %2910 = vmatprep.subr.bf16.mxu0 0
        %2911 = vmatpush1.bf16.msra.mxu0 0
        %2912 = vmatprep.subr.bf16.mxu0 0
        %2913 = vmatpush1.bf16.msra.mxu0 0
        %2914 = vmatprep.subr.bf16.mxu0 0
        %2915 = vmatpush1.bf16.msra.mxu0 0
        %2916 = vmatprep.subr.bf16.mxu0 0
        %2917 = vmatpush1.bf16.msra.mxu0 0
        %2918 = vmatprep.subr.bf16.mxu0 0
        %2919 = vmatpush1.bf16.msra.mxu0 0
        %2920 = vmatprep.mubr.bf16.mxu0 0
        %2921 = vmatmul.mubr.bf16.gmra.mrb[0].mxu0 %v2886
        %v2922 = vpop.f32.mrb[0].mxu0
        %v2923 = vadd.f32 0.0, %v2922
        %v2924 = vpop.f32.mrb[0].mxu0
        %v2925 = vpop.f32.mrb[0].mxu0
        %v2926 = vpop.f32.mrb[0].mxu0
        %2927 = vdwg.mxu0
        %v2929 = vsel %vm2777, %v2836, 0
        %2931 = vmatprep.subr.bf16.mxu0 0
        %2932 = vmatpush1.bf16.msra.mxu0 %v2840
        %2933 = vmatprep.subr.bf16.mxu0 0
        %2934 = vmatpush1.bf16.msra.mxu0 0
        %2935 = vmatprep.subr.bf16.mxu0 0
        %2936 = vmatpush1.bf16.msra.mxu0 0
        %2937 = vmatprep.subr.bf16.mxu0 0
        %2938 = vmatpush1.bf16.msra.mxu0 0
        %2939 = vmatprep.subr.bf16.mxu0 0
        %2940 = vmatpush1.bf16.msra.mxu0 0
        %2941 = vmatprep.subr.bf16.mxu0 0
        %2942 = vmatpush1.bf16.msra.mxu0 0
        %2943 = vmatprep.subr.bf16.mxu0 0
        %2944 = vmatpush1.bf16.msra.mxu0 0
        %2945 = vmatprep.subr.bf16.mxu0 0
        %2946 = vmatpush1.bf16.msra.mxu0 0
        %2947 = vmatprep.subr.bf16.mxu0 0
        %2948 = vmatpush1.bf16.msra.mxu0 0
        %2949 = vmatprep.subr.bf16.mxu0 0
        %2950 = vmatpush1.bf16.msra.mxu0 0
        %2951 = vmatprep.subr.bf16.mxu0 0
        %2952 = vmatpush1.bf16.msra.mxu0 0
        %2953 = vmatprep.subr.bf16.mxu0 0
        %2954 = vmatpush1.bf16.msra.mxu0 0
        %2955 = vmatprep.subr.bf16.mxu0 0
        %2956 = vmatpush1.bf16.msra.mxu0 0
        %2957 = vmatprep.subr.bf16.mxu0 0
        %2958 = vmatpush1.bf16.msra.mxu0 0
        %2959 = vmatprep.subr.bf16.mxu0 0
        %2960 = vmatpush1.bf16.msra.mxu0 0
        %2961 = vmatprep.subr.bf16.mxu0 0
        %2962 = vmatpush1.bf16.msra.mxu0 0
        %2963 = vmatprep.mubr.bf16.mxu0 0
        %2964 = vmatmul.mubr.bf16.gmra.mrb[0].mxu0 %v2929
        %v2965 = vpop.f32.mrb[0].mxu0
        %v2966 = vadd.f32 0.0, %v2965
        %v2967 = vpop.f32.mrb[0].mxu0
        %v2968 = vpop.f32.mrb[0].mxu0
        %v2969 = vpop.f32.mrb[0].mxu0
        %2970 = vdwg.mxu0
        %v2972 = vsel %vm2777, %v2837, 0
        %2974 = vmatprep.subr.bf16.mxu0 0
        %2975 = vmatpush1.bf16.msra.mxu0 %v2841
        %2976 = vmatprep.subr.bf16.mxu0 0
        %2977 = vmatpush1.bf16.msra.mxu0 0
        %2978 = vmatprep.subr.bf16.mxu0 0
        %2979 = vmatpush1.bf16.msra.mxu0 0
        %2980 = vmatprep.subr.bf16.mxu0 0
        %2981 = vmatpush1.bf16.msra.mxu0 0
        %2982 = vmatprep.subr.bf16.mxu0 0
        %2983 = vmatpush1.bf16.msra.mxu0 0
        %2984 = vmatprep.subr.bf16.mxu0 0
        %2985 = vmatpush1.bf16.msra.mxu0 0
        %2986 = vmatprep.subr.bf16.mxu0 0
        %2987 = vmatpush1.bf16.msra.mxu0 0
        %2988 = vmatprep.subr.bf16.mxu0 0
        %2989 = vmatpush1.bf16.msra.mxu0 0
        %2990 = vmatprep.subr.bf16.mxu0 0
        %2991 = vmatpush1.bf16.msra.mxu0 0
        %2992 = vmatprep.subr.bf16.mxu0 0
        %2993 = vmatpush1.bf16.msra.mxu0 0
        %2994 = vmatprep.subr.bf16.mxu0 0
        %2995 = vmatpush1.bf16.msra.mxu0 0
        %2996 = vmatprep.subr.bf16.mxu0 0
        %2997 = vmatpush1.bf16.msra.mxu0 0
        %2998 = vmatprep.subr.bf16.mxu0 0
        %2999 = vmatpush1.bf16.msra.mxu0 0
        %3000 = vmatprep.subr.bf16.mxu0 0
        %3001 = vmatpush1.bf16.msra.mxu0 0
        %3002 = vmatprep.subr.bf16.mxu0 0
        %3003 = vmatpush1.bf16.msra.mxu0 0
        %3004 = vmatprep.subr.bf16.mxu0 0
        %3005 = vmatpush1.bf16.msra.mxu0 0
        %3006 = vmatprep.mubr.bf16.mxu0 0
        %3007 = vmatmul.mubr.bf16.gmra.mrb[0].mxu0 %v2972
        %v3008 = vpop.f32.mrb[0].mxu0
        %v3009 = vadd.f32 0.0, %v3008
        %v3010 = vpop.f32.mrb[0].mxu0
        %v3011 = vpop.f32.mrb[0].mxu0
        %v3012 = vpop.f32.mrb[0].mxu0
        %3013 = vdwg.mxu0
        %v3014 = vpack.c.bf16 %v2880, %v2880
        %v3015 = vpack.c.bf16 %v2923, %v2923
        %v3016 = vpack.c.bf16 %v2966, %v2966
        %v3017 = vpack.c.bf16 %v3009, %v3009
        %v3019 = vsel %vm1230, %v3014, 0
        %v3022 = vsel %vm1482, %v2580, 0
        %3024 = vmatprep.subr.bf16.mxu0 0
        %3025 = vmatpush1.bf16.msra.mxu0 %v3022
        %3026 = vmatprep.subr.bf16.mxu0 0
        %3027 = vmatpush1.bf16.msra.mxu0 0
        %3028 = vmatprep.subr.bf16.mxu0 0
        %3029 = vmatpush1.bf16.msra.mxu0 0
        %3030 = vmatprep.subr.bf16.mxu0 0
        %3031 = vmatpush1.bf16.msra.mxu0 0
        %3032 = vmatprep.subr.bf16.mxu0 0
        %3033 = vmatpush1.bf16.msra.mxu0 0
        %3034 = vmatprep.subr.bf16.mxu0 0
        %3035 = vmatpush1.bf16.msra.mxu0 0
        %3036 = vmatprep.subr.bf16.mxu0 0
        %3037 = vmatpush1.bf16.msra.mxu0 0
        %3038 = vmatprep.subr.bf16.mxu0 0
        %3039 = vmatpush1.bf16.msra.mxu0 0
        %3040 = vmatprep.subr.bf16.mxu0 0
        %3041 = vmatpush1.bf16.msra.mxu0 0
        %3042 = vmatprep.subr.bf16.mxu0 0
        %3043 = vmatpush1.bf16.msra.mxu0 0
        %3044 = vmatprep.subr.bf16.mxu0 0
        %3045 = vmatpush1.bf16.msra.mxu0 0
        %3046 = vmatprep.subr.bf16.mxu0 0
        %3047 = vmatpush1.bf16.msra.mxu0 0
        %3048 = vmatprep.subr.bf16.mxu0 0
        %3049 = vmatpush1.bf16.msra.mxu0 0
        %3050 = vmatprep.subr.bf16.mxu0 0
        %3051 = vmatpush1.bf16.msra.mxu0 0
        %3052 = vmatprep.subr.bf16.mxu0 0
        %3053 = vmatpush1.bf16.msra.mxu0 0
        %3054 = vmatprep.subr.bf16.mxu0 0
        %3055 = vmatpush1.bf16.msra.mxu0 0
        %3056 = vmatprep.mubr.bf16.mxu0 0
        %3057 = vmatmul.mubr.bf16.gmra.mrb[0].mxu0 %v3019
        %v3058 = vpop.f32.mrb[0].mxu0
        %v3059 = vadd.f32 0.0, %v3058
        %v3060 = vpop.f32.mrb[0].mxu0
        %v3061 = vpop.f32.mrb[0].mxu0
        %v3062 = vpop.f32.mrb[0].mxu0
        %3063 = vdwg.mxu0
        %v3065 = vsel %vm1230, %v3015, 0
        %v3068 = vsel %vm1482, %v2581, 0
        %3070 = vmatprep.subr.bf16.mxu0 0
        %3071 = vmatpush1.bf16.msra.mxu0 %v3068
        %3072 = vmatprep.subr.bf16.mxu0 0
        %3073 = vmatpush1.bf16.msra.mxu0 0
        %3074 = vmatprep.subr.bf16.mxu0 0
        %3075 = vmatpush1.bf16.msra.mxu0 0
        %3076 = vmatprep.subr.bf16.mxu0 0
        %3077 = vmatpush1.bf16.msra.mxu0 0
        %3078 = vmatprep.subr.bf16.mxu0 0
        %3079 = vmatpush1.bf16.msra.mxu0 0
        %3080 = vmatprep.subr.bf16.mxu0 0
        %3081 = vmatpush1.bf16.msra.mxu0 0
        %3082 = vmatprep.subr.bf16.mxu0 0
        %3083 = vmatpush1.bf16.msra.mxu0 0
        %3084 = vmatprep.subr.bf16.mxu0 0
        %3085 = vmatpush1.bf16.msra.mxu0 0
        %3086 = vmatprep.subr.bf16.mxu0 0
        %3087 = vmatpush1.bf16.msra.mxu0 0
        %3088 = vmatprep.subr.bf16.mxu0 0
        %3089 = vmatpush1.bf16.msra.mxu0 0
        %3090 = vmatprep.subr.bf16.mxu0 0
        %3091 = vmatpush1.bf16.msra.mxu0 0
        %3092 = vmatprep.subr.bf16.mxu0 0
        %3093 = vmatpush1.bf16.msra.mxu0 0
        %3094 = vmatprep.subr.bf16.mxu0 0
        %3095 = vmatpush1.bf16.msra.mxu0 0
        %3096 = vmatprep.subr.bf16.mxu0 0
        %3097 = vmatpush1.bf16.msra.mxu0 0
        %3098 = vmatprep.subr.bf16.mxu0 0
        %3099 = vmatpush1.bf16.msra.mxu0 0
        %3100 = vmatprep.subr.bf16.mxu0 0
        %3101 = vmatpush1.bf16.msra.mxu0 0
        %3102 = vmatprep.mubr.bf16.mxu0 0
        %3103 = vmatmul.mubr.bf16.gmra.mrb[0].mxu0 %v3065
        %v3104 = vpop.f32.mrb[0].mxu0
        %v3105 = vadd.f32 0.0, %v3104
        %v3106 = vpop.f32.mrb[0].mxu0
        %v3107 = vpop.f32.mrb[0].mxu0
        %v3108 = vpop.f32.mrb[0].mxu0
        %3109 = vdwg.mxu0
        %v3111 = vsel %vm1230, %v3016, 0
        %v3114 = vsel %vm1482, %v2582, 0
        %3116 = vmatprep.subr.bf16.mxu0 0
        %3117 = vmatpush1.bf16.msra.mxu0 %v3114
        %3118 = vmatprep.subr.bf16.mxu0 0
        %3119 = vmatpush1.bf16.msra.mxu0 0
        %3120 = vmatprep.subr.bf16.mxu0 0
        %3121 = vmatpush1.bf16.msra.mxu0 0
        %3122 = vmatprep.subr.bf16.mxu0 0
        %3123 = vmatpush1.bf16.msra.mxu0 0
        %3124 = vmatprep.subr.bf16.mxu0 0
        %3125 = vmatpush1.bf16.msra.mxu0 0
        %3126 = vmatprep.subr.bf16.mxu0 0
        %3127 = vmatpush1.bf16.msra.mxu0 0
        %3128 = vmatprep.subr.bf16.mxu0 0
        %3129 = vmatpush1.bf16.msra.mxu0 0
        %3130 = vmatprep.subr.bf16.mxu0 0
        %3131 = vmatpush1.bf16.msra.mxu0 0
        %3132 = vmatprep.subr.bf16.mxu0 0
        %3133 = vmatpush1.bf16.msra.mxu0 0
        %3134 = vmatprep.subr.bf16.mxu0 0
        %3135 = vmatpush1.bf16.msra.mxu0 0
        %3136 = vmatprep.subr.bf16.mxu0 0
        %3137 = vmatpush1.bf16.msra.mxu0 0
        %3138 = vmatprep.subr.bf16.mxu0 0
        %3139 = vmatpush1.bf16.msra.mxu0 0
        %3140 = vmatprep.subr.bf16.mxu0 0
        %3141 = vmatpush1.bf16.msra.mxu0 0
        %3142 = vmatprep.subr.bf16.mxu0 0
        %3143 = vmatpush1.bf16.msra.mxu0 0
        %3144 = vmatprep.subr.bf16.mxu0 0
        %3145 = vmatpush1.bf16.msra.mxu0 0
        %3146 = vmatprep.subr.bf16.mxu0 0
        %3147 = vmatpush1.bf16.msra.mxu0 0
        %3148 = vmatprep.mubr.bf16.mxu0 0
        %3149 = vmatmul.mubr.bf16.gmra.mrb[0].mxu0 %v3111
        %v3150 = vpop.f32.mrb[0].mxu0
        %v3151 = vadd.f32 0.0, %v3150
        %v3152 = vpop.f32.mrb[0].mxu0
        %v3153 = vpop.f32.mrb[0].mxu0
        %v3154 = vpop.f32.mrb[0].mxu0
        %3155 = vdwg.mxu0
        %v3157 = vsel %vm1230, %v3017, 0
        %v3160 = vsel %vm1482, %v2583, 0
        %3162 = vmatprep.subr.bf16.mxu0 0
        %3163 = vmatpush1.bf16.msra.mxu0 %v3160
        %3164 = vmatprep.subr.bf16.mxu0 0
        %3165 = vmatpush1.bf16.msra.mxu0 0
        %3166 = vmatprep.subr.bf16.mxu0 0
        %3167 = vmatpush1.bf16.msra.mxu0 0
        %3168 = vmatprep.subr.bf16.mxu0 0
        %3169 = vmatpush1.bf16.msra.mxu0 0
        %3170 = vmatprep.subr.bf16.mxu0 0
        %3171 = vmatpush1.bf16.msra.mxu0 0
        %3172 = vmatprep.subr.bf16.mxu0 0
        %3173 = vmatpush1.bf16.msra.mxu0 0
        %3174 = vmatprep.subr.bf16.mxu0 0
        %3175 = vmatpush1.bf16.msra.mxu0 0
        %3176 = vmatprep.subr.bf16.mxu0 0
        %3177 = vmatpush1.bf16.msra.mxu0 0
        %3178 = vmatprep.subr.bf16.mxu0 0
        %3179 = vmatpush1.bf16.msra.mxu0 0
        %3180 = vmatprep.subr.bf16.mxu0 0
        %3181 = vmatpush1.bf16.msra.mxu0 0
        %3182 = vmatprep.subr.bf16.mxu0 0
        %3183 = vmatpush1.bf16.msra.mxu0 0
        %3184 = vmatprep.subr.bf16.mxu0 0
        %3185 = vmatpush1.bf16.msra.mxu0 0
        %3186 = vmatprep.subr.bf16.mxu0 0
        %3187 = vmatpush1.bf16.msra.mxu0 0
        %3188 = vmatprep.subr.bf16.mxu0 0
        %3189 = vmatpush1.bf16.msra.mxu0 0
        %3190 = vmatprep.subr.bf16.mxu0 0
        %3191 = vmatpush1.bf16.msra.mxu0 0
        %3192 = vmatprep.subr.bf16.mxu0 0
        %3193 = vmatpush1.bf16.msra.mxu0 0
        %3194 = vmatprep.mubr.bf16.mxu0 0
        %3195 = vmatmul.mubr.bf16.gmra.mrb[0].mxu0 %v3157
        %v3196 = vpop.f32.mrb[0].mxu0
        %v3197 = vadd.f32 0.0, %v3196
        %v3198 = vpop.f32.mrb[0].mxu0
        %v3199 = vpop.f32.mrb[0].mxu0
        %v3200 = vpop.f32.mrb[0].mxu0
        %3201 = vdwg.mxu0
        %v3202 = vsel %vm516, %v3059, 0.0
        %v3203 = vsel %vm516, %v3105, 0.0
        %v3204 = vadd.f32 %v3202, %v3203
        %v3205 = vsel %vm516, %v3151, 0.0
        %v3206 = vadd.f32 %v3204, %v3205
        %v3207 = vsel %vm516, %v3197, 0.0
        %v3208 = vadd.f32 %v3206, %v3207
        %v3210 = vlaneseq
        %v3211 = vshrl.u32 %v3210, 7
        %v3212 = vsub.s32 0, %v3211
        %v3213 = vrot.slane %v2584, %v3212
        %v3215 = vadd.f32 %v3208, %v3213
        %v3216 = vadd.f32 %v3215, %v1866
        %v3217 = vld [vmem:[%s2 + $0x2] sm:$0x1]
        %v3218 = vld [vmem:[%s3 + $0x2] sm:$0x1]
        %v3219 = vsel %vm516, %v3216, 0.0
        %3220 = vadd.xlane.f32.xlu0 %v3219
        %v3221 = vpop.xlane.xlu0 %3220
        %v3222 = vmul.f32 %v3221, %v520
        %v3223 = vsub.f32 %v3216, %v3222
        %v3224 = vmul.f32 %v3223, %v3223
        %v3225 = vsel %vm516, %v3224, 0.0
        %3226 = vadd.xlane.f32.xlu0 %v3225
        %v3227 = vpop.xlane.xlu0 %3226
        %v3228 = vmul.f32 %v3227, %v520
        %v3229 = vadd.f32 %v3228, 1e-12
        %v3230 = vrsqrt.pop %v3229
        %v3231 = vmul.f32 %v3223, %v3230
        %v3232 = vlaneseq
        %v3233 = vshrl.u32 %v3232, 7
        %v3234 = vsub.s32 0, %v3233
        %v3235 = vrot.slane %v3217, %v3234
        %v3236 = vmul.f32 %v3231, %v3235
        %v3237 = vlaneseq
        %v3238 = vshrl.u32 %v3237, 7
        %v3239 = vsub.s32 0, %v3238
        %v3240 = vrot.slane %v3218, %v3239
        %v3241 = vadd.f32 %v3236, %v3240
        %v3242 = vpack.c.bf16 %v3241, %v3241
        %v3243 = vld [vmem:[%s11] sm:$0xff]
        %v3244 = vld [vmem:[%s11 + $0x8] sm:$0xff]
        %v3245 = vld [vmem:[%s11 + $0x10] sm:$0xff]
        %v3246 = vld [vmem:[%s11 + $0x18] sm:$0xff]
        %v3247 = vld [vmem:[%s12] sm:$0x3]
        %v3249 = vlaneseq
        %v3250 = vshrl.u32 %v3249, 7
        %v3251 = vsub.s32 0, %v3250
        %v3252 = vrot.slane %v3247, %v3251
        %v3253 = vlaneseq
        %v3254 = vshrl.u32 %v3253, 7
        %v3255 = vsub.s32 1, %v3254
        %v3256 = vrot.slane %v3247, %v3255
        %v3263 = vunpack.c.l.b16 %v3243
        %v3264 = vunpack.c.h.b16 %v3243
        %v3265 = vunpack.c.l.b16 %v3244
        %v3266 = vunpack.c.h.b16 %v3244
        %v3267 = vunpack.c.l.b16 %v3245
        %v3268 = vunpack.c.h.b16 %v3245
        %v3269 = vunpack.c.l.b16 %v3246
        %v3270 = vunpack.c.h.b16 %v3246
        %v3271 = vpack.c.b16 %v3265, %v3263
        %v3272 = vpack.c.b16 %v3266, %v3264
        %v3273 = vpack.c.b16 %v3269, %v3267
        %v3274 = vpack.c.b16 %v3270, %v3268
        %v3280 = vsel %vm516, %v3242, 0
        %3282 = vmatprep.subr.bf16.mxu0 %v3272
        %3283 = vmatpush1.bf16.msra.mxu0 %v3271
        %3284 = vmatprep.subr.bf16.mxu0 %v3274
        %3285 = vmatpush1.bf16.msra.mxu0 %v3273
        %3286 = vmatprep.subr.bf16.mxu0 0
        %3287 = vmatpush1.bf16.msra.mxu0 0
        %3288 = vmatprep.subr.bf16.mxu0 0
        %3289 = vmatpush1.bf16.msra.mxu0 0
        %3290 = vmatprep.subr.bf16.mxu0 0
        %3291 = vmatpush1.bf16.msra.mxu0 0
        %3292 = vmatprep.subr.bf16.mxu0 0
        %3293 = vmatpush1.bf16.msra.mxu0 0
        %3294 = vmatprep.subr.bf16.mxu0 0
        %3295 = vmatpush1.bf16.msra.mxu0 0
        %3296 = vmatprep.subr.bf16.mxu0 0
        %3297 = vmatpush1.bf16.msra.mxu0 0
        %3298 = vmatprep.subr.bf16.mxu0 0
        %3299 = vmatpush1.bf16.msra.mxu0 0
        %3300 = vmatprep.subr.bf16.mxu0 0
        %3301 = vmatpush1.bf16.msra.mxu0 0
        %3302 = vmatprep.subr.bf16.mxu0 0
        %3303 = vmatpush1.bf16.msra.mxu0 0
        %3304 = vmatprep.subr.bf16.mxu0 0
        %3305 = vmatpush1.bf16.msra.mxu0 0
        %3306 = vmatprep.subr.bf16.mxu0 0
        %3307 = vmatpush1.bf16.msra.mxu0 0
        %3308 = vmatprep.subr.bf16.mxu0 0
        %3309 = vmatpush1.bf16.msra.mxu0 0
        %3310 = vmatprep.subr.bf16.mxu0 0
        %3311 = vmatpush1.bf16.msra.mxu0 0
        %3312 = vmatprep.subr.bf16.mxu0 0
        %3313 = vmatpush1.bf16.msra.mxu0 0
        %3314 = vmatprep.mubr.bf16.mxu0 0
        %3315 = vmatmul.mubr.bf16.gmra.mrb[0].mxu0 %v3280
        %v3316 = vpop.f32.mrb[0].mxu0
        %v3317 = vadd.f32 %v3252, %v3316
        %v3318 = vpop.f32.mrb[0].mxu0
        %v3319 = vadd.f32 %v3256, %v3318
        %v3320 = vpop.f32.mrb[0].mxu0
        %v3321 = vpop.f32.mrb[0].mxu0
        %3322 = vdwg.mxu0
        %v3323 = vmul.f32 %v3319, 0.5
        %v3324 = vmul.f32 %v3319, 0.70710677
        %v3325 = verf.f32.pop %v3324
        %v3326 = vadd.f32 %v3325, 1.0
        %v3327 = vmul.f32 %v3323, %v3326
        %v3328 = vmul.f32 %v3317, %v3327
        %v3329 = vpack.c.bf16 %v3328, %v3328
        %v3330 = vld [vmem:[%s13] sm:$0xf]
        %v3331 = vld [vmem:[%s13 + $0x4] sm:$0xf]
        %v3332 = vld [vmem:[%s13 + $0x8] sm:$0xf]
        %v3333 = vld [vmem:[%s13 + $0xc] sm:$0xf]
        %v3334 = vld [vmem:[%s13 + $0x10] sm:$0xf]
        %v3335 = vld [vmem:[%s13 + $0x14] sm:$0xf]
        %v3336 = vld [vmem:[%s13 + $0x18] sm:$0xf]
        %v3337 = vld [vmem:[%s13 + $0x1c] sm:$0xf]
        %v3338 = vld [vmem:[%s13 + $0x20] sm:$0xf]
        %v3339 = vld [vmem:[%s13 + $0x24] sm:$0xf]
        %v3340 = vld [vmem:[%s13 + $0x28] sm:$0xf]
        %v3341 = vld [vmem:[%s13 + $0x2c] sm:$0xf]
        %v3342 = vld [vmem:[%s13 + $0x30] sm:$0xf]
        %v3343 = vld [vmem:[%s13 + $0x34] sm:$0xf]
        %v3344 = vld [vmem:[%s13 + $0x38] sm:$0xf]
        %v3345 = vld [vmem:[%s13 + $0x3c] sm:$0xf]
        %v3346 = vld [vmem:[%s14] sm:$0x1]
        %v3348 = vlaneseq
        %v3349 = vshrl.u32 %v3348, 7
        %v3350 = vsub.s32 0, %v3349
        %v3351 = vrot.slane %v3346, %v3350
        %v3369 = vunpack.c.l.b16 %v3330
        %v3370 = vunpack.c.l.b16 %v3331
        %v3371 = vunpack.c.l.b16 %v3332
        %v3372 = vunpack.c.l.b16 %v3333
        %v3373 = vunpack.c.l.b16 %v3334
        %v3374 = vunpack.c.l.b16 %v3335
        %v3375 = vunpack.c.l.b16 %v3336
        %v3376 = vunpack.c.l.b16 %v3337
        %v3377 = vunpack.c.l.b16 %v3338
        %v3378 = vunpack.c.l.b16 %v3339
        %v3379 = vunpack.c.l.b16 %v3340
        %v3380 = vunpack.c.l.b16 %v3341
        %v3381 = vunpack.c.l.b16 %v3342
        %v3382 = vunpack.c.l.b16 %v3343
        %v3383 = vunpack.c.l.b16 %v3344
        %v3384 = vunpack.c.l.b16 %v3345
        %v3385 = vpack.c.b16 %v3370, %v3369
        %v3386 = vpack.c.b16 %v3372, %v3371
        %v3387 = vpack.c.b16 %v3374, %v3373
        %v3388 = vpack.c.b16 %v3376, %v3375
        %v3389 = vpack.c.b16 %v3378, %v3377
        %v3390 = vpack.c.b16 %v3380, %v3379
        %v3391 = vpack.c.b16 %v3382, %v3381
        %v3392 = vpack.c.b16 %v3384, %v3383
        %3401 = vmatprep.subr.bf16.mxu0 0
        %3402 = vmatpush1.bf16.msra.mxu0 %v3385
        %3403 = vmatprep.subr.bf16.mxu0 0
        %3404 = vmatpush1.bf16.msra.mxu0 %v3386
        %3405 = vmatprep.subr.bf16.mxu0 0
        %3406 = vmatpush1.bf16.msra.mxu0 %v3387
        %3407 = vmatprep.subr.bf16.mxu0 0
        %3408 = vmatpush1.bf16.msra.mxu0 %v3388
        %3409 = vmatprep.subr.bf16.mxu0 0
        %3410 = vmatpush1.bf16.msra.mxu0 %v3389
        %3411 = vmatprep.subr.bf16.mxu0 0
        %3412 = vmatpush1.bf16.msra.mxu0 %v3390
        %3413 = vmatprep.subr.bf16.mxu0 0
        %3414 = vmatpush1.bf16.msra.mxu0 %v3391
        %3415 = vmatprep.subr.bf16.mxu0 0
        %3416 = vmatpush1.bf16.msra.mxu0 %v3392
        %3417 = vmatprep.subr.bf16.mxu0 0
        %3418 = vmatpush1.bf16.msra.mxu0 0
        %3419 = vmatprep.subr.bf16.mxu0 0
        %3420 = vmatpush1.bf16.msra.mxu0 0
        %3421 = vmatprep.subr.bf16.mxu0 0
        %3422 = vmatpush1.bf16.msra.mxu0 0
        %3423 = vmatprep.subr.bf16.mxu0 0
        %3424 = vmatpush1.bf16.msra.mxu0 0
        %3425 = vmatprep.subr.bf16.mxu0 0
        %3426 = vmatpush1.bf16.msra.mxu0 0
        %3427 = vmatprep.subr.bf16.mxu0 0
        %3428 = vmatpush1.bf16.msra.mxu0 0
        %3429 = vmatprep.subr.bf16.mxu0 0
        %3430 = vmatpush1.bf16.msra.mxu0 0
        %3431 = vmatprep.subr.bf16.mxu0 0
        %3432 = vmatpush1.bf16.msra.mxu0 0
        %3433 = vmatprep.mubr.bf16.mxu0 0
        %3434 = vmatmul.mubr.bf16.gmra.mrb[0].mxu0 %v3329
        %v3435 = vpop.f32.mrb[0].mxu0
        %v3436 = vadd.f32 %v3351, %v3435
        %v3437 = vpop.f32.mrb[0].mxu0
        %v3438 = vpop.f32.mrb[0].mxu0
        %v3439 = vpop.f32.mrb[0].mxu0
        %3440 = vdwg.mxu0
        %v3441 = vadd.f32 %v3436, %v3216
        %3442 = vst.msk [vmem:[%s500] sm:$0xff] %vm516, %v3441
        %s3443 = sand.u32 %s362, 1
        %s3444 = scalar_lea.sflag [#allocation3], %s3443
        %s3445 = sand.u32 %s362, 1
        %s3446 = smul.addr %s3445, 8
        %s3447 = scalar_lea.vmem [#allocation2], %s3446
        // Predicated region
        $region81: #{basic_transformer_block.1} parent=79 // pred_check
          %p3448 = pneg %p372
        $region82: #{basic_transformer_block.1} parent=79 // pred_check_branch
          %3450 = sbr.rel (%p3448) target = $region84
        $region83: #{basic_transformer_block.1} parent=79 // pred_region
          %s3452 = ssub.s32 128, 128
          %3453 = vsyncadd %s3444, %s3452
          %s3454 = smul.addr %s29, 128
          %s3455 = scalar_lea.hbm %s15, %s3454
          %s3457 = sshll.u32 %s3447, 4
          %s3458 = int_to_ptr.vmem [resolvable:$true] %s3457
          %3460 = dma.vmem_to_hbm [thread:$0]  %s3458, 128, %s3455, %s3444
        $region84: #{basic_transformer_block.1} parent=79 // pred_fallthru
          _
      $region80: #{basic_transformer_block.1} parent=5 // pred_fallthru
        _
      %p3461 = scmp.le.s32.totalorder 2, %s24
      // Predicated region
      $region85: #{basic_transformer_block.1} parent=5 // pred_check
        %p3462 = pneg %p3461
      $region86: #{basic_transformer_block.1} parent=5 // pred_check_branch
        %3464 = sbr.rel (%p3462) target = $region88
      $region87: #{basic_transformer_block.1} parent=5 // pred_region
        %s3465 = ssub.s32 %s24, 2
        // Predicated region
        $region89: #{basic_transformer_block.1} parent=87 // pred_check
          %p3466 = pneg %p378
        $region90: #{basic_transformer_block.1} parent=87 // pred_check_branch
          %3468 = sbr.rel (%p3466) target = $region92
        $region91: #{basic_transformer_block.1} parent=87 // pred_region
          %s3469 = sand.u32 %s363, 1
          %s3470 = scalar_lea.sflag [#allocation3], %s3469
          %s3471 = sand.u32 %s363, 1
          %s3472 = smul.addr %s3471, 8
          %s3473 = scalar_lea.vmem [#allocation2], %s3472
          %3474 = dma.done %s3470, 128
        $region92: #{basic_transformer_block.1} parent=87 // pred_fallthru
          _
      $region88: #{basic_transformer_block.1} parent=5 // pred_fallthru
        _
    $region6: #{basic_transformer_block.1} parent=1 // loop_footer
      %s28 = sadd.s32 1, %s24
    $region7: #{basic_transformer_block.1} parent=1 // loop_footer_branch
      %23 = sbr.rel target = $region3
    $region8: #{basic_transformer_block.1} parent=1 // loop_exit
      _
    %3475 = vsyncpa [#allocation3], 1
    %s3476 = scalar_lea.sflag [#allocation3], 1
    %3477 = vsyncpa %s3476, 1

</llo_original>
